<compile_context>
chip_gen: v6e
topology: v6e:2x2x1
jax: 0.10.0
libtpu: 0.0.40
codegen_flags: <defaults>
</compile_context>

<pallas_src>
import functools

import jax
import jax.numpy as jnp
from jax import lax
from jax.experimental import pallas as pl
from jax.experimental.pallas import tpu as pltpu


# ------------------------------- helpers ----------------------------------- #
def _round_up(x, m):
    return (x + m - 1) // m * m


def _pick_th(H, W, max_rows=512):
    """Rows-per-strip: largest divisor of H with th*W <= max_rows and >=2 strips."""
    for th in range(H, 0, -1):
        if H % th == 0 and th * W <= max_rows and H // th >= 2:
            return th
    return H  # fall back to one strip per image


def _pool_count(H, W):
    """valid-neighbor count for 3x3 avgpool, count_include_pad=False (reference)."""
    ih = jnp.arange(H)
    iw = jnp.arange(W)
    ch = jnp.minimum(ih + 1, H - 1) - jnp.maximum(ih - 1, 0) + 1
    cw = jnp.minimum(iw + 1, W - 1) - jnp.maximum(iw - 1, 0) + 1
    return (ch[:, None] * cw[None, :]).astype(jnp.float32)


def _conv_params():
    return pltpu.CompilerParams(
        dimension_semantics=("parallel", "parallel"),
        vmem_limit_bytes=32 * 1024 * 1024)


# ---------------------------- Pallas kernels ------------------------------- #
def _heads1x1_kernel(x_ref, w_ref, s_ref, b_ref, o0_ref, o1_ref, *, th, W, c0, cp0):
    # x: (1, th, W, Cin) bf16, w: (Cin, cp0+cp12) bf16, s/b: (1, cp0+cp12) f32
    # o0: (1, th, W, c0)  f32  (branch0, exact width)
    # o1: (1, th, W, cp12) bf16 (packed [y1|y2], 128-padded)
    Cin = x_ref.shape[-1]
    rows = x_ref[0].reshape(th * W, Cin)
    acc = jnp.dot(rows, w_ref[...], preferred_element_type=jnp.float32)
    y = jnp.maximum(acc * s_ref[...] + b_ref[...], 0.0)
    o0_ref[0] = y[:, :c0].reshape(th, W, c0).astype(o0_ref.dtype)
    o1_ref[0] = y[:, cp0:].reshape(th, W, o1_ref.shape[-1]).astype(o1_ref.dtype)


def _conv3x3_taps(xp_ref, w_ref, r0, th, W):
    # xp: (1, H+2, W+2, Cin) resident zero-padded image; w: (3, 3*Cin, Co) bf16.
    # K-merged taps: for each dx, concat the 3 dy-shifted slices along channels
    # and do one K=3*Cin MXU dot (3 dots total instead of 9).
    Cin = xp_ref.shape[-1]
    blk = xp_ref[0, pl.ds(r0, th + 2)]                       # (th+2, W+2, Cin)
    acc = None
    for dx in range(3):
        cols = blk[:, dx:dx + W, :]                          # (th+2, W, Cin)
        patch = jnp.concatenate(
            [cols[0:th], cols[1:th + 1], cols[2:th + 2]], axis=-1
        ).reshape(th * W, 3 * Cin)
        d = jnp.dot(patch, w_ref[dx], preferred_element_type=jnp.float32)
        acc = d if acc is None else acc + d
    return acc                                               # (th*W, Co) f32


def _conv3x3_dual_kernel(xp_ref, w_ref, s_ref, b_ref, o0_ref, o1_ref,
                         *, th, W, c0, cp0):
    # Fused block-diagonal 3x3: cols [0:c0] -> f32 branch output,
    # cols [cp0:Co] -> bf16 intermediate (128-padded).
    r0 = pl.program_id(1) * th
    acc = _conv3x3_taps(xp_ref, w_ref, r0, th, W)
    y = jnp.maximum(acc * s_ref[...] + b_ref[...], 0.0)
    o0_ref[0] = y[:, :c0].reshape(th, W, c0).astype(o0_ref.dtype)
    o1_ref[0] = y[:, cp0:].reshape(th, W, o1_ref.shape[-1]).astype(o1_ref.dtype)


def _conv3x3_kernel(xp_ref, w_ref, s_ref, b_ref, o_ref, *, th, W, c0):
    r0 = pl.program_id(1) * th
    acc = _conv3x3_taps(xp_ref, w_ref, r0, th, W)
    y = jnp.maximum(acc * s_ref[...] + b_ref[...], 0.0)
    o_ref[0] = y[:, :c0].reshape(th, W, c0).astype(o_ref.dtype)


def _pool_conv1x1_kernel(xp_ref, w_ref, s_ref, b_ref, o_ref, *, th, W, H, c0):
    # AvgPool(3,1,1,count_include_pad=False) + 1x1 conv + BN + ReLU on a strip.
    Cin = xp_ref.shape[-1]
    r0 = pl.program_id(1) * th
    rows = xp_ref[0, pl.ds(r0, th + 2)].astype(jnp.float32)  # (th+2, W+2, Cin)
    # separable 3x3 sum: 3 adds along W, then 3 along H
    tw = rows[:, 0:W] + rows[:, 1:W + 1] + rows[:, 2:W + 2]  # (th+2, W, Cin)
    pooled = tw[0:th] + tw[1:th + 1] + tw[2:th + 2]          # (th, W, Cin)
    # valid-neighbour counts computed in-kernel (no side input stream)
    ys = r0 + lax.broadcasted_iota(jnp.int32, (th, W, Cin), 0)
    xs = lax.broadcasted_iota(jnp.int32, (th, W, Cin), 1)
    cnt = ((jnp.minimum(ys + 1, H - 1) - jnp.maximum(ys - 1, 0) + 1) *
           (jnp.minimum(xs + 1, W - 1) - jnp.maximum(xs - 1, 0) + 1))
    inv = pl.reciprocal(cnt.astype(jnp.float32), approx=True)
    pooled = (pooled * inv).astype(jnp.bfloat16).reshape(th * W, Cin)
    acc = jnp.dot(pooled, w_ref[...], preferred_element_type=jnp.float32)
    y = jnp.maximum(acc * s_ref[...] + b_ref[...], 0.0)
    o_ref[0] = y[:, :c0].reshape(th, W, c0).astype(o_ref.dtype)


# ------------------------------ wrappers ------------------------------------ #
def heads_1x1(x, w, s, b, th, c0, cp0, cp12):
    N, H, W, Cin = x.shape
    nH = H // th
    Ct = cp0 + cp12
    kern = functools.partial(_heads1x1_kernel, th=th, W=W, c0=c0, cp0=cp0)
    ce = pl.CostEstimate(flops=2 * N * H * W * Cin * Ct, transcendentals=0,
                         bytes_accessed=2 * N * H * W * Cin + 2 * Cin * Ct
                         + 4 * N * H * W * c0 + 2 * N * H * W * cp12)
    return pl.pallas_call(
        kern,
        out_shape=(jax.ShapeDtypeStruct((N, H, W, c0), jnp.float32),
                   jax.ShapeDtypeStruct((N, H, W, cp12), jnp.bfloat16)),
        grid=(N, nH),
        in_specs=[
            pl.BlockSpec((1, th, W, Cin), lambda n, i: (n, i, 0, 0)),
            pl.BlockSpec((Cin, Ct), lambda n, i: (0, 0)),
            pl.BlockSpec((1, Ct), lambda n, i: (0, 0)),
            pl.BlockSpec((1, Ct), lambda n, i: (0, 0)),
        ],
        out_specs=(pl.BlockSpec((1, th, W, c0), lambda n, i: (n, i, 0, 0)),
                   pl.BlockSpec((1, th, W, cp12), lambda n, i: (n, i, 0, 0))),
        compiler_params=_conv_params(),
        cost_estimate=ce,
    )(x, w, s, b)


def conv3x3_dual(x, w, s, b, th, c0, cp0):
    # x: (N,H,W,Ki) bf16 packed [y1|y2]; w: (3, 3*Ki, Co) block-diagonal.
    N, H, W, Ki = x.shape
    nH = H // th
    Co = w.shape[-1]
    cp1 = Co - cp0
    xp = jnp.pad(x, ((0, 0), (1, 1), (1, 1), (0, 0)))
    kern = functools.partial(_conv3x3_dual_kernel, th=th, W=W, c0=c0, cp0=cp0)
    ce = pl.CostEstimate(flops=2 * N * H * W * 9 * Ki * Co, transcendentals=0,
                         bytes_accessed=2 * xp.size + 2 * w.size
                         + 4 * N * H * W * c0 + 2 * N * H * W * cp1)
    return pl.pallas_call(
        kern,
        out_shape=(jax.ShapeDtypeStruct((N, H, W, c0), jnp.float32),
                   jax.ShapeDtypeStruct((N, H, W, cp1), jnp.bfloat16)),
        grid=(N, nH),
        in_specs=[
            pl.BlockSpec((1, H + 2, W + 2, Ki), lambda n, i: (n, 0, 0, 0)),
            pl.BlockSpec((3, 3 * Ki, Co), lambda n, i: (0, 0, 0)),
            pl.BlockSpec((1, Co), lambda n, i: (0, 0)),
            pl.BlockSpec((1, Co), lambda n, i: (0, 0)),
        ],
        out_specs=(pl.BlockSpec((1, th, W, c0), lambda n, i: (n, i, 0, 0)),
                   pl.BlockSpec((1, th, W, cp1), lambda n, i: (n, i, 0, 0))),
        compiler_params=_conv_params(),
        cost_estimate=ce,
    )(xp, w, s, b)


def conv3x3_single(x, w, s, b, th, c0):
    N, H, W, Ki = x.shape
    nH = H // th
    Co = w.shape[-1]
    xp = jnp.pad(x, ((0, 0), (1, 1), (1, 1), (0, 0)))
    kern = functools.partial(_conv3x3_kernel, th=th, W=W, c0=c0)
    ce = pl.CostEstimate(flops=2 * N * H * W * 9 * Ki * Co, transcendentals=0,
                         bytes_accessed=2 * xp.size + 2 * w.size + 4 * N * H * W * c0)
    return pl.pallas_call(
        kern,
        out_shape=jax.ShapeDtypeStruct((N, H, W, c0), jnp.float32),
        grid=(N, nH),
        in_specs=[
            pl.BlockSpec((1, H + 2, W + 2, Ki), lambda n, i: (n, 0, 0, 0)),
            pl.BlockSpec((3, 3 * Ki, Co), lambda n, i: (0, 0, 0)),
            pl.BlockSpec((1, Co), lambda n, i: (0, 0)),
            pl.BlockSpec((1, Co), lambda n, i: (0, 0)),
        ],
        out_specs=pl.BlockSpec((1, th, W, c0), lambda n, i: (n, i, 0, 0)),
        compiler_params=_conv_params(),
        cost_estimate=ce,
    )(xp, w, s, b)


def pool_conv1x1(x, w, s, b, th, c0):
    N, H, W, Cin = x.shape
    nH = H // th
    Co = w.shape[-1]
    xp = jnp.pad(x, ((0, 0), (1, 1), (1, 1), (0, 0)))
    kern = functools.partial(_pool_conv1x1_kernel, th=th, W=W, H=H, c0=c0)
    ce = pl.CostEstimate(flops=2 * N * H * W * Cin * Co + 8 * N * H * W * Cin,
                         transcendentals=N * H * W * Cin,
                         bytes_accessed=2 * xp.size + 2 * w.size + 4 * N * H * W * c0)
    return pl.pallas_call(
        kern,
        out_shape=jax.ShapeDtypeStruct((N, H, W, c0), jnp.float32),
        grid=(N, nH),
        in_specs=[
            pl.BlockSpec((1, H + 2, W + 2, Cin), lambda n, i: (n, 0, 0, 0)),
            pl.BlockSpec((Cin, Co), lambda n, i: (0, 0)),
            pl.BlockSpec((1, Co), lambda n, i: (0, 0)),
            pl.BlockSpec((1, Co), lambda n, i: (0, 0)),
        ],
        out_specs=pl.BlockSpec((1, th, W, c0), lambda n, i: (n, i, 0, 0)),
        compiler_params=_conv_params(),
        cost_estimate=ce,
    )(xp, w, s, b)


# --------------------------- parameter packing ------------------------------ #
def _prep_heads(params, Cin):
    p0, p1, p2 = params["b0"], params["b1_0"], params["b2_0"]
    c0 = p0["w"].shape[-1]
    c1 = p1["w"].shape[-1]
    c2 = p2["w"].shape[-1]
    cp0 = _round_up(c0, 128)
    cp12 = _round_up(c1 + c2, 128)
    Ct = cp0 + cp12
    w = jnp.zeros((Cin, Ct), jnp.float32)
    w = w.at[:, :c0].set(p0["w"])
    w = w.at[:, cp0:cp0 + c1].set(p1["w"])
    w = w.at[:, cp0 + c1:cp0 + c1 + c2].set(p2["w"])
    s = jnp.ones((Ct,), jnp.float32)
    s = s.at[:c0].set(p0["scale"]).at[cp0:cp0 + c1].set(p1["scale"])
    s = s.at[cp0 + c1:cp0 + c1 + c2].set(p2["scale"])
    b = jnp.zeros((Ct,), jnp.float32)
    b = b.at[:c0].set(p0["bias"]).at[cp0:cp0 + c1].set(p1["bias"])
    b = b.at[cp0 + c1:cp0 + c1 + c2].set(p2["bias"])
    return (w.astype(jnp.bfloat16), s.reshape(1, Ct), b.reshape(1, Ct),
            c0, c1, c2, cp0, cp12)


def _merge_w3x3(w4):
    # (3,3,Ki,Co) HWIO -> (dx, 3*Ki, Co), rows ordered dy-major / channel-minor
    return jnp.transpose(w4, (1, 0, 2, 3)).reshape(3, 3 * w4.shape[2], w4.shape[3])


def _prep_pair3x3(pa, pb, ca_in, cb_in, Ki):
    # block-diagonal: pa on input channels [0:ca_in] -> out cols [0:ca],
    #                 pb on [ca_in:ca_in+cb_in] -> out cols [cpa:cpa+cb]
    ca = pa["w"].shape[-1]
    cb = pb["w"].shape[-1]
    cpa = _round_up(ca, 128)
    cpb = _round_up(cb, 128)
    Co = cpa + cpb
    w = jnp.zeros((3, 3, Ki, Co), jnp.float32)
    w = w.at[:, :, :ca_in, :ca].set(pa["w"])
    w = w.at[:, :, ca_in:ca_in + cb_in, cpa:cpa + cb].set(pb["w"])
    s = jnp.ones((Co,), jnp.float32).at[:ca].set(pa["scale"]).at[cpa:cpa + cb].set(pb["scale"])
    b = jnp.zeros((Co,), jnp.float32).at[:ca].set(pa["bias"]).at[cpa:cpa + cb].set(pb["bias"])
    return (_merge_w3x3(w).astype(jnp.bfloat16), s.reshape(1, Co), b.reshape(1, Co),
            ca, cb, cpa, cpb)


def _prep_single3x3(p, cin_valid, Ki):
    co = p["w"].shape[-1]
    cp = _round_up(co, 128)
    w = jnp.zeros((3, 3, Ki, cp), jnp.float32).at[:, :, :cin_valid, :co].set(p["w"])
    s = jnp.ones((cp,), jnp.float32).at[:co].set(p["scale"])
    b = jnp.zeros((cp,), jnp.float32).at[:co].set(p["bias"])
    return _merge_w3x3(w).astype(jnp.bfloat16), s.reshape(1, cp), b.reshape(1, cp), co, cp


def _prep_pool1x1(p, Cin):
    co = p["w"].shape[-1]
    cp = _round_up(co, 128)
    w = jnp.zeros((Cin, cp), jnp.float32).at[:, :co].set(p["w"])
    s = jnp.ones((cp,), jnp.float32).at[:co].set(p["scale"])
    b = jnp.zeros((cp,), jnp.float32).at[:co].set(p["bias"])
    return w.astype(jnp.bfloat16), s.reshape(1, cp), b.reshape(1, cp), co, cp


# ------------------------------- forward ------------------------------------ #
def inception_a_forward(x_nchw, params):
    x = jnp.transpose(x_nchw, (0, 2, 3, 1)).astype(jnp.bfloat16)   # NCHW -> NHWC
    N, H, W, Cin = x.shape
    th = _pick_th(H, W)

    # fused 1x1 heads: branch0 | branch1.0 | branch2.0 (one read of x)
    wA, sA, bA, c0, c1, c2, cp0, cp12 = _prep_heads(params, Cin)
    x0, y12 = heads_1x1(x, wA, sA, bA, th, c0, cp0, cp12)
    # x0: (N,H,W,96) f32 final;  y12: (N,H,W,128) bf16 packed [y1|y2]

    # fused block-diagonal 3x3: branch1.1 and branch2.1 over packed [y1|y2]
    wB, sB, bB, cx1, ct, cpx1, cpt = _prep_pair3x3(
        params["b1_1"], params["b2_1"], c1, c2, cp12)
    x1, t = conv3x3_dual(y12, wB, sB, bB, th, cx1, cpx1)
    # x1: (N,H,W,96) f32 final;  t: (N,H,W,128) bf16 (96 valid, zero-padded)

    # branch2.2: 3x3 on t
    wC, sC, bC, cx2, _ = _prep_single3x3(params["b2_2"], ct, cpt)
    x2 = conv3x3_single(t, wC, sC, bC, th, cx2)

    # branch3: avgpool(3,1,1,count_include_pad=False) + 1x1
    wD, sD, bD, cx3, _ = _prep_pool1x1(params["b3"], Cin)
    x3 = pool_conv1x1(x, wD, sD, bD, th, cx3)

    # exact-width branch outputs -> single fused XLA concat + NCHW transpose
    out = jnp.concatenate([x0, x1, x2, x3], axis=-1)    # (N, H, W, 384) f32
    return jnp.transpose(out, (0, 3, 1, 2))             # NHWC -> NCHW


# --------------------------- parameter creation ----------------------------- #
def _make_bn(key, c, eps=0.001):
    k1, k2, k3, k4 = jax.random.split(key, 4)
    gamma = 1.0 + 0.1 * jax.random.normal(k1, (c,), jnp.float32)
    beta = 0.1 * jax.random.normal(k2, (c,), jnp.float32)
    mean = 0.1 * jax.random.normal(k3, (c,), jnp.float32)
    var = jax.random.uniform(k4, (c,), jnp.float32, 0.5, 1.5)
    scale = gamma / jnp.sqrt(var + eps)
    bias = beta - mean * scale
    return scale, bias


def _make_basic_conv(key, shape):
    kw, kb = jax.random.split(key)
    w = 0.05 * jax.random.normal(kw, shape, jnp.float32)  # (Cin,Cout) or (3,3,Cin,Cout)
    scale, bias = _make_bn(kb, shape[-1])
    return {"w": w, "scale": scale, "bias": bias}


def make_params(key, in_features, m=lambda c: c):
    keys = jax.random.split(key, 7)
    return {
        "b0":   _make_basic_conv(keys[0], (in_features, m(96))),
        "b1_0": _make_basic_conv(keys[1], (in_features, m(64))),
        "b1_1": _make_basic_conv(keys[2], (3, 3, m(64), m(96))),
        "b2_0": _make_basic_conv(keys[3], (in_features, m(64))),
        "b2_1": _make_basic_conv(keys[4], (3, 3, m(64), m(96))),
        "b2_2": _make_basic_conv(keys[5], (3, 3, m(96), m(96))),
        "b3":   _make_basic_conv(keys[6], (in_features, m(96))),
    }


# --------------------- pure-JAX reference (same precision) ------------------ #
def _ref_forward(x_nchw, params):
    x = jnp.transpose(x_nchw, (0, 2, 3, 1)).astype(jnp.bfloat16)

    def conv(xb, w_hwio, pad):
        return jax.lax.conv_general_dilated(
            xb, w_hwio.astype(jnp.bfloat16), (1, 1), [(pad, pad), (pad, pad)],
            dimension_numbers=("NHWC", "HWIO", "NHWC"),
            preferred_element_type=jnp.float32)

    def bcv(xb, p, k):
        w = p["w"] if k == 3 else p["w"].reshape(1, 1, *p["w"].shape)
        y = conv(xb, w, 1 if k == 3 else 0)                   # f32
        return jnp.maximum(y * p["scale"] + p["bias"], 0.0)   # f32

    def avgpool_bf16(xb):
        N, H, W, C = xb.shape
        s = jax.lax.reduce_window(xb.astype(jnp.float32), 0.0, jax.lax.add,
                                  (1, 3, 3, 1), (1, 1, 1, 1),
                                  [(0, 0), (1, 1), (1, 1), (0, 0)])
        inv = (1.0 / _pool_count(H, W))[None, :, :, None]
        return (s * inv).astype(jnp.bfloat16)

    x0 = bcv(x, params["b0"], 1)
    x1 = bcv(bcv(x, params["b1_0"], 1).astype(jnp.bfloat16), params["b1_1"], 3)
    t = bcv(bcv(x, params["b2_0"], 1).astype(jnp.bfloat16), params["b2_1"], 3)
    x2 = bcv(t.astype(jnp.bfloat16), params["b2_2"], 3)
    x3 = bcv(avgpool_bf16(x), params["b3"], 1)
    return jnp.transpose(jnp.concatenate([x0, x1, x2, x3], -1), (0, 3, 1, 2))


# ---------------------------------- main ------------------------------------ #
if __name__ == "__main__":
    key = jax.random.PRNGKey(0)
    kx, kp = jax.random.split(key)

    N, Cin, H, W = 2, 32, 16, 16                 # small NCHW input
    x = jax.random.normal(kx, (N, Cin, H, W), jnp.float32)
    params = make_params(kp, Cin)

    out = jax.block_until_ready(jax.jit(inception_a_forward)(x, params))
    assert out.shape == (N, 96 * 4, H, W), out.shape

    ref = jax.block_until_ready(_ref_forward(x, params))
    max_err = float(jnp.max(jnp.abs(out - ref)))
    assert jnp.allclose(out, ref, rtol=2e-3, atol=2e-3), max_err

    print("KERNEL_OK")
</pallas_src>

<mosaic_0001>
module attributes {stable_mosaic.version = 11 : i64} {
  func.func @_heads1x1_kernel(%arg0: i32, %arg1: i32, %arg2: memref<1x8x16x32xbf16, #tpu.memory_space<vmem>>, %arg3: memref<32x256xbf16, #tpu.memory_space<vmem>>, %arg4: memref<1x256xf32, #tpu.memory_space<vmem>>, %arg5: memref<1x256xf32, #tpu.memory_space<vmem>>, %arg6: memref<1x8x16x96xf32, #tpu.memory_space<vmem>>, %arg7: memref<1x8x16x128xbf16, #tpu.memory_space<vmem>>) attributes {dimension_semantics = [#tpu.dimension_semantics<parallel>, #tpu.dimension_semantics<parallel>], iteration_bounds = array<i64: 2, 2>, scalar_prefetch = 0 : i64, scratch_operands = 0 : i64, tpu.core_type = #tpu.core_type<tc>, window_params = [{transform_indices = @transform_0, window_bounds = array<i64: 1, 8, 16, 32>}, {pipeline_mode = #tpu.pipeline_mode<synchronous>, transform_indices = @transform_1, window_bounds = array<i64: 32, 256>}, {pipeline_mode = #tpu.pipeline_mode<synchronous>, transform_indices = @transform_2, window_bounds = array<i64: 1, 256>}, {pipeline_mode = #tpu.pipeline_mode<synchronous>, transform_indices = @transform_3, window_bounds = array<i64: 1, 256>}, {transform_indices = @transform_4, window_bounds = array<i64: 1, 8, 16, 96>}, {transform_indices = @transform_5, window_bounds = array<i64: 1, 8, 16, 128>}]} {
    %c0 = arith.constant 0 : index
    %c0_0 = arith.constant 0 : index
    %c0_1 = arith.constant 0 : index
    %c0_2 = arith.constant 0 : index
    %0 = vector.load %arg2[%c0, %c0_0, %c0_1, %c0_2] : memref<1x8x16x32xbf16, #tpu.memory_space<vmem>>, vector<1x8x16x32xbf16>
    %1 = vector.shape_cast %0 : vector<1x8x16x32xbf16> to vector<8x16x32xbf16>
    %2 = vector.shape_cast %1 : vector<8x16x32xbf16> to vector<128x32xbf16>
    %c0_3 = arith.constant 0 : index
    %c0_4 = arith.constant 0 : index
    %3 = vector.load %arg3[%c0_3, %c0_4] : memref<32x256xbf16, #tpu.memory_space<vmem>>, vector<32x256xbf16>
    %cst = arith.constant dense<0.000000e+00> : vector<128x256xf32>
    %4 = tpu.matmul %2, %3, %cst {dimension_numbers = #tpu.dot_dimension_numbers<[1], [0], [0], [1], [0, 0, 1, 1], [], []>} : vector<128x32xbf16>, vector<32x256xbf16>, vector<128x256xf32> -> vector<128x256xf32>
    %c0_5 = arith.constant 0 : index
    %c0_6 = arith.constant 0 : index
    %5 = vector.load %arg4[%c0_5, %c0_6] : memref<1x256xf32, #tpu.memory_space<vmem>>, vector<1x256xf32>
    %6 = vector.broadcast %5 : vector<1x256xf32> to vector<128x256xf32>
    %7 = arith.mulf %4, %6 : vector<128x256xf32>
    %c0_7 = arith.constant 0 : index
    %c0_8 = arith.constant 0 : index
    %8 = vector.load %arg5[%c0_7, %c0_8] : memref<1x256xf32, #tpu.memory_space<vmem>>, vector<1x256xf32>
    %9 = vector.broadcast %8 : vector<1x256xf32> to vector<128x256xf32>
    %10 = arith.addf %7, %9 : vector<128x256xf32>
    %cst_9 = arith.constant 0.000000e+00 : f32
    %11 = vector.broadcast %cst_9 : f32 to vector<128x256xf32>
    %12 = arith.maximumf %10, %11 : vector<128x256xf32>
    %13 = vector.extract_strided_slice %12 {offsets = [0, 0], sizes = [128, 96], strides = [1, 1]} : vector<128x256xf32> to vector<128x96xf32>
    %14 = vector.shape_cast %13 : vector<128x96xf32> to vector<8x16x96xf32>
    %c0_10 = arith.constant 0 : index
    %c0_11 = arith.constant 0 : index
    %c0_12 = arith.constant 0 : index
    %c0_13 = arith.constant 0 : index
    %15 = vector.load %arg6[%c0_10, %c0_11, %c0_12, %c0_13] : memref<1x8x16x96xf32, #tpu.memory_space<vmem>>, vector<1x8x16x96xf32>
    %16 = vector.shape_cast %15 : vector<1x8x16x96xf32> to vector<8x16x96xf32>
    %17 = vector.shape_cast %14 : vector<8x16x96xf32> to vector<1x8x16x96xf32>
    tpu.vector_store %arg6[%c0_10, %c0_11, %c0_12, %c0_13], %17 {strides = array<i32>} : memref<1x8x16x96xf32, #tpu.memory_space<vmem>>, vector<1x8x16x96xf32>,
    %18 = vector.extract_strided_slice %12 {offsets = [0, 128], sizes = [128, 128], strides = [1, 1]} : vector<128x256xf32> to vector<128x128xf32>
    %19 = vector.shape_cast %18 : vector<128x128xf32> to vector<8x16x128xf32>
    %20 = arith.truncf %19 : vector<8x16x128xf32> to vector<8x16x128xbf16>
    %c0_14 = arith.constant 0 : index
    %c0_15 = arith.constant 0 : index
    %c0_16 = arith.constant 0 : index
    %c0_17 = arith.constant 0 : index
    %21 = vector.load %arg7[%c0_14, %c0_15, %c0_16, %c0_17] : memref<1x8x16x128xbf16, #tpu.memory_space<vmem>>, vector<1x8x16x128xbf16>
    %22 = vector.shape_cast %21 : vector<1x8x16x128xbf16> to vector<8x16x128xbf16>
    %23 = vector.shape_cast %20 : vector<8x16x128xbf16> to vector<1x8x16x128xbf16>
    tpu.vector_store %arg7[%c0_14, %c0_15, %c0_16, %c0_17], %23 {strides = array<i32>} : memref<1x8x16x128xbf16, #tpu.memory_space<vmem>>, vector<1x8x16x128xbf16>,
    return
  }
  func.func @transform_0(%arg0: i32, %arg1: i32) -> (i32, i32, i32, i32) {
    %c0_i32 = arith.constant 0 : i32
    %c0_i32_0 = arith.constant 0 : i32
    %c0_i32_1 = arith.constant 0 : i32
    return %arg0, %arg1, %c0_i32, %c0_i32_0 : i32, i32, i32, i32
  }
  func.func @transform_1(%arg0: i32, %arg1: i32) -> (i32, i32) {
    %c0_i32 = arith.constant 0 : i32
    %c0_i32_0 = arith.constant 0 : i32
    %c0_i32_1 = arith.constant 0 : i32
    return %c0_i32, %c0_i32_0 : i32, i32
  }
  func.func @transform_2(%arg0: i32, %arg1: i32) -> (i32, i32) {
    %c0_i32 = arith.constant 0 : i32
    %c0_i32_0 = arith.constant 0 : i32
    %c0_i32_1 = arith.constant 0 : i32
    return %c0_i32, %c0_i32_0 : i32, i32
  }
  func.func @transform_3(%arg0: i32, %arg1: i32) -> (i32, i32) {
    %c0_i32 = arith.constant 0 : i32
    %c0_i32_0 = arith.constant 0 : i32
    %c0_i32_1 = arith.constant 0 : i32
    return %c0_i32, %c0_i32_0 : i32, i32
  }
  func.func @transform_4(%arg0: i32, %arg1: i32) -> (i32, i32, i32, i32) {
    %c0_i32 = arith.constant 0 : i32
    %c0_i32_0 = arith.constant 0 : i32
    %c0_i32_1 = arith.constant 0 : i32
    return %arg0, %arg1, %c0_i32, %c0_i32_0 : i32, i32, i32, i32
  }
  func.func @transform_5(%arg0: i32, %arg1: i32) -> (i32, i32, i32, i32) {
    %c0_i32 = arith.constant 0 : i32
    %c0_i32_0 = arith.constant 0 : i32
    %c0_i32_1 = arith.constant 0 : i32
    return %arg0, %arg1, %c0_i32, %c0_i32_0 : i32, i32, i32, i32
  }
}

module attributes {stable_mosaic.version = 11 : i64} {
  func.func @_conv3x3_dual_kernel(%arg0: i32, %arg1: i32, %arg2: memref<1x18x18x128xbf16, #tpu.memory_space<vmem>>, %arg3: memref<3x384x256xbf16, #tpu.memory_space<vmem>>, %arg4: memref<1x256xf32, #tpu.memory_space<vmem>>, %arg5: memref<1x256xf32, #tpu.memory_space<vmem>>, %arg6: memref<1x8x16x96xf32, #tpu.memory_space<vmem>>, %arg7: memref<1x8x16x128xbf16, #tpu.memory_space<vmem>>) attributes {dimension_semantics = [#tpu.dimension_semantics<parallel>, #tpu.dimension_semantics<parallel>], iteration_bounds = array<i64: 2, 2>, scalar_prefetch = 0 : i64, scratch_operands = 0 : i64, tpu.core_type = #tpu.core_type<tc>, window_params = [{transform_indices = @transform_0, window_bounds = array<i64: 1, 18, 18, 128>}, {pipeline_mode = #tpu.pipeline_mode<synchronous>, transform_indices = @transform_1, window_bounds = array<i64: 3, 384, 256>}, {pipeline_mode = #tpu.pipeline_mode<synchronous>, transform_indices = @transform_2, window_bounds = array<i64: 1, 256>}, {pipeline_mode = #tpu.pipeline_mode<synchronous>, transform_indices = @transform_3, window_bounds = array<i64: 1, 256>}, {transform_indices = @transform_4, window_bounds = array<i64: 1, 8, 16, 96>}, {transform_indices = @transform_5, window_bounds = array<i64: 1, 8, 16, 128>}]} {
    %c8_i32 = arith.constant 8 : i32
    %0 = arith.muli %arg1, %c8_i32 : i32
    %c0 = arith.constant 0 : index
    %1 = arith.index_cast %0 : i32 to index
    %c0_0 = arith.constant 0 : index
    %c0_1 = arith.constant 0 : index
    %2 = vector.load %arg2[%c0, %1, %c0_0, %c0_1] : memref<1x18x18x128xbf16, #tpu.memory_space<vmem>>, vector<1x10x18x128xbf16>
    %3 = vector.shape_cast %2 : vector<1x10x18x128xbf16> to vector<10x18x128xbf16>
    %4 = vector.extract_strided_slice %3 {offsets = [0, 0, 0], sizes = [10, 16, 128], strides = [1, 1, 1]} : vector<10x18x128xbf16> to vector<10x16x128xbf16>
    %5 = vector.extract_strided_slice %4 {offsets = [0, 0, 0], sizes = [8, 16, 128], strides = [1, 1, 1]} : vector<10x16x128xbf16> to vector<8x16x128xbf16>
    %6 = vector.extract_strided_slice %4 {offsets = [1, 0, 0], sizes = [8, 16, 128], strides = [1, 1, 1]} : vector<10x16x128xbf16> to vector<8x16x128xbf16>
    %7 = vector.extract_strided_slice %4 {offsets = [2, 0, 0], sizes = [8, 16, 128], strides = [1, 1, 1]} : vector<10x16x128xbf16> to vector<8x16x128xbf16>
    %8 = tpu.concatenate %5, %6, %7 in 2 : vector<8x16x128xbf16>, vector<8x16x128xbf16>, vector<8x16x128xbf16> -> vector<8x16x384xbf16>
    %9 = vector.shape_cast %8 : vector<8x16x384xbf16> to vector<128x384xbf16>
    %c0_2 = arith.constant 0 : index
    %c0_3 = arith.constant 0 : index
    %c0_4 = arith.constant 0 : index
    %10 = vector.load %arg3[%c0_2, %c0_3, %c0_4] : memref<3x384x256xbf16, #tpu.memory_space<vmem>>, vector<1x384x256xbf16>
    %11 = vector.shape_cast %10 : vector<1x384x256xbf16> to vector<384x256xbf16>
    %cst = arith.constant dense<0.000000e+00> : vector<128x256xf32>
    %12 = tpu.matmul %9, %11, %cst {dimension_numbers = #tpu.dot_dimension_numbers<[1], [0], [0], [1], [0, 0, 1, 1], [], []>} : vector<128x384xbf16>, vector<384x256xbf16>, vector<128x256xf32> -> vector<128x256xf32>
    %13 = vector.extract_strided_slice %3 {offsets = [0, 1, 0], sizes = [10, 16, 128], strides = [1, 1, 1]} : vector<10x18x128xbf16> to vector<10x16x128xbf16>
    %14 = vector.extract_strided_slice %13 {offsets = [0, 0, 0], sizes = [8, 16, 128], strides = [1, 1, 1]} : vector<10x16x128xbf16> to vector<8x16x128xbf16>
    %15 = vector.extract_strided_slice %13 {offsets = [1, 0, 0], sizes = [8, 16, 128], strides = [1, 1, 1]} : vector<10x16x128xbf16> to vector<8x16x128xbf16>
    %16 = vector.extract_strided_slice %13 {offsets = [2, 0, 0], sizes = [8, 16, 128], strides = [1, 1, 1]} : vector<10x16x128xbf16> to vector<8x16x128xbf16>
    %17 = tpu.concatenate %14, %15, %16 in 2 : vector<8x16x128xbf16>, vector<8x16x128xbf16>, vector<8x16x128xbf16> -> vector<8x16x384xbf16>
    %18 = vector.shape_cast %17 : vector<8x16x384xbf16> to vector<128x384xbf16>
    %c1 = arith.constant 1 : index
    %c0_5 = arith.constant 0 : index
    %c0_6 = arith.constant 0 : index
    %19 = vector.load %arg3[%c1, %c0_5, %c0_6] : memref<3x384x256xbf16, #tpu.memory_space<vmem>>, vector<1x384x256xbf16>
    %20 = vector.shape_cast %19 : vector<1x384x256xbf16> to vector<384x256xbf16>
    %cst_7 = arith.constant dense<0.000000e+00> : vector<128x256xf32>
    %21 = tpu.matmul %18, %20, %cst_7 {dimension_numbers = #tpu.dot_dimension_numbers<[1], [0], [0], [1], [0, 0, 1, 1], [], []>} : vector<128x384xbf16>, vector<384x256xbf16>, vector<128x256xf32> -> vector<128x256xf32>
    %22 = arith.addf %12, %21 : vector<128x256xf32>
    %23 = vector.extract_strided_slice %3 {offsets = [0, 2, 0], sizes = [10, 16, 128], strides = [1, 1, 1]} : vector<10x18x128xbf16> to vector<10x16x128xbf16>
    %24 = vector.extract_strided_slice %23 {offsets = [0, 0, 0], sizes = [8, 16, 128], strides = [1, 1, 1]} : vector<10x16x128xbf16> to vector<8x16x128xbf16>
    %25 = vector.extract_strided_slice %23 {offsets = [1, 0, 0], sizes = [8, 16, 128], strides = [1, 1, 1]} : vector<10x16x128xbf16> to vector<8x16x128xbf16>
    %26 = vector.extract_strided_slice %23 {offsets = [2, 0, 0], sizes = [8, 16, 128], strides = [1, 1, 1]} : vector<10x16x128xbf16> to vector<8x16x128xbf16>
    %27 = tpu.concatenate %24, %25, %26 in 2 : vector<8x16x128xbf16>, vector<8x16x128xbf16>, vector<8x16x128xbf16> -> vector<8x16x384xbf16>
    %28 = vector.shape_cast %27 : vector<8x16x384xbf16> to vector<128x384xbf16>
    %c2 = arith.constant 2 : index
    %c0_8 = arith.constant 0 : index
    %c0_9 = arith.constant 0 : index
    %29 = vector.load %arg3[%c2, %c0_8, %c0_9] : memref<3x384x256xbf16, #tpu.memory_space<vmem>>, vector<1x384x256xbf16>
    %30 = vector.shape_cast %29 : vector<1x384x256xbf16> to vector<384x256xbf16>
    %cst_10 = arith.constant dense<0.000000e+00> : vector<128x256xf32>
    %31 = tpu.matmul %28, %30, %cst_10 {dimension_numbers = #tpu.dot_dimension_numbers<[1], [0], [0], [1], [0, 0, 1, 1], [], []>} : vector<128x384xbf16>, vector<384x256xbf16>, vector<128x256xf32> -> vector<128x256xf32>
    %32 = arith.addf %22, %31 : vector<128x256xf32>
    %c0_11 = arith.constant 0 : index
    %c0_12 = arith.constant 0 : index
    %33 = vector.load %arg4[%c0_11, %c0_12] : memref<1x256xf32, #tpu.memory_space<vmem>>, vector<1x256xf32>
    %34 = vector.broadcast %33 : vector<1x256xf32> to vector<128x256xf32>
    %35 = arith.mulf %32, %34 : vector<128x256xf32>
    %c0_13 = arith.constant 0 : index
    %c0_14 = arith.constant 0 : index
    %36 = vector.load %arg5[%c0_13, %c0_14] : memref<1x256xf32, #tpu.memory_space<vmem>>, vector<1x256xf32>
    %37 = vector.broadcast %36 : vector<1x256xf32> to vector<128x256xf32>
    %38 = arith.addf %35, %37 : vector<128x256xf32>
    %cst_15 = arith.constant 0.000000e+00 : f32
    %39 = vector.broadcast %cst_15 : f32 to vector<128x256xf32>
    %40 = arith.maximumf %38, %39 : vector<128x256xf32>
    %41 = vector.extract_strided_slice %40 {offsets = [0, 0], sizes = [128, 96], strides = [1, 1]} : vector<128x256xf32> to vector<128x96xf32>
    %42 = vector.shape_cast %41 : vector<128x96xf32> to vector<8x16x96xf32>
    %c0_16 = arith.constant 0 : index
    %c0_17 = arith.constant 0 : index
    %c0_18 = arith.constant 0 : index
    %c0_19 = arith.constant 0 : index
    %43 = vector.load %arg6[%c0_16, %c0_17, %c0_18, %c0_19] : memref<1x8x16x96xf32, #tpu.memory_space<vmem>>, vector<1x8x16x96xf32>
    %44 = vector.shape_cast %43 : vector<1x8x16x96xf32> to vector<8x16x96xf32>
    %45 = vector.shape_cast %42 : vector<8x16x96xf32> to vector<1x8x16x96xf32>
    tpu.vector_store %arg6[%c0_16, %c0_17, %c0_18, %c0_19], %45 {strides = array<i32>} : memref<1x8x16x96xf32, #tpu.memory_space<vmem>>, vector<1x8x16x96xf32>,
    %46 = vector.extract_strided_slice %40 {offsets = [0, 128], sizes = [128, 128], strides = [1, 1]} : vector<128x256xf32> to vector<128x128xf32>
    %47 = vector.shape_cast %46 : vector<128x128xf32> to vector<8x16x128xf32>
    %48 = arith.truncf %47 : vector<8x16x128xf32> to vector<8x16x128xbf16>
    %c0_20 = arith.constant 0 : index
    %c0_21 = arith.constant 0 : index
    %c0_22 = arith.constant 0 : index
    %c0_23 = arith.constant 0 : index
    %49 = vector.load %arg7[%c0_20, %c0_21, %c0_22, %c0_23] : memref<1x8x16x128xbf16, #tpu.memory_space<vmem>>, vector<1x8x16x128xbf16>
    %50 = vector.shape_cast %49 : vector<1x8x16x128xbf16> to vector<8x16x128xbf16>
    %51 = vector.shape_cast %48 : vector<8x16x128xbf16> to vector<1x8x16x128xbf16>
    tpu.vector_store %arg7[%c0_20, %c0_21, %c0_22, %c0_23], %51 {strides = array<i32>} : memref<1x8x16x128xbf16, #tpu.memory_space<vmem>>, vector<1x8x16x128xbf16>,
    return
  }
  func.func @transform_0(%arg0: i32, %arg1: i32) -> (i32, i32, i32, i32) {
    %c0_i32 = arith.constant 0 : i32
    %c0_i32_0 = arith.constant 0 : i32
    %c0_i32_1 = arith.constant 0 : i32
    %c0_i32_2 = arith.constant 0 : i32
    return %arg0, %c0_i32, %c0_i32_0, %c0_i32_1 : i32, i32, i32, i32
  }
  func.func @transform_1(%arg0: i32, %arg1: i32) -> (i32, i32, i32) {
    %c0_i32 = arith.constant 0 : i32
    %c0_i32_0 = arith.constant 0 : i32
    %c0_i32_1 = arith.constant 0 : i32
    %c0_i32_2 = arith.constant 0 : i32
    return %c0_i32, %c0_i32_0, %c0_i32_1 : i32, i32, i32
  }
  func.func @transform_2(%arg0: i32, %arg1: i32) -> (i32, i32) {
    %c0_i32 = arith.constant 0 : i32
    %c0_i32_0 = arith.constant 0 : i32
    %c0_i32_1 = arith.constant 0 : i32
    return %c0_i32, %c0_i32_0 : i32, i32
  }
  func.func @transform_3(%arg0: i32, %arg1: i32) -> (i32, i32) {
    %c0_i32 = arith.constant 0 : i32
    %c0_i32_0 = arith.constant 0 : i32
    %c0_i32_1 = arith.constant 0 : i32
    return %c0_i32, %c0_i32_0 : i32, i32
  }
  func.func @transform_4(%arg0: i32, %arg1: i32) -> (i32, i32, i32, i32) {
    %c0_i32 = arith.constant 0 : i32
    %c0_i32_0 = arith.constant 0 : i32
    %c0_i32_1 = arith.constant 0 : i32
    return %arg0, %arg1, %c0_i32, %c0_i32_0 : i32, i32, i32, i32
  }
  func.func @transform_5(%arg0: i32, %arg1: i32) -> (i32, i32, i32, i32) {
    %c0_i32 = arith.constant 0 : i32
    %c0_i32_0 = arith.constant 0 : i32
    %c0_i32_1 = arith.constant 0 : i32
    return %arg0, %arg1, %c0_i32, %c0_i32_0 : i32, i32, i32, i32
  }
}

module attributes {stable_mosaic.version = 11 : i64} {
  func.func @_conv3x3_kernel(%arg0: i32, %arg1: i32, %arg2: memref<1x18x18x128xbf16, #tpu.memory_space<vmem>>, %arg3: memref<3x384x128xbf16, #tpu.memory_space<vmem>>, %arg4: memref<1x128xf32, #tpu.memory_space<vmem>>, %arg5: memref<1x128xf32, #tpu.memory_space<vmem>>, %arg6: memref<1x8x16x96xf32, #tpu.memory_space<vmem>>) attributes {dimension_semantics = [#tpu.dimension_semantics<parallel>, #tpu.dimension_semantics<parallel>], iteration_bounds = array<i64: 2, 2>, scalar_prefetch = 0 : i64, scratch_operands = 0 : i64, tpu.core_type = #tpu.core_type<tc>, window_params = [{transform_indices = @transform_0, window_bounds = array<i64: 1, 18, 18, 128>}, {pipeline_mode = #tpu.pipeline_mode<synchronous>, transform_indices = @transform_1, window_bounds = array<i64: 3, 384, 128>}, {pipeline_mode = #tpu.pipeline_mode<synchronous>, transform_indices = @transform_2, window_bounds = array<i64: 1, 128>}, {pipeline_mode = #tpu.pipeline_mode<synchronous>, transform_indices = @transform_3, window_bounds = array<i64: 1, 128>}, {transform_indices = @transform_4, window_bounds = array<i64: 1, 8, 16, 96>}]} {
    %c8_i32 = arith.constant 8 : i32
    %0 = arith.muli %arg1, %c8_i32 : i32
    %c0 = arith.constant 0 : index
    %1 = arith.index_cast %0 : i32 to index
    %c0_0 = arith.constant 0 : index
    %c0_1 = arith.constant 0 : index
    %2 = vector.load %arg2[%c0, %1, %c0_0, %c0_1] : memref<1x18x18x128xbf16, #tpu.memory_space<vmem>>, vector<1x10x18x128xbf16>
    %3 = vector.shape_cast %2 : vector<1x10x18x128xbf16> to vector<10x18x128xbf16>
    %4 = vector.extract_strided_slice %3 {offsets = [0, 0, 0], sizes = [10, 16, 128], strides = [1, 1, 1]} : vector<10x18x128xbf16> to vector<10x16x128xbf16>
    %5 = vector.extract_strided_slice %4 {offsets = [0, 0, 0], sizes = [8, 16, 128], strides = [1, 1, 1]} : vector<10x16x128xbf16> to vector<8x16x128xbf16>
    %6 = vector.extract_strided_slice %4 {offsets = [1, 0, 0], sizes = [8, 16, 128], strides = [1, 1, 1]} : vector<10x16x128xbf16> to vector<8x16x128xbf16>
    %7 = vector.extract_strided_slice %4 {offsets = [2, 0, 0], sizes = [8, 16, 128], strides = [1, 1, 1]} : vector<10x16x128xbf16> to vector<8x16x128xbf16>
    %8 = tpu.concatenate %5, %6, %7 in 2 : vector<8x16x128xbf16>, vector<8x16x128xbf16>, vector<8x16x128xbf16> -> vector<8x16x384xbf16>
    %9 = vector.shape_cast %8 : vector<8x16x384xbf16> to vector<128x384xbf16>
    %c0_2 = arith.constant 0 : index
    %c0_3 = arith.constant 0 : index
    %c0_4 = arith.constant 0 : index
    %10 = vector.load %arg3[%c0_2, %c0_3, %c0_4] : memref<3x384x128xbf16, #tpu.memory_space<vmem>>, vector<1x384x128xbf16>
    %11 = vector.shape_cast %10 : vector<1x384x128xbf16> to vector<384x128xbf16>
    %cst = arith.constant dense<0.000000e+00> : vector<128x128xf32>
    %12 = tpu.matmul %9, %11, %cst {dimension_numbers = #tpu.dot_dimension_numbers<[1], [0], [0], [1], [0, 0, 1, 1], [], []>} : vector<128x384xbf16>, vector<384x128xbf16>, vector<128x128xf32> -> vector<128x128xf32>
    %13 = vector.extract_strided_slice %3 {offsets = [0, 1, 0], sizes = [10, 16, 128], strides = [1, 1, 1]} : vector<10x18x128xbf16> to vector<10x16x128xbf16>
    %14 = vector.extract_strided_slice %13 {offsets = [0, 0, 0], sizes = [8, 16, 128], strides = [1, 1, 1]} : vector<10x16x128xbf16> to vector<8x16x128xbf16>
    %15 = vector.extract_strided_slice %13 {offsets = [1, 0, 0], sizes = [8, 16, 128], strides = [1, 1, 1]} : vector<10x16x128xbf16> to vector<8x16x128xbf16>
    %16 = vector.extract_strided_slice %13 {offsets = [2, 0, 0], sizes = [8, 16, 128], strides = [1, 1, 1]} : vector<10x16x128xbf16> to vector<8x16x128xbf16>
    %17 = tpu.concatenate %14, %15, %16 in 2 : vector<8x16x128xbf16>, vector<8x16x128xbf16>, vector<8x16x128xbf16> -> vector<8x16x384xbf16>
    %18 = vector.shape_cast %17 : vector<8x16x384xbf16> to vector<128x384xbf16>
    %c1 = arith.constant 1 : index
    %c0_5 = arith.constant 0 : index
    %c0_6 = arith.constant 0 : index
    %19 = vector.load %arg3[%c1, %c0_5, %c0_6] : memref<3x384x128xbf16, #tpu.memory_space<vmem>>, vector<1x384x128xbf16>
    %20 = vector.shape_cast %19 : vector<1x384x128xbf16> to vector<384x128xbf16>
    %cst_7 = arith.constant dense<0.000000e+00> : vector<128x128xf32>
    %21 = tpu.matmul %18, %20, %cst_7 {dimension_numbers = #tpu.dot_dimension_numbers<[1], [0], [0], [1], [0, 0, 1, 1], [], []>} : vector<128x384xbf16>, vector<384x128xbf16>, vector<128x128xf32> -> vector<128x128xf32>
    %22 = arith.addf %12, %21 : vector<128x128xf32>
    %23 = vector.extract_strided_slice %3 {offsets = [0, 2, 0], sizes = [10, 16, 128], strides = [1, 1, 1]} : vector<10x18x128xbf16> to vector<10x16x128xbf16>
    %24 = vector.extract_strided_slice %23 {offsets = [0, 0, 0], sizes = [8, 16, 128], strides = [1, 1, 1]} : vector<10x16x128xbf16> to vector<8x16x128xbf16>
    %25 = vector.extract_strided_slice %23 {offsets = [1, 0, 0], sizes = [8, 16, 128], strides = [1, 1, 1]} : vector<10x16x128xbf16> to vector<8x16x128xbf16>
    %26 = vector.extract_strided_slice %23 {offsets = [2, 0, 0], sizes = [8, 16, 128], strides = [1, 1, 1]} : vector<10x16x128xbf16> to vector<8x16x128xbf16>
    %27 = tpu.concatenate %24, %25, %26 in 2 : vector<8x16x128xbf16>, vector<8x16x128xbf16>, vector<8x16x128xbf16> -> vector<8x16x384xbf16>
    %28 = vector.shape_cast %27 : vector<8x16x384xbf16> to vector<128x384xbf16>
    %c2 = arith.constant 2 : index
    %c0_8 = arith.constant 0 : index
    %c0_9 = arith.constant 0 : index
    %29 = vector.load %arg3[%c2, %c0_8, %c0_9] : memref<3x384x128xbf16, #tpu.memory_space<vmem>>, vector<1x384x128xbf16>
    %30 = vector.shape_cast %29 : vector<1x384x128xbf16> to vector<384x128xbf16>
    %cst_10 = arith.constant dense<0.000000e+00> : vector<128x128xf32>
    %31 = tpu.matmul %28, %30, %cst_10 {dimension_numbers = #tpu.dot_dimension_numbers<[1], [0], [0], [1], [0, 0, 1, 1], [], []>} : vector<128x384xbf16>, vector<384x128xbf16>, vector<128x128xf32> -> vector<128x128xf32>
    %32 = arith.addf %22, %31 : vector<128x128xf32>
    %c0_11 = arith.constant 0 : index
    %c0_12 = arith.constant 0 : index
    %33 = vector.load %arg4[%c0_11, %c0_12] : memref<1x128xf32, #tpu.memory_space<vmem>>, vector<1x128xf32>
    %34 = vector.broadcast %33 : vector<1x128xf32> to vector<128x128xf32>
    %35 = arith.mulf %32, %34 : vector<128x128xf32>
    %c0_13 = arith.constant 0 : index
    %c0_14 = arith.constant 0 : index
    %36 = vector.load %arg5[%c0_13, %c0_14] : memref<1x128xf32, #tpu.memory_space<vmem>>, vector<1x128xf32>
    %37 = vector.broadcast %36 : vector<1x128xf32> to vector<128x128xf32>
    %38 = arith.addf %35, %37 : vector<128x128xf32>
    %cst_15 = arith.constant 0.000000e+00 : f32
    %39 = vector.broadcast %cst_15 : f32 to vector<128x128xf32>
    %40 = arith.maximumf %38, %39 : vector<128x128xf32>
    %41 = vector.extract_strided_slice %40 {offsets = [0, 0], sizes = [128, 96], strides = [1, 1]} : vector<128x128xf32> to vector<128x96xf32>
    %42 = vector.shape_cast %41 : vector<128x96xf32> to vector<8x16x96xf32>
    %c0_16 = arith.constant 0 : index
    %c0_17 = arith.constant 0 : index
    %c0_18 = arith.constant 0 : index
    %c0_19 = arith.constant 0 : index
    %43 = vector.load %arg6[%c0_16, %c0_17, %c0_18, %c0_19] : memref<1x8x16x96xf32, #tpu.memory_space<vmem>>, vector<1x8x16x96xf32>
    %44 = vector.shape_cast %43 : vector<1x8x16x96xf32> to vector<8x16x96xf32>
    %45 = vector.shape_cast %42 : vector<8x16x96xf32> to vector<1x8x16x96xf32>
    tpu.vector_store %arg6[%c0_16, %c0_17, %c0_18, %c0_19], %45 {strides = array<i32>} : memref<1x8x16x96xf32, #tpu.memory_space<vmem>>, vector<1x8x16x96xf32>,
    return
  }
  func.func @transform_0(%arg0: i32, %arg1: i32) -> (i32, i32, i32, i32) {
    %c0_i32 = arith.constant 0 : i32
    %c0_i32_0 = arith.constant 0 : i32
    %c0_i32_1 = arith.constant 0 : i32
    %c0_i32_2 = arith.constant 0 : i32
    return %arg0, %c0_i32, %c0_i32_0, %c0_i32_1 : i32, i32, i32, i32
  }
  func.func @transform_1(%arg0: i32, %arg1: i32) -> (i32, i32, i32) {
    %c0_i32 = arith.constant 0 : i32
    %c0_i32_0 = arith.constant 0 : i32
    %c0_i32_1 = arith.constant 0 : i32
    %c0_i32_2 = arith.constant 0 : i32
    return %c0_i32, %c0_i32_0, %c0_i32_1 : i32, i32, i32
  }
  func.func @transform_2(%arg0: i32, %arg1: i32) -> (i32, i32) {
    %c0_i32 = arith.constant 0 : i32
    %c0_i32_0 = arith.constant 0 : i32
    %c0_i32_1 = arith.constant 0 : i32
    return %c0_i32, %c0_i32_0 : i32, i32
  }
  func.func @transform_3(%arg0: i32, %arg1: i32) -> (i32, i32) {
    %c0_i32 = arith.constant 0 : i32
    %c0_i32_0 = arith.constant 0 : i32
    %c0_i32_1 = arith.constant 0 : i32
    return %c0_i32, %c0_i32_0 : i32, i32
  }
  func.func @transform_4(%arg0: i32, %arg1: i32) -> (i32, i32, i32, i32) {
    %c0_i32 = arith.constant 0 : i32
    %c0_i32_0 = arith.constant 0 : i32
    %c0_i32_1 = arith.constant 0 : i32
    return %arg0, %arg1, %c0_i32, %c0_i32_0 : i32, i32, i32, i32
  }
}

module attributes {stable_mosaic.version = 11 : i64} {
  func.func @_pool_conv1x1_kernel(%arg0: i32, %arg1: i32, %arg2: memref<1x18x18x32xbf16, #tpu.memory_space<vmem>>, %arg3: memref<32x128xbf16, #tpu.memory_space<vmem>>, %arg4: memref<1x128xf32, #tpu.memory_space<vmem>>, %arg5: memref<1x128xf32, #tpu.memory_space<vmem>>, %arg6: memref<1x8x16x96xf32, #tpu.memory_space<vmem>>) attributes {dimension_semantics = [#tpu.dimension_semantics<parallel>, #tpu.dimension_semantics<parallel>], iteration_bounds = array<i64: 2, 2>, scalar_prefetch = 0 : i64, scratch_operands = 0 : i64, tpu.core_type = #tpu.core_type<tc>, window_params = [{transform_indices = @transform_0, window_bounds = array<i64: 1, 18, 18, 32>}, {pipeline_mode = #tpu.pipeline_mode<synchronous>, transform_indices = @transform_1, window_bounds = array<i64: 32, 128>}, {pipeline_mode = #tpu.pipeline_mode<synchronous>, transform_indices = @transform_2, window_bounds = array<i64: 1, 128>}, {pipeline_mode = #tpu.pipeline_mode<synchronous>, transform_indices = @transform_3, window_bounds = array<i64: 1, 128>}, {transform_indices = @transform_4, window_bounds = array<i64: 1, 8, 16, 96>}]} {
    %c8_i32 = arith.constant 8 : i32
    %0 = arith.muli %arg1, %c8_i32 : i32
    %c0 = arith.constant 0 : index
    %1 = arith.index_cast %0 : i32 to index
    %c0_0 = arith.constant 0 : index
    %c0_1 = arith.constant 0 : index
    %2 = vector.load %arg2[%c0, %1, %c0_0, %c0_1] : memref<1x18x18x32xbf16, #tpu.memory_space<vmem>>, vector<1x10x18x32xbf16>
    %3 = vector.shape_cast %2 : vector<1x10x18x32xbf16> to vector<10x18x32xbf16>
    %4 = arith.extf %3 : vector<10x18x32xbf16> to vector<10x18x32xf32>
    %5 = vector.extract_strided_slice %4 {offsets = [0, 0, 0], sizes = [10, 16, 32], strides = [1, 1, 1]} : vector<10x18x32xf32> to vector<10x16x32xf32>
    %6 = vector.extract_strided_slice %4 {offsets = [0, 1, 0], sizes = [10, 16, 32], strides = [1, 1, 1]} : vector<10x18x32xf32> to vector<10x16x32xf32>
    %7 = arith.addf %5, %6 : vector<10x16x32xf32>
    %8 = vector.extract_strided_slice %4 {offsets = [0, 2, 0], sizes = [10, 16, 32], strides = [1, 1, 1]} : vector<10x18x32xf32> to vector<10x16x32xf32>
    %9 = arith.addf %7, %8 : vector<10x16x32xf32>
    %10 = vector.extract_strided_slice %9 {offsets = [0, 0, 0], sizes = [8, 16, 32], strides = [1, 1, 1]} : vector<10x16x32xf32> to vector<8x16x32xf32>
    %11 = vector.extract_strided_slice %9 {offsets = [1, 0, 0], sizes = [8, 16, 32], strides = [1, 1, 1]} : vector<10x16x32xf32> to vector<8x16x32xf32>
    %12 = arith.addf %10, %11 : vector<8x16x32xf32>
    %13 = vector.extract_strided_slice %9 {offsets = [2, 0, 0], sizes = [8, 16, 32], strides = [1, 1, 1]} : vector<10x16x32xf32> to vector<8x16x32xf32>
    %14 = arith.addf %12, %13 : vector<8x16x32xf32>
    %15 = tpu.iota {dimensions = array<i32: 0>} : vector<8x16x32xi32>
    %16 = vector.broadcast %0 : i32 to vector<8x16x32xi32>
    %17 = arith.addi %16, %15 : vector<8x16x32xi32>
    %18 = tpu.iota {dimensions = array<i32: 1>} : vector<8x16x32xi32>
    %c1_i32 = arith.constant 1 : i32
    %19 = vector.broadcast %c1_i32 : i32 to vector<8x16x32xi32>
    %20 = arith.addi %17, %19 : vector<8x16x32xi32>
    %c15_i32 = arith.constant 15 : i32
    %21 = vector.broadcast %c15_i32 : i32 to vector<8x16x32xi32>
    %22 = arith.minsi %20, %21 : vector<8x16x32xi32>
    %c1_i32_2 = arith.constant 1 : i32
    %23 = vector.broadcast %c1_i32_2 : i32 to vector<8x16x32xi32>
    %24 = arith.subi %17, %23 : vector<8x16x32xi32>
    %c0_i32 = arith.constant 0 : i32
    %25 = vector.broadcast %c0_i32 : i32 to vector<8x16x32xi32>
    %26 = arith.maxsi %24, %25 : vector<8x16x32xi32>
    %27 = arith.subi %22, %26 : vector<8x16x32xi32>
    %c1_i32_3 = arith.constant 1 : i32
    %28 = vector.broadcast %c1_i32_3 : i32 to vector<8x16x32xi32>
    %29 = arith.addi %27, %28 : vector<8x16x32xi32>
    %c1_i32_4 = arith.constant 1 : i32
    %30 = vector.broadcast %c1_i32_4 : i32 to vector<8x16x32xi32>
    %31 = arith.addi %18, %30 : vector<8x16x32xi32>
    %c15_i32_5 = arith.constant 15 : i32
    %32 = vector.broadcast %c15_i32_5 : i32 to vector<8x16x32xi32>
    %33 = arith.minsi %31, %32 : vector<8x16x32xi32>
    %c1_i32_6 = arith.constant 1 : i32
    %34 = vector.broadcast %c1_i32_6 : i32 to vector<8x16x32xi32>
    %35 = arith.subi %18, %34 : vector<8x16x32xi32>
    %c0_i32_7 = arith.constant 0 : i32
    %36 = vector.broadcast %c0_i32_7 : i32 to vector<8x16x32xi32>
    %37 = arith.maxsi %35, %36 : vector<8x16x32xi32>
    %38 = arith.subi %33, %37 : vector<8x16x32xi32>
    %c1_i32_8 = arith.constant 1 : i32
    %39 = vector.broadcast %c1_i32_8 : i32 to vector<8x16x32xi32>
    %40 = arith.addi %38, %39 : vector<8x16x32xi32>
    %41 = arith.muli %29, %40 : vector<8x16x32xi32>
    %42 = arith.sitofp %41 : vector<8x16x32xi32> to vector<8x16x32xf32>
    %43 = tpu.reciprocal %42 {approx = true} : vector<8x16x32xf32> -> vector<8x16x32xf32>
    %44 = arith.mulf %14, %43 : vector<8x16x32xf32>
    %45 = arith.truncf %44 : vector<8x16x32xf32> to vector<8x16x32xbf16>
    %46 = vector.shape_cast %45 : vector<8x16x32xbf16> to vector<128x32xbf16>
    %c0_9 = arith.constant 0 : index
    %c0_10 = arith.constant 0 : index
    %47 = vector.load %arg3[%c0_9, %c0_10] : memref<32x128xbf16, #tpu.memory_space<vmem>>, vector<32x128xbf16>
    %cst = arith.constant dense<0.000000e+00> : vector<128x128xf32>
    %48 = tpu.matmul %46, %47, %cst {dimension_numbers = #tpu.dot_dimension_numbers<[1], [0], [0], [1], [0, 0, 1, 1], [], []>} : vector<128x32xbf16>, vector<32x128xbf16>, vector<128x128xf32> -> vector<128x128xf32>
    %c0_11 = arith.constant 0 : index
    %c0_12 = arith.constant 0 : index
    %49 = vector.load %arg4[%c0_11, %c0_12] : memref<1x128xf32, #tpu.memory_space<vmem>>, vector<1x128xf32>
    %50 = vector.broadcast %49 : vector<1x128xf32> to vector<128x128xf32>
    %51 = arith.mulf %48, %50 : vector<128x128xf32>
    %c0_13 = arith.constant 0 : index
    %c0_14 = arith.constant 0 : index
    %52 = vector.load %arg5[%c0_13, %c0_14] : memref<1x128xf32, #tpu.memory_space<vmem>>, vector<1x128xf32>
    %53 = vector.broadcast %52 : vector<1x128xf32> to vector<128x128xf32>
    %54 = arith.addf %51, %53 : vector<128x128xf32>
    %cst_15 = arith.constant 0.000000e+00 : f32
    %55 = vector.broadcast %cst_15 : f32 to vector<128x128xf32>
    %56 = arith.maximumf %54, %55 : vector<128x128xf32>
    %57 = vector.extract_strided_slice %56 {offsets = [0, 0], sizes = [128, 96], strides = [1, 1]} : vector<128x128xf32> to vector<128x96xf32>
    %58 = vector.shape_cast %57 : vector<128x96xf32> to vector<8x16x96xf32>
    %c0_16 = arith.constant 0 : index
    %c0_17 = arith.constant 0 : index
    %c0_18 = arith.constant 0 : index
    %c0_19 = arith.constant 0 : index
    %59 = vector.load %arg6[%c0_16, %c0_17, %c0_18, %c0_19] : memref<1x8x16x96xf32, #tpu.memory_space<vmem>>, vector<1x8x16x96xf32>
    %60 = vector.shape_cast %59 : vector<1x8x16x96xf32> to vector<8x16x96xf32>
    %61 = vector.shape_cast %58 : vector<8x16x96xf32> to vector<1x8x16x96xf32>
    tpu.vector_store %arg6[%c0_16, %c0_17, %c0_18, %c0_19], %61 {strides = array<i32>} : memref<1x8x16x96xf32, #tpu.memory_space<vmem>>, vector<1x8x16x96xf32>,
    return
  }
  func.func @transform_0(%arg0: i32, %arg1: i32) -> (i32, i32, i32, i32) {
    %c0_i32 = arith.constant 0 : i32
    %c0_i32_0 = arith.constant 0 : i32
    %c0_i32_1 = arith.constant 0 : i32
    %c0_i32_2 = arith.constant 0 : i32
    return %arg0, %c0_i32, %c0_i32_0, %c0_i32_1 : i32, i32, i32, i32
  }
  func.func @transform_1(%arg0: i32, %arg1: i32) -> (i32, i32) {
    %c0_i32 = arith.constant 0 : i32
    %c0_i32_0 = arith.constant 0 : i32
    %c0_i32_1 = arith.constant 0 : i32
    return %c0_i32, %c0_i32_0 : i32, i32
  }
  func.func @transform_2(%arg0: i32, %arg1: i32) -> (i32, i32) {
    %c0_i32 = arith.constant 0 : i32
    %c0_i32_0 = arith.constant 0 : i32
    %c0_i32_1 = arith.constant 0 : i32
    return %c0_i32, %c0_i32_0 : i32, i32
  }
  func.func @transform_3(%arg0: i32, %arg1: i32) -> (i32, i32) {
    %c0_i32 = arith.constant 0 : i32
    %c0_i32_0 = arith.constant 0 : i32
    %c0_i32_1 = arith.constant 0 : i32
    return %c0_i32, %c0_i32_0 : i32, i32
  }
  func.func @transform_4(%arg0: i32, %arg1: i32) -> (i32, i32, i32, i32) {
    %c0_i32 = arith.constant 0 : i32
    %c0_i32_0 = arith.constant 0 : i32
    %c0_i32_1 = arith.constant 0 : i32
    return %arg0, %arg1, %c0_i32, %c0_i32_0 : i32, i32, i32, i32
  }
}

</mosaic_0001>

<llo_original>
// kernel: inception_a_forward.4
$region0: #{inception_a_forward.4}
  #allocation0 [shape = 'u32[]', space=smem, size = 0x4, offset = 0x4, fixed_abs, tag = 'smem constant byte address 0x4 - core index']
  #allocation1 [shape = 'u32[144,128]{1,0:T(1,128)}', space=vmem, size = 0x12000, scoped, tag = 'internal scratch']
  %s0 = inlined_call_operand.vmem [shape: bf16[2,16,16,32], index: 0, kind: input, shape index: {}]
  %s1 = inlined_call_operand.vmem [shape: bf16[32,256], index: 1, kind: input, shape index: {}]
  %s2 = inlined_call_operand.vmem [shape: f32[1,256], index: 2, kind: input, shape index: {}]
  %s3 = inlined_call_operand.vmem [shape: f32[1,256], index: 3, kind: input, shape index: {}]
  %s4 = inlined_call_operand.vmem [shape: f32[2,16,16,96], index: 4, kind: output, shape index: {0}]
  %s5 = inlined_call_operand.vmem [shape: bf16[2,16,16,128], index: 5, kind: output, shape index: {1}]
  %6 = xla_tuple %s4, %s5
  %s7 = sld [smem:[#allocation0]]
  $region57: #{inception_a_forward.4} parent=0
    _
  %s9 = ssub.s32 1, %s7
  %s10 = scalar_select 0, %s9, %s7
  loop: start=0, step=1, limit=6
  $region2: #{inception_a_forward.4} parent=0 // loop_pre_header
    _
  $region3: #{inception_a_forward.4} parent=0 // loop_header
    %s12 = sphi 0, %s16
    %p13 = scmp.ge.s32.totalorder %s12, 6
    %s19 = sphi 0, %s31
    %s20 = sphi 0, %s27
    %s21 = sphi 0, %s19
    %s22 = sphi 0, %s20
    %s23 = sphi 0, %s21
    %s24 = sphi 0, %s22
    %s36 = sphi 0, %s38
    %s39 = sphi 0, %s36
    %s40 = sphi 0, %s39
    %s56 = sphi 0, %s40
    %s60 = sphi 0, %s60
    %s62 = sphi 0, %s60
    %s63 = sphi 0, %s62
    %s77 = sphi 0, %s63
    %s81 = sphi 0, %s81
    %s83 = sphi 0, %s81
    %s84 = sphi 0, %s83
    %s98 = sphi 0, %s84
    %s102 = sphi 0, %s102
    %s104 = sphi 0, %s102
    %s105 = sphi 0, %s104
    %s119 = sphi 0, %s105
    %s127 = sphi 0, %s129
    %s130 = sphi 0, %s127
    %s131 = sphi 0, %s130
    %s147 = sphi 0, %s131
    %s155 = sphi 0, %s157
    %s158 = sphi 0, %s155
    %s159 = sphi 0, %s158
    %s175 = sphi 0, %s159
  $region4: #{inception_a_forward.4} parent=0 // loop_header_branch
    %15 = sbr.rel (%p13) target = $region8
  $region5: #{inception_a_forward.4} parent=0 // loop_body
    %s17 = ssub.s32 %s12, 1
    %s18 = ssub.s32 %s12, 2
    %s25 = sadd.s32 1, %s20
    %p26 = scmp.ge.s32.totalorder %s25, 2
    %s27 = scalar_select %p26, 0, %s25
    %s28 = sadd.s32 1, %s19
    %s29 = scalar_select %p26, %s28, %s19
    %p30 = scmp.ge.s32.totalorder %s29, 2
    %s31 = scalar_select %p30, 0, %s29
    %s32 = ssub.s32 %s19, %s31
    %s33 = ssub.s32 %s20, %s27
    %s34 = sor.u32 %s32, %s33
    %p35 = scmp.eq.s32.totalorder %s34, 0
    %s37 = sadd.s32 %s36, 1
    %s38 = scalar_select %p35, %s36, %s37
    %p41 = pneg %p35
    %p42 = scmp.eq.s32.totalorder %s12, 3
    %p43 = por %p41, %p42
    %p44 = scmp.ne.s32.totalorder %s36, %s39
    %p45 = scmp.eq.s32.totalorder %s12, 0
    %p46 = por %p44, %p45
    %p47 = scmp.ne.s32.totalorder %s36, %s39
    %p48 = scmp.eq.s32.totalorder %s17, 3
    %p49 = por %p47, %p48
    %p50 = scmp.ne.s32.totalorder %s39, %s40
    %p51 = scmp.eq.s32.totalorder %s17, 0
    %p52 = por %p50, %p51
    %p53 = scmp.ne.s32.totalorder %s39, %s40
    %p54 = scmp.eq.s32.totalorder %s18, 3
    %p55 = por %p53, %p54
    %p57 = scmp.ne.s32.totalorder %s40, %s56
    %p58 = scmp.eq.s32.totalorder %s18, 0
    %p59 = por %p57, %p58
    %s61 = sadd.s32 %s60, 1
    %p64 = scmp.eq.s32.totalorder %s12, 3
    %p65 = scmp.ne.s32.totalorder %s60, %s62
    %p66 = scmp.eq.s32.totalorder %s12, 0
    %p67 = por %p65, %p66
    %p68 = scmp.ne.s32.totalorder %s60, %s62
    %p69 = scmp.eq.s32.totalorder %s17, 3
    %p70 = por %p68, %p69
    %p71 = scmp.ne.s32.totalorder %s62, %s63
    %p72 = scmp.eq.s32.totalorder %s17, 0
    %p73 = por %p71, %p72
    %p74 = scmp.ne.s32.totalorder %s62, %s63
    %p75 = scmp.eq.s32.totalorder %s18, 3
    %p76 = por %p74, %p75
    %p78 = scmp.ne.s32.totalorder %s63, %s77
    %p79 = scmp.eq.s32.totalorder %s18, 0
    %p80 = por %p78, %p79
    %s82 = sadd.s32 %s81, 1
    %p85 = scmp.eq.s32.totalorder %s12, 3
    %p86 = scmp.ne.s32.totalorder %s81, %s83
    %p87 = scmp.eq.s32.totalorder %s12, 0
    %p88 = por %p86, %p87
    %p89 = scmp.ne.s32.totalorder %s81, %s83
    %p90 = scmp.eq.s32.totalorder %s17, 3
    %p91 = por %p89, %p90
    %p92 = scmp.ne.s32.totalorder %s83, %s84
    %p93 = scmp.eq.s32.totalorder %s17, 0
    %p94 = por %p92, %p93
    %p95 = scmp.ne.s32.totalorder %s83, %s84
    %p96 = scmp.eq.s32.totalorder %s18, 3
    %p97 = por %p95, %p96
    %p99 = scmp.ne.s32.totalorder %s84, %s98
    %p100 = scmp.eq.s32.totalorder %s18, 0
    %p101 = por %p99, %p100
    %s103 = sadd.s32 %s102, 1
    %p106 = scmp.eq.s32.totalorder %s12, 3
    %p107 = scmp.ne.s32.totalorder %s102, %s104
    %p108 = scmp.eq.s32.totalorder %s12, 0
    %p109 = por %p107, %p108
    %p110 = scmp.ne.s32.totalorder %s102, %s104
    %p111 = scmp.eq.s32.totalorder %s17, 3
    %p112 = por %p110, %p111
    %p113 = scmp.ne.s32.totalorder %s104, %s105
    %p114 = scmp.eq.s32.totalorder %s17, 0
    %p115 = por %p113, %p114
    %p116 = scmp.ne.s32.totalorder %s104, %s105
    %p117 = scmp.eq.s32.totalorder %s18, 3
    %p118 = por %p116, %p117
    %p120 = scmp.ne.s32.totalorder %s105, %s119
    %p121 = scmp.eq.s32.totalorder %s18, 0
    %p122 = por %p120, %p121
    %s123 = ssub.s32 %s19, %s31
    %s124 = ssub.s32 %s20, %s27
    %s125 = sor.u32 %s123, %s124
    %p126 = scmp.eq.s32.totalorder %s125, 0
    %s128 = sadd.s32 %s127, 1
    %s129 = scalar_select %p126, %s127, %s128
    %p132 = pneg %p126
    %p133 = scmp.eq.s32.totalorder %s12, 3
    %p134 = por %p132, %p133
    %p135 = scmp.ne.s32.totalorder %s127, %s130
    %p136 = scmp.eq.s32.totalorder %s12, 0
    %p137 = por %p135, %p136
    %p138 = scmp.ne.s32.totalorder %s127, %s130
    %p139 = scmp.eq.s32.totalorder %s17, 3
    %p140 = por %p138, %p139
    %p141 = scmp.ne.s32.totalorder %s130, %s131
    %p142 = scmp.eq.s32.totalorder %s17, 0
    %p143 = por %p141, %p142
    %p144 = scmp.ne.s32.totalorder %s130, %s131
    %p145 = scmp.eq.s32.totalorder %s18, 3
    %p146 = por %p144, %p145
    %p148 = scmp.ne.s32.totalorder %s131, %s147
    %p149 = scmp.eq.s32.totalorder %s18, 0
    %p150 = por %p148, %p149
    %s151 = ssub.s32 %s19, %s31
    %s152 = ssub.s32 %s20, %s27
    %s153 = sor.u32 %s151, %s152
    %p154 = scmp.eq.s32.totalorder %s153, 0
    %s156 = sadd.s32 %s155, 1
    %s157 = scalar_select %p154, %s155, %s156
    %p160 = pneg %p154
    %p161 = scmp.eq.s32.totalorder %s12, 3
    %p162 = por %p160, %p161
    %p163 = scmp.ne.s32.totalorder %s155, %s158
    %p164 = scmp.eq.s32.totalorder %s12, 0
    %p165 = por %p163, %p164
    %p166 = scmp.ne.s32.totalorder %s155, %s158
    %p167 = scmp.eq.s32.totalorder %s17, 3
    %p168 = por %p166, %p167
    %p169 = scmp.ne.s32.totalorder %s158, %s159
    %p170 = scmp.eq.s32.totalorder %s17, 0
    %p171 = por %p169, %p170
    %p172 = scmp.ne.s32.totalorder %s158, %s159
    %p173 = scmp.eq.s32.totalorder %s18, 3
    %p174 = por %p172, %p173
    %p176 = scmp.ne.s32.totalorder %s159, %s175
    %p177 = scmp.eq.s32.totalorder %s18, 0
    %p178 = por %p176, %p177
    %p179 = scmp.le.s32.totalorder 1, %s12
    %p180 = scmp.lt.s32.totalorder %s12, 5
    %p181 = pnand %p179, %p180
    %p182 = pneg %p181
    // Predicated region
    $region9: #{inception_a_forward.4} parent=5 // pred_check
      _
    $region10: #{inception_a_forward.4} parent=5 // pred_check_branch
      %184 = sbr.rel (%p181) target = $region12
    $region11: #{inception_a_forward.4} parent=5 // pred_region
      %s185 = ssub.s32 %s12, 1
      // Predicated region
      $region13: #{inception_a_forward.4} parent=11 // pred_check
        %p186 = pneg %p73
      $region14: #{inception_a_forward.4} parent=11 // pred_check_branch
        %188 = sbr.rel (%p186) target = $region16
      $region15: #{inception_a_forward.4} parent=11 // pred_region
        _
      $region16: #{inception_a_forward.4} parent=11 // pred_fallthru
        _
      // Predicated region
      $region17: #{inception_a_forward.4} parent=11 // pred_check
        %p189 = pneg %p94
      $region18: #{inception_a_forward.4} parent=11 // pred_check_branch
        %191 = sbr.rel (%p189) target = $region20
      $region19: #{inception_a_forward.4} parent=11 // pred_region
        _
      $region20: #{inception_a_forward.4} parent=11 // pred_fallthru
        _
      // Predicated region
      $region21: #{inception_a_forward.4} parent=11 // pred_check
        %p192 = pneg %p115
      $region22: #{inception_a_forward.4} parent=11 // pred_check_branch
        %194 = sbr.rel (%p192) target = $region24
      $region23: #{inception_a_forward.4} parent=11 // pred_region
        _
      $region24: #{inception_a_forward.4} parent=11 // pred_fallthru
        _
    $region12: #{inception_a_forward.4} parent=5 // pred_fallthru
      _
    %p195 = scmp.lt.s32.totalorder %s12, 4
    // Predicated region
    $region25: #{inception_a_forward.4} parent=5 // pred_check
      %p196 = pneg %p195
    $region26: #{inception_a_forward.4} parent=5 // pred_check_branch
      %198 = sbr.rel (%p196) target = $region28
    $region27: #{inception_a_forward.4} parent=5 // pred_region
      // Predicated region
      $region29: #{inception_a_forward.4} parent=27 // pred_check
        %p199 = pneg %p46
      $region30: #{inception_a_forward.4} parent=27 // pred_check_branch
        %201 = sbr.rel (%p199) target = $region32
      $region31: #{inception_a_forward.4} parent=27 // pred_region
        %s202 = smul.u32 8, %s20
        %p203 = scmp.lt.s32.totalorder %s19, 1
        %s204 = scalar_select %p203, %s19, 1
        %p205 = scmp.lt.s32.totalorder %s202, 15
        %s206 = scalar_select %p205, %s202, 15
        %s207 = smul.addr %s206, 2
        %s208 = smul.addr %s204, 32
        %s209 = sadd.s32 %s207, %s208
        %s210 = smul.addr %s209, 4
        %s211 = scalar_lea.vmem %s0, %s210
        %s212 = smul.u32 8, %s20
      $region32: #{inception_a_forward.4} parent=27 // pred_fallthru
        _
    $region28: #{inception_a_forward.4} parent=5 // pred_fallthru
      _
    %p213 = scmp.le.s32.totalorder 1, %s12
    %p214 = scmp.lt.s32.totalorder %s12, 5
    %p215 = pnand %p213, %p214
    %p216 = pneg %p215
    // Predicated region
    $region33: #{inception_a_forward.4} parent=5 // pred_check
      _
    $region34: #{inception_a_forward.4} parent=5 // pred_check_branch
      %218 = sbr.rel (%p215) target = $region36
    $region35: #{inception_a_forward.4} parent=5 // pred_region
      %s219 = ssub.s32 %s12, 1
      %s220 = smul.u32 8, %s22
      %p221 = scmp.lt.s32.totalorder %s21, 1
      %s222 = scalar_select %p221, %s21, 1
      %p223 = scmp.lt.s32.totalorder %s220, 15
      %s224 = scalar_select %p223, %s220, 15
      %s225 = smul.addr %s224, 2
      %s226 = smul.addr %s222, 32
      %s227 = sadd.s32 %s225, %s226
      %s228 = smul.addr %s227, 4
      %s229 = scalar_lea.vmem %s0, %s228
      %p230 = pneg %p52
      %p231 = pneg %p49
      %p232 = pneg %p73
      %p233 = pneg %p70
      %p234 = pneg %p94
      %p235 = pneg %p91
      %p236 = pneg %p115
      %p237 = pneg %p112
      %p238 = pneg %p143
      %p239 = pneg %p140
      %s240 = smul.u32 8, %s22
      %p241 = scmp.lt.s32.totalorder %s21, 1
      %s242 = scalar_select %p241, %s21, 1
      %p243 = scmp.lt.s32.totalorder %s240, 15
      %s244 = scalar_select %p243, %s240, 15
      %s245 = smul.addr %s244, 2
      %s246 = smul.addr %s242, 32
      %s247 = sadd.s32 %s245, %s246
      %s248 = smul.addr %s247, 8
      %s249 = scalar_lea.vmem %s4, %s248
      %p250 = pneg %p171
      %p251 = pneg %p168
      %s252 = smul.u32 8, %s22
      %p253 = scmp.lt.s32.totalorder %s21, 1
      %s254 = scalar_select %p253, %s21, 1
      %p255 = scmp.lt.s32.totalorder %s252, 15
      %s256 = scalar_select %p255, %s252, 15
      %s257 = smul.addr %s256, 2
      %s258 = smul.addr %s254, 32
      %s259 = sadd.s32 %s257, %s258
      %s260 = smul.addr %s259, 4
      %s261 = scalar_lea.vmem %s5, %s260
      %s262 = smul.u32 8, %s22
      %p263 = scmp.lt.s32.totalorder %s21, 1
      %s264 = scalar_select %p263, %s21, 1
      %p265 = scmp.lt.s32.totalorder %s262, 15
      %s266 = scalar_select %p265, %s262, 15
      %s267 = smul.addr %s266, 2
      %s268 = smul.addr %s264, 32
      %s269 = sadd.s32 %s267, %s268
      %s270 = smul.addr %s269, 4
      %s271 = scalar_lea.vmem %s0, %s270
      %s272 = smul.u32 8, %s22
      %s273 = smul.u32 8, %s22
      %p274 = scmp.lt.s32.totalorder %s21, 1
      %s275 = scalar_select %p274, %s21, 1
      %p276 = scmp.lt.s32.totalorder %s273, 15
      %s277 = scalar_select %p276, %s273, 15
      %s278 = smul.addr %s277, 2
      %s279 = smul.addr %s275, 32
      %s280 = sadd.s32 %s278, %s279
      %s281 = smul.addr %s280, 8
      %s282 = scalar_lea.vmem %s4, %s281
      %s283 = smul.u32 8, %s22
      %s284 = smul.u32 8, %s22
      %p285 = scmp.lt.s32.totalorder %s21, 1
      %s286 = scalar_select %p285, %s21, 1
      %p287 = scmp.lt.s32.totalorder %s284, 15
      %s288 = scalar_select %p287, %s284, 15
      %s289 = smul.addr %s288, 2
      %s290 = smul.addr %s286, 32
      %s291 = sadd.s32 %s289, %s290
      %s292 = smul.addr %s291, 4
      %s293 = scalar_lea.vmem %s5, %s292
      %s294 = smul.u32 8, %s22
      %v296 = vld [vmem:[%s271] sm:$0xf]
      %v297 = vld [vmem:[%s271 + $0x4] sm:$0xf]
      %v298 = vld [vmem:[%s271 + $0x8] sm:$0xf]
      %v299 = vld [vmem:[%s271 + $0xc] sm:$0xf]
      %v300 = vld [vmem:[%s271 + $0x10] sm:$0xf]
      %v301 = vld [vmem:[%s271 + $0x14] sm:$0xf]
      %v302 = vld [vmem:[%s271 + $0x18] sm:$0xf]
      %v303 = vld [vmem:[%s271 + $0x1c] sm:$0xf]
      %v304 = vld [vmem:[%s271 + $0x20] sm:$0xf]
      %v305 = vld [vmem:[%s271 + $0x24] sm:$0xf]
      %v306 = vld [vmem:[%s271 + $0x28] sm:$0xf]
      %v307 = vld [vmem:[%s271 + $0x2c] sm:$0xf]
      %v308 = vld [vmem:[%s271 + $0x30] sm:$0xf]
      %v309 = vld [vmem:[%s271 + $0x34] sm:$0xf]
      %v310 = vld [vmem:[%s271 + $0x38] sm:$0xf]
      %v311 = vld [vmem:[%s271 + $0x3c] sm:$0xf]
      %v312 = vld [vmem:[%s1] sm:$0xff]
      %v313 = vld [vmem:[%s1 + $0x8] sm:$0xff]
      %v314 = vld [vmem:[%s1 + $0x10] sm:$0xff]
      %v315 = vld [vmem:[%s1 + $0x18] sm:$0xff]
      %v332 = vunpack.c.l.b16 %v296
      %v333 = vunpack.c.l.b16 %v297
      %v334 = vunpack.c.l.b16 %v298
      %v335 = vunpack.c.l.b16 %v299
      %v336 = vunpack.c.l.b16 %v300
      %v337 = vunpack.c.l.b16 %v301
      %v338 = vunpack.c.l.b16 %v302
      %v339 = vunpack.c.l.b16 %v303
      %v340 = vunpack.c.l.b16 %v304
      %v341 = vunpack.c.l.b16 %v305
      %v342 = vunpack.c.l.b16 %v306
      %v343 = vunpack.c.l.b16 %v307
      %v344 = vunpack.c.l.b16 %v308
      %v345 = vunpack.c.l.b16 %v309
      %v346 = vunpack.c.l.b16 %v310
      %v347 = vunpack.c.l.b16 %v311
      %v348 = vpack.c.b16 %v333, %v332
      %v349 = vpack.c.b16 %v335, %v334
      %v350 = vpack.c.b16 %v337, %v336
      %v351 = vpack.c.b16 %v339, %v338
      %v352 = vpack.c.b16 %v341, %v340
      %v353 = vpack.c.b16 %v343, %v342
      %v354 = vpack.c.b16 %v345, %v344
      %v355 = vpack.c.b16 %v347, %v346
      %v360 = vunpack.c.l.b16 %v312
      %v361 = vunpack.c.h.b16 %v312
      %v362 = vunpack.c.l.b16 %v313
      %v363 = vunpack.c.h.b16 %v313
      %v364 = vunpack.c.l.b16 %v314
      %v365 = vunpack.c.h.b16 %v314
      %v366 = vunpack.c.l.b16 %v315
      %v367 = vunpack.c.h.b16 %v315
      %v368 = vpack.c.b16 %v362, %v360
      %v369 = vpack.c.b16 %v363, %v361
      %v370 = vpack.c.b16 %v366, %v364
      %v371 = vpack.c.b16 %v367, %v365
      %vm376 = vcmask 261120
      %v378 = vsel %vm376, %v348, 0
      %v381 = vsel %vm376, %v349, 0
      %v384 = vsel %vm376, %v350, 0
      %v387 = vsel %vm376, %v351, 0
      %v390 = vsel %vm376, %v352, 0
      %v393 = vsel %vm376, %v353, 0
      %v396 = vsel %vm376, %v354, 0
      %v399 = vsel %vm376, %v355, 0
      %401 = vmatprep.subr.bf16.mxu0 0
      %402 = vmatpush1.bf16.msra.mxu0 0
      %403 = vmatprep.subr.bf16.mxu0 0
      %404 = vmatpush1.bf16.msra.mxu0 0
      %405 = vmatprep.subr.bf16.mxu0 0
      %406 = vmatpush1.bf16.msra.mxu0 0
      %407 = vmatprep.subr.bf16.mxu0 0
      %408 = vmatpush1.bf16.msra.mxu0 0
      %409 = vmatprep.subr.bf16.mxu0 0
      %410 = vmatpush1.bf16.msra.mxu0 0
      %411 = vmatprep.subr.bf16.mxu0 0
      %412 = vmatpush1.bf16.msra.mxu0 0
      %413 = vmatprep.subr.bf16.mxu0 %v371
      %414 = vmatpush1.bf16.msra.mxu0 %v370
      %415 = vmatprep.subr.bf16.mxu0 %v369
      %416 = vmatpush1.bf16.msra.mxu0 %v368
      %417 = vmatprep.subr.bf16.mxu0 0
      %418 = vmatpush2.bf16.msra.mxu0 0
      %419 = vmatprep.subr.bf16.mxu0 0
      %420 = vmatpush2.bf16.msra.mxu0 0
      %421 = vmatprep.subr.bf16.mxu0 0
      %422 = vmatpush2.bf16.msra.mxu0 0
      %423 = vmatprep.subr.bf16.mxu0 0
      %424 = vmatpush2.bf16.msra.mxu0 0
      %425 = vmatprep.subr.bf16.mxu0 0
      %426 = vmatpush2.bf16.msra.mxu0 0
      %427 = vmatprep.subr.bf16.mxu0 0
      %428 = vmatpush2.bf16.msra.mxu0 0
      %429 = vmatprep.subr.bf16.mxu0 0
      %430 = vmatpush2.bf16.msra.mxu0 0
      %431 = vmatprep.subr.bf16.mxu0 0
      %432 = vmatpush2.bf16.msra.mxu0 0
      %433 = vmatprep.mubr.bf16.mxu0 0
      %434 = vmatmul.mubr.bf16.gmra.mxu0 %v378
      %v435 = vpop.f32.mrf.mxu0
      %v436 = vadd.f32 0.0, %v435
      %v437 = vpop.f32.mrf.mxu0
      %v438 = vadd.f32 0.0, %v437
      %v439 = vpop.f32.mrf.mxu0
      %v440 = vadd.f32 0.0, %v439
      %v441 = vpop.f32.mrf.mxu0
      %v442 = vadd.f32 0.0, %v441
      %443 = vmatprep.mubr.bf16.mxu0 0
      %444 = vmatmul.mubr.bf16.gmra.mxu0 %v381
      %v445 = vpop.f32.mrf.mxu0
      %v446 = vadd.f32 0.0, %v445
      %v447 = vpop.f32.mrf.mxu0
      %v448 = vadd.f32 0.0, %v447
      %v449 = vpop.f32.mrf.mxu0
      %v450 = vadd.f32 0.0, %v449
      %v451 = vpop.f32.mrf.mxu0
      %v452 = vadd.f32 0.0, %v451
      %453 = vmatprep.mubr.bf16.mxu0 0
      %454 = vmatmul.mubr.bf16.gmra.mxu0 %v384
      %v455 = vpop.f32.mrf.mxu0
      %v456 = vadd.f32 0.0, %v455
      %v457 = vpop.f32.mrf.mxu0
      %v458 = vadd.f32 0.0, %v457
      %v459 = vpop.f32.mrf.mxu0
      %v460 = vadd.f32 0.0, %v459
      %v461 = vpop.f32.mrf.mxu0
      %v462 = vadd.f32 0.0, %v461
      %463 = vmatprep.mubr.bf16.mxu0 0
      %464 = vmatmul.mubr.bf16.gmra.mxu0 %v387
      %v465 = vpop.f32.mrf.mxu0
      %v466 = vadd.f32 0.0, %v465
      %v467 = vpop.f32.mrf.mxu0
      %v468 = vadd.f32 0.0, %v467
      %v469 = vpop.f32.mrf.mxu0
      %v470 = vadd.f32 0.0, %v469
      %v471 = vpop.f32.mrf.mxu0
      %v472 = vadd.f32 0.0, %v471
      %473 = vmatprep.mubr.bf16.mxu0 0
      %474 = vmatmul.mubr.bf16.gmra.mxu0 %v390
      %v475 = vpop.f32.mrf.mxu0
      %v476 = vadd.f32 0.0, %v475
      %v477 = vpop.f32.mrf.mxu0
      %v478 = vadd.f32 0.0, %v477
      %v479 = vpop.f32.mrf.mxu0
      %v480 = vadd.f32 0.0, %v479
      %v481 = vpop.f32.mrf.mxu0
      %v482 = vadd.f32 0.0, %v481
      %483 = vmatprep.mubr.bf16.mxu0 0
      %484 = vmatmul.mubr.bf16.gmra.mxu0 %v393
      %v485 = vpop.f32.mrf.mxu0
      %v486 = vadd.f32 0.0, %v485
      %v487 = vpop.f32.mrf.mxu0
      %v488 = vadd.f32 0.0, %v487
      %v489 = vpop.f32.mrf.mxu0
      %v490 = vadd.f32 0.0, %v489
      %v491 = vpop.f32.mrf.mxu0
      %v492 = vadd.f32 0.0, %v491
      %493 = vmatprep.mubr.bf16.mxu0 0
      %494 = vmatmul.mubr.bf16.gmra.mxu0 %v396
      %v495 = vpop.f32.mrf.mxu0
      %v496 = vadd.f32 0.0, %v495
      %v497 = vpop.f32.mrf.mxu0
      %v498 = vadd.f32 0.0, %v497
      %v499 = vpop.f32.mrf.mxu0
      %v500 = vadd.f32 0.0, %v499
      %v501 = vpop.f32.mrf.mxu0
      %v502 = vadd.f32 0.0, %v501
      %503 = vmatprep.mubr.bf16.mxu0 0
      %504 = vmatmul.mubr.bf16.gmra.mxu0 %v399
      %v505 = vpop.f32.mrf.mxu0
      %v506 = vadd.f32 0.0, %v505
      %v507 = vpop.f32.mrf.mxu0
      %v508 = vadd.f32 0.0, %v507
      %v509 = vpop.f32.mrf.mxu0
      %v510 = vadd.f32 0.0, %v509
      %v511 = vpop.f32.mrf.mxu0
      %v512 = vadd.f32 0.0, %v511
      %513 = vdwg.mxu0
      %v514 = vld [vmem:[%s2] sm:$0x3]
      %v516 = vlaneseq
      %v517 = vshrl.u32 %v516, 7
      %v518 = vsub.s32 0, %v517
      %v519 = vrot.slane %v514, %v518
      %v520 = vlaneseq
      %v521 = vshrl.u32 %v520, 7
      %v522 = vsub.s32 1, %v521
      %v523 = vrot.slane %v514, %v522
      %v526 = vmul.f32 %v436, %v519
      %v527 = vmul.f32 %v438, %v523
      %v528 = vmul.f32 %v440, %v519
      %v529 = vmul.f32 %v442, %v523
      %v530 = vmul.f32 %v446, %v519
      %v531 = vmul.f32 %v448, %v523
      %v532 = vmul.f32 %v450, %v519
      %v533 = vmul.f32 %v452, %v523
      %v534 = vmul.f32 %v456, %v519
      %v535 = vmul.f32 %v458, %v523
      %v536 = vmul.f32 %v460, %v519
      %v537 = vmul.f32 %v462, %v523
      %v538 = vmul.f32 %v466, %v519
      %v539 = vmul.f32 %v468, %v523
      %v540 = vmul.f32 %v470, %v519
      %v541 = vmul.f32 %v472, %v523
      %v542 = vmul.f32 %v476, %v519
      %v543 = vmul.f32 %v478, %v523
      %v544 = vmul.f32 %v480, %v519
      %v545 = vmul.f32 %v482, %v523
      %v546 = vmul.f32 %v486, %v519
      %v547 = vmul.f32 %v488, %v523
      %v548 = vmul.f32 %v490, %v519
      %v549 = vmul.f32 %v492, %v523
      %v550 = vmul.f32 %v496, %v519
      %v551 = vmul.f32 %v498, %v523
      %v552 = vmul.f32 %v500, %v519
      %v553 = vmul.f32 %v502, %v523
      %v554 = vmul.f32 %v506, %v519
      %v555 = vmul.f32 %v508, %v523
      %v556 = vmul.f32 %v510, %v519
      %v557 = vmul.f32 %v512, %v523
      %v558 = vld [vmem:[%s3] sm:$0x3]
      %v560 = vlaneseq
      %v561 = vshrl.u32 %v560, 7
      %v562 = vsub.s32 0, %v561
      %v563 = vrot.slane %v558, %v562
      %v564 = vlaneseq
      %v565 = vshrl.u32 %v564, 7
      %v566 = vsub.s32 1, %v565
      %v567 = vrot.slane %v558, %v566
      %v570 = vadd.f32 %v526, %v563
      %v571 = vadd.f32 %v527, %v567
      %v572 = vadd.f32 %v528, %v563
      %v573 = vadd.f32 %v529, %v567
      %v574 = vadd.f32 %v530, %v563
      %v575 = vadd.f32 %v531, %v567
      %v576 = vadd.f32 %v532, %v563
      %v577 = vadd.f32 %v533, %v567
      %v578 = vadd.f32 %v534, %v563
      %v579 = vadd.f32 %v535, %v567
      %v580 = vadd.f32 %v536, %v563
      %v581 = vadd.f32 %v537, %v567
      %v582 = vadd.f32 %v538, %v563
      %v583 = vadd.f32 %v539, %v567
      %v584 = vadd.f32 %v540, %v563
      %v585 = vadd.f32 %v541, %v567
      %v586 = vadd.f32 %v542, %v563
      %v587 = vadd.f32 %v543, %v567
      %v588 = vadd.f32 %v544, %v563
      %v589 = vadd.f32 %v545, %v567
      %v590 = vadd.f32 %v546, %v563
      %v591 = vadd.f32 %v547, %v567
      %v592 = vadd.f32 %v548, %v563
      %v593 = vadd.f32 %v549, %v567
      %v594 = vadd.f32 %v550, %v563
      %v595 = vadd.f32 %v551, %v567
      %v596 = vadd.f32 %v552, %v563
      %v597 = vadd.f32 %v553, %v567
      %v598 = vadd.f32 %v554, %v563
      %v599 = vadd.f32 %v555, %v567
      %v600 = vadd.f32 %v556, %v563
      %v601 = vadd.f32 %v557, %v567
      %v602 = vmax.f32 %v570, 0.0
      %v603 = vmax.f32 %v571, 0.0
      %v604 = vmax.f32 %v572, 0.0
      %v605 = vmax.f32 %v573, 0.0
      %v606 = vmax.f32 %v574, 0.0
      %v607 = vmax.f32 %v575, 0.0
      %v608 = vmax.f32 %v576, 0.0
      %v609 = vmax.f32 %v577, 0.0
      %v610 = vmax.f32 %v578, 0.0
      %v611 = vmax.f32 %v579, 0.0
      %v612 = vmax.f32 %v580, 0.0
      %v613 = vmax.f32 %v581, 0.0
      %v614 = vmax.f32 %v582, 0.0
      %v615 = vmax.f32 %v583, 0.0
      %v616 = vmax.f32 %v584, 0.0
      %v617 = vmax.f32 %v585, 0.0
      %v618 = vmax.f32 %v586, 0.0
      %v619 = vmax.f32 %v587, 0.0
      %v620 = vmax.f32 %v588, 0.0
      %v621 = vmax.f32 %v589, 0.0
      %v622 = vmax.f32 %v590, 0.0
      %v623 = vmax.f32 %v591, 0.0
      %v624 = vmax.f32 %v592, 0.0
      %v625 = vmax.f32 %v593, 0.0
      %v626 = vmax.f32 %v594, 0.0
      %v627 = vmax.f32 %v595, 0.0
      %v628 = vmax.f32 %v596, 0.0
      %v629 = vmax.f32 %v597, 0.0
      %v630 = vmax.f32 %v598, 0.0
      %v631 = vmax.f32 %v599, 0.0
      %v632 = vmax.f32 %v600, 0.0
      %v633 = vmax.f32 %v601, 0.0
      %vm634 = vcmask 785408
      %635 = vst.msk [vmem:[%s282] sm:$0xff] %vm634, %v602
      %636 = vst.msk [vmem:[%s282 + $0x8] sm:$0xff] %vm634, %v604
      %637 = vst.msk [vmem:[%s282 + $0x10] sm:$0xff] %vm634, %v606
      %638 = vst.msk [vmem:[%s282 + $0x18] sm:$0xff] %vm634, %v608
      %639 = vst.msk [vmem:[%s282 + $0x20] sm:$0xff] %vm634, %v610
      %640 = vst.msk [vmem:[%s282 + $0x28] sm:$0xff] %vm634, %v612
      %641 = vst.msk [vmem:[%s282 + $0x30] sm:$0xff] %vm634, %v614
      %642 = vst.msk [vmem:[%s282 + $0x38] sm:$0xff] %vm634, %v616
      %643 = vst.msk [vmem:[%s282 + $0x40] sm:$0xff] %vm634, %v618
      %644 = vst.msk [vmem:[%s282 + $0x48] sm:$0xff] %vm634, %v620
      %645 = vst.msk [vmem:[%s282 + $0x50] sm:$0xff] %vm634, %v622
      %646 = vst.msk [vmem:[%s282 + $0x58] sm:$0xff] %vm634, %v624
      %647 = vst.msk [vmem:[%s282 + $0x60] sm:$0xff] %vm634, %v626
      %648 = vst.msk [vmem:[%s282 + $0x68] sm:$0xff] %vm634, %v628
      %649 = vst.msk [vmem:[%s282 + $0x70] sm:$0xff] %vm634, %v630
      %650 = vst.msk [vmem:[%s282 + $0x78] sm:$0xff] %vm634, %v632
      %v651 = vpack.c.bf16 %v605, %v603
      %v652 = vpack.c.bf16 %v609, %v607
      %v653 = vpack.c.bf16 %v613, %v611
      %v654 = vpack.c.bf16 %v617, %v615
      %v655 = vpack.c.bf16 %v621, %v619
      %v656 = vpack.c.bf16 %v625, %v623
      %v657 = vpack.c.bf16 %v629, %v627
      %v658 = vpack.c.bf16 %v633, %v631
      %v667 = vunpack.c.l.b16 %v651
      %v668 = vunpack.c.h.b16 %v651
      %v669 = vunpack.c.l.b16 %v652
      %v670 = vunpack.c.h.b16 %v652
      %v671 = vunpack.c.l.b16 %v653
      %v672 = vunpack.c.h.b16 %v653
      %v673 = vunpack.c.l.b16 %v654
      %v674 = vunpack.c.h.b16 %v654
      %v675 = vunpack.c.l.b16 %v655
      %v676 = vunpack.c.h.b16 %v655
      %v677 = vunpack.c.l.b16 %v656
      %v678 = vunpack.c.h.b16 %v656
      %v679 = vunpack.c.l.b16 %v657
      %v680 = vunpack.c.h.b16 %v657
      %v681 = vunpack.c.l.b16 %v658
      %v682 = vunpack.c.h.b16 %v658
      %v683 = vpack.c.b16 %v667, %v667
      %v684 = vpack.c.b16 %v668, %v668
      %v685 = vpack.c.b16 %v669, %v669
      %v686 = vpack.c.b16 %v670, %v670
      %v687 = vpack.c.b16 %v671, %v671
      %v688 = vpack.c.b16 %v672, %v672
      %v689 = vpack.c.b16 %v673, %v673
      %v690 = vpack.c.b16 %v674, %v674
      %v691 = vpack.c.b16 %v675, %v675
      %v692 = vpack.c.b16 %v676, %v676
      %v693 = vpack.c.b16 %v677, %v677
      %v694 = vpack.c.b16 %v678, %v678
      %v695 = vpack.c.b16 %v679, %v679
      %v696 = vpack.c.b16 %v680, %v680
      %v697 = vpack.c.b16 %v681, %v681
      %v698 = vpack.c.b16 %v682, %v682
      %715 = vst [vmem:[%s293] sm:$0xf] %v683
      %716 = vst [vmem:[%s293 + $0x4] sm:$0xf] %v684
      %717 = vst [vmem:[%s293 + $0x8] sm:$0xf] %v685
      %718 = vst [vmem:[%s293 + $0xc] sm:$0xf] %v686
      %719 = vst [vmem:[%s293 + $0x10] sm:$0xf] %v687
      %720 = vst [vmem:[%s293 + $0x14] sm:$0xf] %v688
      %721 = vst [vmem:[%s293 + $0x18] sm:$0xf] %v689
      %722 = vst [vmem:[%s293 + $0x1c] sm:$0xf] %v690
      %723 = vst [vmem:[%s293 + $0x20] sm:$0xf] %v691
      %724 = vst [vmem:[%s293 + $0x24] sm:$0xf] %v692
      %725 = vst [vmem:[%s293 + $0x28] sm:$0xf] %v693
      %726 = vst [vmem:[%s293 + $0x2c] sm:$0xf] %v694
      %727 = vst [vmem:[%s293 + $0x30] sm:$0xf] %v695
      %728 = vst [vmem:[%s293 + $0x34] sm:$0xf] %v696
      %729 = vst [vmem:[%s293 + $0x38] sm:$0xf] %v697
      %730 = vst [vmem:[%s293 + $0x3c] sm:$0xf] %v698
      %s731 = smul.u32 8, %s22
      %p732 = scmp.lt.s32.totalorder %s21, 1
      %s733 = scalar_select %p732, %s21, 1
      %p734 = scmp.lt.s32.totalorder %s731, 15
      %s735 = scalar_select %p734, %s731, 15
      %s736 = smul.addr %s735, 2
      %s737 = smul.addr %s733, 32
      %s738 = sadd.s32 %s736, %s737
      %s739 = smul.addr %s738, 8
      %s740 = scalar_lea.vmem %s4, %s739
      %s741 = smul.u32 8, %s22
      %p742 = scmp.lt.s32.totalorder %s21, 1
      %s743 = scalar_select %p742, %s21, 1
      %p744 = scmp.lt.s32.totalorder %s741, 15
      %s745 = scalar_select %p744, %s741, 15
      %s746 = smul.addr %s745, 2
      %s747 = smul.addr %s743, 32
      %s748 = sadd.s32 %s746, %s747
      %s749 = smul.addr %s748, 4
      %s750 = scalar_lea.vmem %s5, %s749
      // Predicated region
      $region37: #{inception_a_forward.4} parent=35 // pred_check
        %p751 = pneg %p140
      $region38: #{inception_a_forward.4} parent=35 // pred_check_branch
        %753 = sbr.rel (%p751) target = $region40
      $region39: #{inception_a_forward.4} parent=35 // pred_region
        %s754 = smul.u32 8, %s22
      $region40: #{inception_a_forward.4} parent=35 // pred_fallthru
        _
      // Predicated region
      $region41: #{inception_a_forward.4} parent=35 // pred_check
        %p755 = pneg %p168
      $region42: #{inception_a_forward.4} parent=35 // pred_check_branch
        %757 = sbr.rel (%p755) target = $region44
      $region43: #{inception_a_forward.4} parent=35 // pred_region
        %s758 = smul.u32 8, %s22
      $region44: #{inception_a_forward.4} parent=35 // pred_fallthru
        _
    $region36: #{inception_a_forward.4} parent=5 // pred_fallthru
      _
    %p759 = scmp.le.s32.totalorder 2, %s12
    // Predicated region
    $region45: #{inception_a_forward.4} parent=5 // pred_check
      %p760 = pneg %p759
    $region46: #{inception_a_forward.4} parent=5 // pred_check_branch
      %762 = sbr.rel (%p760) target = $region48
    $region47: #{inception_a_forward.4} parent=5 // pred_region
      %s763 = ssub.s32 %s12, 2
      // Predicated region
      $region49: #{inception_a_forward.4} parent=47 // pred_check
        %p764 = pneg %p146
      $region50: #{inception_a_forward.4} parent=47 // pred_check_branch
        %766 = sbr.rel (%p764) target = $region52
      $region51: #{inception_a_forward.4} parent=47 // pred_region
        %s767 = smul.u32 8, %s24
        %p768 = scmp.lt.s32.totalorder %s23, 1
        %s769 = scalar_select %p768, %s23, 1
        %p770 = scmp.lt.s32.totalorder %s767, 15
        %s771 = scalar_select %p770, %s767, 15
        %s772 = smul.addr %s771, 2
        %s773 = smul.addr %s769, 32
        %s774 = sadd.s32 %s772, %s773
        %s775 = smul.addr %s774, 8
        %s776 = scalar_lea.vmem %s4, %s775
      $region52: #{inception_a_forward.4} parent=47 // pred_fallthru
        _
      // Predicated region
      $region53: #{inception_a_forward.4} parent=47 // pred_check
        %p777 = pneg %p174
      $region54: #{inception_a_forward.4} parent=47 // pred_check_branch
        %779 = sbr.rel (%p777) target = $region56
      $region55: #{inception_a_forward.4} parent=47 // pred_region
        %s780 = smul.u32 8, %s24
        %p781 = scmp.lt.s32.totalorder %s23, 1
        %s782 = scalar_select %p781, %s23, 1
        %p783 = scmp.lt.s32.totalorder %s780, 15
        %s784 = scalar_select %p783, %s780, 15
        %s785 = smul.addr %s784, 2
        %s786 = smul.addr %s782, 32
        %s787 = sadd.s32 %s785, %s786
        %s788 = smul.addr %s787, 4
        %s789 = scalar_lea.vmem %s5, %s788
      $region56: #{inception_a_forward.4} parent=47 // pred_fallthru
        _
    $region48: #{inception_a_forward.4} parent=5 // pred_fallthru
      _
  $region6: #{inception_a_forward.4} parent=0 // loop_footer
    %s16 = sadd.s32 1, %s12
  $region7: #{inception_a_forward.4} parent=0 // loop_footer_branch
    %11 = sbr.rel target = $region3
  $region8: #{inception_a_forward.4} parent=0 // loop_exit
    _

// kernel: inception_a_forward.5
$region0: #{inception_a_forward.5}
  #allocation0 [shape = 'u32[]', space=smem, size = 0x4, offset = 0x4, fixed_abs, tag = 'smem constant byte address 0x4 - core index']
  #allocation1 [shape = 'u32[144,128]{1,0:T(1,128)}', space=vmem, size = 0x12000, scoped, tag = 'internal scratch']
  %s0 = inlined_call_operand.vmem [shape: bf16[2,18,18,128], index: 0, kind: input, shape index: {}]
  %s1 = inlined_call_operand.vmem [shape: bf16[3,384,256], index: 1, kind: input, shape index: {}]
  %s2 = inlined_call_operand.vmem [shape: f32[1,256], index: 2, kind: input, shape index: {}]
  %s3 = inlined_call_operand.vmem [shape: f32[1,256], index: 3, kind: input, shape index: {}]
  %s4 = inlined_call_operand.vmem [shape: f32[2,16,16,96], index: 4, kind: output, shape index: {0}]
  %s5 = inlined_call_operand.vmem [shape: bf16[2,16,16,128], index: 5, kind: output, shape index: {1}]
  %6 = xla_tuple %s4, %s5
  %s7 = sld [smem:[#allocation0]]
  $region57: #{inception_a_forward.5} parent=0
    _
  %s9 = ssub.s32 1, %s7
  %s10 = scalar_select 0, %s9, %s7
  loop: start=0, step=1, limit=6
  $region2: #{inception_a_forward.5} parent=0 // loop_pre_header
    _
  $region3: #{inception_a_forward.5} parent=0 // loop_header
    %s12 = sphi 0, %s16
    %p13 = scmp.ge.s32.totalorder %s12, 6
    %s19 = sphi 0, %s31
    %s20 = sphi 0, %s27
    %s21 = sphi 0, %s19
    %s22 = sphi 0, %s20
    %s23 = sphi 0, %s21
    %s24 = sphi 0, %s22
    %s34 = sphi 0, %s36
    %s37 = sphi 0, %s34
    %s38 = sphi 0, %s37
    %s54 = sphi 0, %s38
    %s58 = sphi 0, %s58
    %s60 = sphi 0, %s58
    %s61 = sphi 0, %s60
    %s75 = sphi 0, %s61
    %s79 = sphi 0, %s79
    %s81 = sphi 0, %s79
    %s82 = sphi 0, %s81
    %s96 = sphi 0, %s82
    %s100 = sphi 0, %s100
    %s102 = sphi 0, %s100
    %s103 = sphi 0, %s102
    %s117 = sphi 0, %s103
    %s125 = sphi 0, %s127
    %s128 = sphi 0, %s125
    %s129 = sphi 0, %s128
    %s145 = sphi 0, %s129
    %s153 = sphi 0, %s155
    %s156 = sphi 0, %s153
    %s157 = sphi 0, %s156
    %s173 = sphi 0, %s157
  $region4: #{inception_a_forward.5} parent=0 // loop_header_branch
    %15 = sbr.rel (%p13) target = $region8
  $region5: #{inception_a_forward.5} parent=0 // loop_body
    %s17 = ssub.s32 %s12, 1
    %s18 = ssub.s32 %s12, 2
    %s25 = sadd.s32 1, %s20
    %p26 = scmp.ge.s32.totalorder %s25, 2
    %s27 = scalar_select %p26, 0, %s25
    %s28 = sadd.s32 1, %s19
    %s29 = scalar_select %p26, %s28, %s19
    %p30 = scmp.ge.s32.totalorder %s29, 2
    %s31 = scalar_select %p30, 0, %s29
    %s32 = ssub.s32 %s19, %s31
    %p33 = scmp.eq.s32.totalorder %s32, 0
    %s35 = sadd.s32 %s34, 1
    %s36 = scalar_select %p33, %s34, %s35
    %p39 = pneg %p33
    %p40 = scmp.eq.s32.totalorder %s12, 3
    %p41 = por %p39, %p40
    %p42 = scmp.ne.s32.totalorder %s34, %s37
    %p43 = scmp.eq.s32.totalorder %s12, 0
    %p44 = por %p42, %p43
    %p45 = scmp.ne.s32.totalorder %s34, %s37
    %p46 = scmp.eq.s32.totalorder %s17, 3
    %p47 = por %p45, %p46
    %p48 = scmp.ne.s32.totalorder %s37, %s38
    %p49 = scmp.eq.s32.totalorder %s17, 0
    %p50 = por %p48, %p49
    %p51 = scmp.ne.s32.totalorder %s37, %s38
    %p52 = scmp.eq.s32.totalorder %s18, 3
    %p53 = por %p51, %p52
    %p55 = scmp.ne.s32.totalorder %s38, %s54
    %p56 = scmp.eq.s32.totalorder %s18, 0
    %p57 = por %p55, %p56
    %s59 = sadd.s32 %s58, 1
    %p62 = scmp.eq.s32.totalorder %s12, 3
    %p63 = scmp.ne.s32.totalorder %s58, %s60
    %p64 = scmp.eq.s32.totalorder %s12, 0
    %p65 = por %p63, %p64
    %p66 = scmp.ne.s32.totalorder %s58, %s60
    %p67 = scmp.eq.s32.totalorder %s17, 3
    %p68 = por %p66, %p67
    %p69 = scmp.ne.s32.totalorder %s60, %s61
    %p70 = scmp.eq.s32.totalorder %s17, 0
    %p71 = por %p69, %p70
    %p72 = scmp.ne.s32.totalorder %s60, %s61
    %p73 = scmp.eq.s32.totalorder %s18, 3
    %p74 = por %p72, %p73
    %p76 = scmp.ne.s32.totalorder %s61, %s75
    %p77 = scmp.eq.s32.totalorder %s18, 0
    %p78 = por %p76, %p77
    %s80 = sadd.s32 %s79, 1
    %p83 = scmp.eq.s32.totalorder %s12, 3
    %p84 = scmp.ne.s32.totalorder %s79, %s81
    %p85 = scmp.eq.s32.totalorder %s12, 0
    %p86 = por %p84, %p85
    %p87 = scmp.ne.s32.totalorder %s79, %s81
    %p88 = scmp.eq.s32.totalorder %s17, 3
    %p89 = por %p87, %p88
    %p90 = scmp.ne.s32.totalorder %s81, %s82
    %p91 = scmp.eq.s32.totalorder %s17, 0
    %p92 = por %p90, %p91
    %p93 = scmp.ne.s32.totalorder %s81, %s82
    %p94 = scmp.eq.s32.totalorder %s18, 3
    %p95 = por %p93, %p94
    %p97 = scmp.ne.s32.totalorder %s82, %s96
    %p98 = scmp.eq.s32.totalorder %s18, 0
    %p99 = por %p97, %p98
    %s101 = sadd.s32 %s100, 1
    %p104 = scmp.eq.s32.totalorder %s12, 3
    %p105 = scmp.ne.s32.totalorder %s100, %s102
    %p106 = scmp.eq.s32.totalorder %s12, 0
    %p107 = por %p105, %p106
    %p108 = scmp.ne.s32.totalorder %s100, %s102
    %p109 = scmp.eq.s32.totalorder %s17, 3
    %p110 = por %p108, %p109
    %p111 = scmp.ne.s32.totalorder %s102, %s103
    %p112 = scmp.eq.s32.totalorder %s17, 0
    %p113 = por %p111, %p112
    %p114 = scmp.ne.s32.totalorder %s102, %s103
    %p115 = scmp.eq.s32.totalorder %s18, 3
    %p116 = por %p114, %p115
    %p118 = scmp.ne.s32.totalorder %s103, %s117
    %p119 = scmp.eq.s32.totalorder %s18, 0
    %p120 = por %p118, %p119
    %s121 = ssub.s32 %s19, %s31
    %s122 = ssub.s32 %s20, %s27
    %s123 = sor.u32 %s121, %s122
    %p124 = scmp.eq.s32.totalorder %s123, 0
    %s126 = sadd.s32 %s125, 1
    %s127 = scalar_select %p124, %s125, %s126
    %p130 = pneg %p124
    %p131 = scmp.eq.s32.totalorder %s12, 3
    %p132 = por %p130, %p131
    %p133 = scmp.ne.s32.totalorder %s125, %s128
    %p134 = scmp.eq.s32.totalorder %s12, 0
    %p135 = por %p133, %p134
    %p136 = scmp.ne.s32.totalorder %s125, %s128
    %p137 = scmp.eq.s32.totalorder %s17, 3
    %p138 = por %p136, %p137
    %p139 = scmp.ne.s32.totalorder %s128, %s129
    %p140 = scmp.eq.s32.totalorder %s17, 0
    %p141 = por %p139, %p140
    %p142 = scmp.ne.s32.totalorder %s128, %s129
    %p143 = scmp.eq.s32.totalorder %s18, 3
    %p144 = por %p142, %p143
    %p146 = scmp.ne.s32.totalorder %s129, %s145
    %p147 = scmp.eq.s32.totalorder %s18, 0
    %p148 = por %p146, %p147
    %s149 = ssub.s32 %s19, %s31
    %s150 = ssub.s32 %s20, %s27
    %s151 = sor.u32 %s149, %s150
    %p152 = scmp.eq.s32.totalorder %s151, 0
    %s154 = sadd.s32 %s153, 1
    %s155 = scalar_select %p152, %s153, %s154
    %p158 = pneg %p152
    %p159 = scmp.eq.s32.totalorder %s12, 3
    %p160 = por %p158, %p159
    %p161 = scmp.ne.s32.totalorder %s153, %s156
    %p162 = scmp.eq.s32.totalorder %s12, 0
    %p163 = por %p161, %p162
    %p164 = scmp.ne.s32.totalorder %s153, %s156
    %p165 = scmp.eq.s32.totalorder %s17, 3
    %p166 = por %p164, %p165
    %p167 = scmp.ne.s32.totalorder %s156, %s157
    %p168 = scmp.eq.s32.totalorder %s17, 0
    %p169 = por %p167, %p168
    %p170 = scmp.ne.s32.totalorder %s156, %s157
    %p171 = scmp.eq.s32.totalorder %s18, 3
    %p172 = por %p170, %p171
    %p174 = scmp.ne.s32.totalorder %s157, %s173
    %p175 = scmp.eq.s32.totalorder %s18, 0
    %p176 = por %p174, %p175
    %p177 = scmp.le.s32.totalorder 1, %s12
    %p178 = scmp.lt.s32.totalorder %s12, 5
    %p179 = pnand %p177, %p178
    %p180 = pneg %p179
    // Predicated region
    $region9: #{inception_a_forward.5} parent=5 // pred_check
      _
    $region10: #{inception_a_forward.5} parent=5 // pred_check_branch
      %182 = sbr.rel (%p179) target = $region12
    $region11: #{inception_a_forward.5} parent=5 // pred_region
      %s183 = ssub.s32 %s12, 1
      // Predicated region
      $region13: #{inception_a_forward.5} parent=11 // pred_check
        %p184 = pneg %p71
      $region14: #{inception_a_forward.5} parent=11 // pred_check_branch
        %186 = sbr.rel (%p184) target = $region16
      $region15: #{inception_a_forward.5} parent=11 // pred_region
        _
      $region16: #{inception_a_forward.5} parent=11 // pred_fallthru
        _
      // Predicated region
      $region17: #{inception_a_forward.5} parent=11 // pred_check
        %p187 = pneg %p92
      $region18: #{inception_a_forward.5} parent=11 // pred_check_branch
        %189 = sbr.rel (%p187) target = $region20
      $region19: #{inception_a_forward.5} parent=11 // pred_region
        _
      $region20: #{inception_a_forward.5} parent=11 // pred_fallthru
        _
      // Predicated region
      $region21: #{inception_a_forward.5} parent=11 // pred_check
        %p190 = pneg %p113
      $region22: #{inception_a_forward.5} parent=11 // pred_check_branch
        %192 = sbr.rel (%p190) target = $region24
      $region23: #{inception_a_forward.5} parent=11 // pred_region
        _
      $region24: #{inception_a_forward.5} parent=11 // pred_fallthru
        _
    $region12: #{inception_a_forward.5} parent=5 // pred_fallthru
      _
    %p193 = scmp.lt.s32.totalorder %s12, 4
    // Predicated region
    $region25: #{inception_a_forward.5} parent=5 // pred_check
      %p194 = pneg %p193
    $region26: #{inception_a_forward.5} parent=5 // pred_check_branch
      %196 = sbr.rel (%p194) target = $region28
    $region27: #{inception_a_forward.5} parent=5 // pred_region
      // Predicated region
      $region29: #{inception_a_forward.5} parent=27 // pred_check
        %p197 = pneg %p44
      $region30: #{inception_a_forward.5} parent=27 // pred_check_branch
        %199 = sbr.rel (%p197) target = $region32
      $region31: #{inception_a_forward.5} parent=27 // pred_region
        %p200 = scmp.lt.s32.totalorder %s19, 1
        %s201 = scalar_select %p200, %s19, 1
        %s202 = smul.addr %s201, 54
        %s203 = smul.addr %s202, 4
        %s204 = scalar_lea.vmem %s0, %s203
      $region32: #{inception_a_forward.5} parent=27 // pred_fallthru
        _
    $region28: #{inception_a_forward.5} parent=5 // pred_fallthru
      _
    %p205 = scmp.le.s32.totalorder 1, %s12
    %p206 = scmp.lt.s32.totalorder %s12, 5
    %p207 = pnand %p205, %p206
    %p208 = pneg %p207
    // Predicated region
    $region33: #{inception_a_forward.5} parent=5 // pred_check
      _
    $region34: #{inception_a_forward.5} parent=5 // pred_check_branch
      %210 = sbr.rel (%p207) target = $region36
    $region35: #{inception_a_forward.5} parent=5 // pred_region
      %s211 = ssub.s32 %s12, 1
      %p212 = scmp.lt.s32.totalorder %s21, 1
      %s213 = scalar_select %p212, %s21, 1
      %s214 = smul.addr %s213, 54
      %s215 = smul.addr %s214, 4
      %s216 = scalar_lea.vmem %s0, %s215
      %p217 = pneg %p50
      %p218 = pneg %p47
      %p219 = pneg %p71
      %p220 = pneg %p68
      %p221 = pneg %p92
      %p222 = pneg %p89
      %p223 = pneg %p113
      %p224 = pneg %p110
      %p225 = pneg %p141
      %p226 = pneg %p138
      %s227 = smul.u32 8, %s22
      %p228 = scmp.lt.s32.totalorder %s21, 1
      %s229 = scalar_select %p228, %s21, 1
      %p230 = scmp.lt.s32.totalorder %s227, 15
      %s231 = scalar_select %p230, %s227, 15
      %s232 = smul.addr %s231, 2
      %s233 = smul.addr %s229, 32
      %s234 = sadd.s32 %s232, %s233
      %s235 = smul.addr %s234, 8
      %s236 = scalar_lea.vmem %s4, %s235
      %p237 = pneg %p169
      %p238 = pneg %p166
      %s239 = smul.u32 8, %s22
      %p240 = scmp.lt.s32.totalorder %s21, 1
      %s241 = scalar_select %p240, %s21, 1
      %p242 = scmp.lt.s32.totalorder %s239, 15
      %s243 = scalar_select %p242, %s239, 15
      %s244 = smul.addr %s243, 2
      %s245 = smul.addr %s241, 32
      %s246 = sadd.s32 %s244, %s245
      %s247 = smul.addr %s246, 4
      %s248 = scalar_lea.vmem %s5, %s247
      %p249 = scmp.lt.s32.totalorder %s21, 1
      %s250 = scalar_select %p249, %s21, 1
      %s251 = smul.addr %s250, 54
      %s252 = smul.addr %s251, 4
      %s253 = scalar_lea.vmem %s0, %s252
      %s254 = smul.u32 8, %s22
      %p255 = scmp.lt.s32.totalorder %s21, 1
      %s256 = scalar_select %p255, %s21, 1
      %p257 = scmp.lt.s32.totalorder %s254, 15
      %s258 = scalar_select %p257, %s254, 15
      %s259 = smul.addr %s258, 2
      %s260 = smul.addr %s256, 32
      %s261 = sadd.s32 %s259, %s260
      %s262 = smul.addr %s261, 8
      %s263 = scalar_lea.vmem %s4, %s262
      %s264 = smul.u32 8, %s22
      %s265 = smul.u32 8, %s22
      %p266 = scmp.lt.s32.totalorder %s21, 1
      %s267 = scalar_select %p266, %s21, 1
      %p268 = scmp.lt.s32.totalorder %s265, 15
      %s269 = scalar_select %p268, %s265, 15
      %s270 = smul.addr %s269, 2
      %s271 = smul.addr %s267, 32
      %s272 = sadd.s32 %s270, %s271
      %s273 = smul.addr %s272, 4
      %s274 = scalar_lea.vmem %s5, %s273
      %s275 = smul.u32 8, %s22
      %s277 = smul.u32 %s22, 8
      %s278 = smul.u32 %s277, 3
      %s279 = smul.addr %s278, 4
      %s280 = scalar_lea.vmem %s253, %s279
      %v281 = vld [vmem:[%s280] sm:$0xf]
      %v282 = vld [vmem:[%s280 + $0x4] sm:$0xf]
      %v283 = vld [vmem:[%s280 + $0x8] sm:$0x1]
      %v284 = vld [vmem:[%s280 + $0xc] sm:$0xf]
      %v285 = vld [vmem:[%s280 + $0x10] sm:$0xf]
      %v286 = vld [vmem:[%s280 + $0x14] sm:$0x1]
      %v287 = vld [vmem:[%s280 + $0x18] sm:$0xf]
      %v288 = vld [vmem:[%s280 + $0x1c] sm:$0xf]
      %v289 = vld [vmem:[%s280 + $0x20] sm:$0x1]
      %v290 = vld [vmem:[%s280 + $0x24] sm:$0xf]
      %v291 = vld [vmem:[%s280 + $0x28] sm:$0xf]
      %v292 = vld [vmem:[%s280 + $0x2c] sm:$0x1]
      %v293 = vld [vmem:[%s280 + $0x30] sm:$0xf]
      %v294 = vld [vmem:[%s280 + $0x34] sm:$0xf]
      %v295 = vld [vmem:[%s280 + $0x38] sm:$0x1]
      %v296 = vld [vmem:[%s280 + $0x3c] sm:$0xf]
      %v297 = vld [vmem:[%s280 + $0x40] sm:$0xf]
      %v298 = vld [vmem:[%s280 + $0x44] sm:$0x1]
      %v299 = vld [vmem:[%s280 + $0x48] sm:$0xf]
      %v300 = vld [vmem:[%s280 + $0x4c] sm:$0xf]
      %v301 = vld [vmem:[%s280 + $0x50] sm:$0x1]
      %v302 = vld [vmem:[%s280 + $0x54] sm:$0xf]
      %v303 = vld [vmem:[%s280 + $0x58] sm:$0xf]
      %v304 = vld [vmem:[%s280 + $0x5c] sm:$0x1]
      %v305 = vld [vmem:[%s280 + $0x60] sm:$0xf]
      %v306 = vld [vmem:[%s280 + $0x64] sm:$0xf]
      %v307 = vld [vmem:[%s280 + $0x68] sm:$0x1]
      %v308 = vld [vmem:[%s280 + $0x6c] sm:$0xf]
      %v309 = vld [vmem:[%s280 + $0x70] sm:$0xf]
      %v310 = vld [vmem:[%s280 + $0x74] sm:$0x1]
      %v327 = vunpack.c.l.b16 %v281
      %v328 = vunpack.c.l.b16 %v282
      %v329 = vunpack.c.l.b16 %v284
      %v330 = vunpack.c.l.b16 %v285
      %v331 = vunpack.c.l.b16 %v287
      %v332 = vunpack.c.l.b16 %v288
      %v333 = vunpack.c.l.b16 %v290
      %v334 = vunpack.c.l.b16 %v291
      %v335 = vunpack.c.l.b16 %v293
      %v336 = vunpack.c.l.b16 %v294
      %v337 = vunpack.c.l.b16 %v296
      %v338 = vunpack.c.l.b16 %v297
      %v339 = vunpack.c.l.b16 %v299
      %v340 = vunpack.c.l.b16 %v300
      %v341 = vunpack.c.l.b16 %v302
      %v342 = vunpack.c.l.b16 %v303
      %v343 = vpack.c.b16 %v328, %v327
      %v344 = vpack.c.b16 %v330, %v329
      %v345 = vpack.c.b16 %v332, %v331
      %v346 = vpack.c.b16 %v334, %v333
      %v347 = vpack.c.b16 %v336, %v335
      %v348 = vpack.c.b16 %v338, %v337
      %v349 = vpack.c.b16 %v340, %v339
      %v350 = vpack.c.b16 %v342, %v341
      %v361 = vunpack.c.l.b16 %v305
      %v362 = vunpack.c.l.b16 %v306
      %v363 = vpack.c.b16 %v362, %v361
      %v367 = vunpack.c.l.b16 %v308
      %v368 = vunpack.c.l.b16 %v309
      %v369 = vpack.c.b16 %v368, %v367
      %v371 = vld [vmem:[%s1] sm:$0xff]
      %v372 = vld [vmem:[%s1 + $0x8] sm:$0xff]
      %v373 = vld [vmem:[%s1 + $0x10] sm:$0xff]
      %v374 = vld [vmem:[%s1 + $0x18] sm:$0xff]
      %v375 = vld [vmem:[%s1 + $0x20] sm:$0xff]
      %v376 = vld [vmem:[%s1 + $0x28] sm:$0xff]
      %v377 = vld [vmem:[%s1 + $0x30] sm:$0xff]
      %v378 = vld [vmem:[%s1 + $0x38] sm:$0xff]
      %v379 = vld [vmem:[%s1 + $0x40] sm:$0xff]
      %v380 = vld [vmem:[%s1 + $0x48] sm:$0xff]
      %v381 = vld [vmem:[%s1 + $0x50] sm:$0xff]
      %v382 = vld [vmem:[%s1 + $0x58] sm:$0xff]
      %v383 = vld [vmem:[%s1 + $0x60] sm:$0xff]
      %v384 = vld [vmem:[%s1 + $0x68] sm:$0xff]
      %v385 = vld [vmem:[%s1 + $0x70] sm:$0xff]
      %v386 = vld [vmem:[%s1 + $0x78] sm:$0xff]
      %v387 = vld [vmem:[%s1 + $0x80] sm:$0xff]
      %v388 = vld [vmem:[%s1 + $0x88] sm:$0xff]
      %v389 = vld [vmem:[%s1 + $0x90] sm:$0xff]
      %v390 = vld [vmem:[%s1 + $0x98] sm:$0xff]
      %v391 = vld [vmem:[%s1 + $0xa0] sm:$0xff]
      %v392 = vld [vmem:[%s1 + $0xa8] sm:$0xff]
      %v393 = vld [vmem:[%s1 + $0xb0] sm:$0xff]
      %v394 = vld [vmem:[%s1 + $0xb8] sm:$0xff]
      %v395 = vld [vmem:[%s1 + $0xc0] sm:$0xff]
      %v396 = vld [vmem:[%s1 + $0xc8] sm:$0xff]
      %v397 = vld [vmem:[%s1 + $0xd0] sm:$0xff]
      %v398 = vld [vmem:[%s1 + $0xd8] sm:$0xff]
      %v399 = vld [vmem:[%s1 + $0xe0] sm:$0xff]
      %v400 = vld [vmem:[%s1 + $0xe8] sm:$0xff]
      %v401 = vld [vmem:[%s1 + $0xf0] sm:$0xff]
      %v402 = vld [vmem:[%s1 + $0xf8] sm:$0xff]
      %v403 = vld [vmem:[%s1 + $0x100] sm:$0xff]
      %v404 = vld [vmem:[%s1 + $0x108] sm:$0xff]
      %v405 = vld [vmem:[%s1 + $0x110] sm:$0xff]
      %v406 = vld [vmem:[%s1 + $0x118] sm:$0xff]
      %v407 = vld [vmem:[%s1 + $0x120] sm:$0xff]
      %v408 = vld [vmem:[%s1 + $0x128] sm:$0xff]
      %v409 = vld [vmem:[%s1 + $0x130] sm:$0xff]
      %v410 = vld [vmem:[%s1 + $0x138] sm:$0xff]
      %v411 = vld [vmem:[%s1 + $0x140] sm:$0xff]
      %v412 = vld [vmem:[%s1 + $0x148] sm:$0xff]
      %v413 = vld [vmem:[%s1 + $0x150] sm:$0xff]
      %v414 = vld [vmem:[%s1 + $0x158] sm:$0xff]
      %v415 = vld [vmem:[%s1 + $0x160] sm:$0xff]
      %v416 = vld [vmem:[%s1 + $0x168] sm:$0xff]
      %v417 = vld [vmem:[%s1 + $0x170] sm:$0xff]
      %v418 = vld [vmem:[%s1 + $0x178] sm:$0xff]
      %v427 = vunpack.c.l.b16 %v283
      %v428 = vunpack.c.l.b16 %v286
      %v429 = vunpack.c.l.b16 %v289
      %v430 = vunpack.c.l.b16 %v292
      %v431 = vunpack.c.l.b16 %v295
      %v432 = vunpack.c.l.b16 %v298
      %v433 = vunpack.c.l.b16 %v301
      %v434 = vunpack.c.l.b16 %v304
      %v435 = vpack.c.b16 %v427, %v427
      %v436 = vpack.c.b16 %v428, %v428
      %v437 = vpack.c.b16 %v429, %v429
      %v438 = vpack.c.b16 %v430, %v430
      %v439 = vpack.c.b16 %v431, %v431
      %v440 = vpack.c.b16 %v432, %v432
      %v441 = vpack.c.b16 %v433, %v433
      %v442 = vpack.c.b16 %v434, %v434
      %v444 = vunpack.c.l.b16 %v307
      %v445 = vpack.c.b16 %v444, %v444
      %v447 = vunpack.c.l.b16 %v310
      %v448 = vpack.c.b16 %v447, %v447
      %vm449 = vsmask.f32 7424
      %v451 = vshrl.u32 %v343, 16
      %v453 = vshll.u32 %v343, 16
      %v455 = vrot.slane %v453, 1
      %v456 = vor.u32 %v451, %v455
      %v458 = vshll.u32 %v435, 16
      %v460 = vrot.slane %v458, 1
      %v461 = vsel %vm449, %v456, %v460
      %v463 = vshrl.u32 %v344, 16
      %v465 = vshll.u32 %v344, 16
      %v467 = vrot.slane %v465, 1
      %v468 = vor.u32 %v463, %v467
      %v470 = vshll.u32 %v436, 16
      %v472 = vrot.slane %v470, 1
      %v473 = vsel %vm449, %v468, %v472
      %v475 = vshrl.u32 %v345, 16
      %v477 = vshll.u32 %v345, 16
      %v479 = vrot.slane %v477, 1
      %v480 = vor.u32 %v475, %v479
      %v482 = vshll.u32 %v437, 16
      %v484 = vrot.slane %v482, 1
      %v485 = vsel %vm449, %v480, %v484
      %v487 = vshrl.u32 %v346, 16
      %v489 = vshll.u32 %v346, 16
      %v491 = vrot.slane %v489, 1
      %v492 = vor.u32 %v487, %v491
      %v494 = vshll.u32 %v438, 16
      %v496 = vrot.slane %v494, 1
      %v497 = vsel %vm449, %v492, %v496
      %v499 = vshrl.u32 %v347, 16
      %v501 = vshll.u32 %v347, 16
      %v503 = vrot.slane %v501, 1
      %v504 = vor.u32 %v499, %v503
      %v506 = vshll.u32 %v439, 16
      %v508 = vrot.slane %v506, 1
      %v509 = vsel %vm449, %v504, %v508
      %v511 = vshrl.u32 %v348, 16
      %v513 = vshll.u32 %v348, 16
      %v515 = vrot.slane %v513, 1
      %v516 = vor.u32 %v511, %v515
      %v518 = vshll.u32 %v440, 16
      %v520 = vrot.slane %v518, 1
      %v521 = vsel %vm449, %v516, %v520
      %v523 = vshrl.u32 %v349, 16
      %v525 = vshll.u32 %v349, 16
      %v527 = vrot.slane %v525, 1
      %v528 = vor.u32 %v523, %v527
      %v530 = vshll.u32 %v441, 16
      %v532 = vrot.slane %v530, 1
      %v533 = vsel %vm449, %v528, %v532
      %v535 = vshrl.u32 %v350, 16
      %v537 = vshll.u32 %v350, 16
      %v539 = vrot.slane %v537, 1
      %v540 = vor.u32 %v535, %v539
      %v542 = vshll.u32 %v442, 16
      %v544 = vrot.slane %v542, 1
      %v545 = vsel %vm449, %v540, %v544
      %v547 = vshrl.u32 %v363, 16
      %v549 = vshll.u32 %v363, 16
      %v551 = vrot.slane %v549, 1
      %v552 = vor.u32 %v547, %v551
      %v554 = vshll.u32 %v445, 16
      %v556 = vrot.slane %v554, 1
      %v557 = vsel %vm449, %v552, %v556
      %v559 = vshrl.u32 %v369, 16
      %v561 = vshll.u32 %v369, 16
      %v563 = vrot.slane %v561, 1
      %v564 = vor.u32 %v559, %v563
      %v566 = vshll.u32 %v448, 16
      %v568 = vrot.slane %v566, 1
      %v569 = vsel %vm449, %v564, %v568
      %s580 = scalar_lea.vmem %s1, 384
      %v581 = vld [vmem:[%s580] sm:$0xff]
      %v582 = vld [vmem:[%s580 + $0x8] sm:$0xff]
      %v583 = vld [vmem:[%s580 + $0x10] sm:$0xff]
      %v584 = vld [vmem:[%s580 + $0x18] sm:$0xff]
      %v585 = vld [vmem:[%s580 + $0x20] sm:$0xff]
      %v586 = vld [vmem:[%s580 + $0x28] sm:$0xff]
      %v587 = vld [vmem:[%s580 + $0x30] sm:$0xff]
      %v588 = vld [vmem:[%s580 + $0x38] sm:$0xff]
      %v589 = vld [vmem:[%s580 + $0x40] sm:$0xff]
      %v590 = vld [vmem:[%s580 + $0x48] sm:$0xff]
      %v591 = vld [vmem:[%s580 + $0x50] sm:$0xff]
      %v592 = vld [vmem:[%s580 + $0x58] sm:$0xff]
      %v593 = vld [vmem:[%s580 + $0x60] sm:$0xff]
      %v594 = vld [vmem:[%s580 + $0x68] sm:$0xff]
      %v595 = vld [vmem:[%s580 + $0x70] sm:$0xff]
      %v596 = vld [vmem:[%s580 + $0x78] sm:$0xff]
      %v597 = vld [vmem:[%s580 + $0x80] sm:$0xff]
      %v598 = vld [vmem:[%s580 + $0x88] sm:$0xff]
      %v599 = vld [vmem:[%s580 + $0x90] sm:$0xff]
      %v600 = vld [vmem:[%s580 + $0x98] sm:$0xff]
      %v601 = vld [vmem:[%s580 + $0xa0] sm:$0xff]
      %v602 = vld [vmem:[%s580 + $0xa8] sm:$0xff]
      %v603 = vld [vmem:[%s580 + $0xb0] sm:$0xff]
      %v604 = vld [vmem:[%s580 + $0xb8] sm:$0xff]
      %v605 = vld [vmem:[%s580 + $0xc0] sm:$0xff]
      %v606 = vld [vmem:[%s580 + $0xc8] sm:$0xff]
      %v607 = vld [vmem:[%s580 + $0xd0] sm:$0xff]
      %v608 = vld [vmem:[%s580 + $0xd8] sm:$0xff]
      %v609 = vld [vmem:[%s580 + $0xe0] sm:$0xff]
      %v610 = vld [vmem:[%s580 + $0xe8] sm:$0xff]
      %v611 = vld [vmem:[%s580 + $0xf0] sm:$0xff]
      %v612 = vld [vmem:[%s580 + $0xf8] sm:$0xff]
      %v613 = vld [vmem:[%s580 + $0x100] sm:$0xff]
      %v614 = vld [vmem:[%s580 + $0x108] sm:$0xff]
      %v615 = vld [vmem:[%s580 + $0x110] sm:$0xff]
      %v616 = vld [vmem:[%s580 + $0x118] sm:$0xff]
      %v617 = vld [vmem:[%s580 + $0x120] sm:$0xff]
      %v618 = vld [vmem:[%s580 + $0x128] sm:$0xff]
      %v619 = vld [vmem:[%s580 + $0x130] sm:$0xff]
      %v620 = vld [vmem:[%s580 + $0x138] sm:$0xff]
      %v621 = vld [vmem:[%s580 + $0x140] sm:$0xff]
      %v622 = vld [vmem:[%s580 + $0x148] sm:$0xff]
      %v623 = vld [vmem:[%s580 + $0x150] sm:$0xff]
      %v624 = vld [vmem:[%s580 + $0x158] sm:$0xff]
      %v625 = vld [vmem:[%s580 + $0x160] sm:$0xff]
      %v626 = vld [vmem:[%s580 + $0x168] sm:$0xff]
      %v627 = vld [vmem:[%s580 + $0x170] sm:$0xff]
      %v628 = vld [vmem:[%s580 + $0x178] sm:$0xff]
      %v677 = vunpack.c.l.b16 %v581
      %v678 = vunpack.c.h.b16 %v581
      %v679 = vunpack.c.l.b16 %v582
      %v680 = vunpack.c.h.b16 %v582
      %v681 = vunpack.c.l.b16 %v583
      %v682 = vunpack.c.h.b16 %v583
      %v683 = vunpack.c.l.b16 %v584
      %v684 = vunpack.c.h.b16 %v584
      %v685 = vunpack.c.l.b16 %v585
      %v686 = vunpack.c.h.b16 %v585
      %v687 = vunpack.c.l.b16 %v586
      %v688 = vunpack.c.h.b16 %v586
      %v689 = vunpack.c.l.b16 %v587
      %v690 = vunpack.c.h.b16 %v587
      %v691 = vunpack.c.l.b16 %v588
      %v692 = vunpack.c.h.b16 %v588
      %v693 = vunpack.c.l.b16 %v589
      %v694 = vunpack.c.h.b16 %v589
      %v695 = vunpack.c.l.b16 %v590
      %v696 = vunpack.c.h.b16 %v590
      %v697 = vunpack.c.l.b16 %v591
      %v698 = vunpack.c.h.b16 %v591
      %v699 = vunpack.c.l.b16 %v592
      %v700 = vunpack.c.h.b16 %v592
      %v701 = vunpack.c.l.b16 %v593
      %v702 = vunpack.c.h.b16 %v593
      %v703 = vunpack.c.l.b16 %v594
      %v704 = vunpack.c.h.b16 %v594
      %v705 = vunpack.c.l.b16 %v595
      %v706 = vunpack.c.h.b16 %v595
      %v707 = vunpack.c.l.b16 %v596
      %v708 = vunpack.c.h.b16 %v596
      %v709 = vunpack.c.l.b16 %v597
      %v710 = vunpack.c.h.b16 %v597
      %v711 = vunpack.c.l.b16 %v598
      %v712 = vunpack.c.h.b16 %v598
      %v713 = vunpack.c.l.b16 %v599
      %v714 = vunpack.c.h.b16 %v599
      %v715 = vunpack.c.l.b16 %v600
      %v716 = vunpack.c.h.b16 %v600
      %v717 = vunpack.c.l.b16 %v601
      %v718 = vunpack.c.h.b16 %v601
      %v719 = vunpack.c.l.b16 %v602
      %v720 = vunpack.c.h.b16 %v602
      %v721 = vunpack.c.l.b16 %v603
      %v722 = vunpack.c.h.b16 %v603
      %v723 = vunpack.c.l.b16 %v604
      %v724 = vunpack.c.h.b16 %v604
      %v725 = vunpack.c.l.b16 %v605
      %v726 = vunpack.c.h.b16 %v605
      %v727 = vunpack.c.l.b16 %v606
      %v728 = vunpack.c.h.b16 %v606
      %v729 = vunpack.c.l.b16 %v607
      %v730 = vunpack.c.h.b16 %v607
      %v731 = vunpack.c.l.b16 %v608
      %v732 = vunpack.c.h.b16 %v608
      %v733 = vunpack.c.l.b16 %v609
      %v734 = vunpack.c.h.b16 %v609
      %v735 = vunpack.c.l.b16 %v610
      %v736 = vunpack.c.h.b16 %v610
      %v737 = vunpack.c.l.b16 %v611
      %v738 = vunpack.c.h.b16 %v611
      %v739 = vunpack.c.l.b16 %v612
      %v740 = vunpack.c.h.b16 %v612
      %v741 = vunpack.c.l.b16 %v613
      %v742 = vunpack.c.h.b16 %v613
      %v743 = vunpack.c.l.b16 %v614
      %v744 = vunpack.c.h.b16 %v614
      %v745 = vunpack.c.l.b16 %v615
      %v746 = vunpack.c.h.b16 %v615
      %v747 = vunpack.c.l.b16 %v616
      %v748 = vunpack.c.h.b16 %v616
      %v749 = vunpack.c.l.b16 %v617
      %v750 = vunpack.c.h.b16 %v617
      %v751 = vunpack.c.l.b16 %v618
      %v752 = vunpack.c.h.b16 %v618
      %v753 = vunpack.c.l.b16 %v619
      %v754 = vunpack.c.h.b16 %v619
      %v755 = vunpack.c.l.b16 %v620
      %v756 = vunpack.c.h.b16 %v620
      %v757 = vunpack.c.l.b16 %v621
      %v758 = vunpack.c.h.b16 %v621
      %v759 = vunpack.c.l.b16 %v622
      %v760 = vunpack.c.h.b16 %v622
      %v761 = vunpack.c.l.b16 %v623
      %v762 = vunpack.c.h.b16 %v623
      %v763 = vunpack.c.l.b16 %v624
      %v764 = vunpack.c.h.b16 %v624
      %v765 = vunpack.c.l.b16 %v625
      %v766 = vunpack.c.h.b16 %v625
      %v767 = vunpack.c.l.b16 %v626
      %v768 = vunpack.c.h.b16 %v626
      %v769 = vunpack.c.l.b16 %v627
      %v770 = vunpack.c.h.b16 %v627
      %v771 = vunpack.c.l.b16 %v628
      %v772 = vunpack.c.h.b16 %v628
      %v773 = vpack.c.b16 %v679, %v677
      %v774 = vpack.c.b16 %v680, %v678
      %v775 = vpack.c.b16 %v683, %v681
      %v776 = vpack.c.b16 %v684, %v682
      %v777 = vpack.c.b16 %v687, %v685
      %v778 = vpack.c.b16 %v688, %v686
      %v779 = vpack.c.b16 %v691, %v689
      %v780 = vpack.c.b16 %v692, %v690
      %v781 = vpack.c.b16 %v695, %v693
      %v782 = vpack.c.b16 %v696, %v694
      %v783 = vpack.c.b16 %v699, %v697
      %v784 = vpack.c.b16 %v700, %v698
      %v785 = vpack.c.b16 %v703, %v701
      %v786 = vpack.c.b16 %v704, %v702
      %v787 = vpack.c.b16 %v707, %v705
      %v788 = vpack.c.b16 %v708, %v706
      %v789 = vpack.c.b16 %v711, %v709
      %v790 = vpack.c.b16 %v712, %v710
      %v791 = vpack.c.b16 %v715, %v713
      %v792 = vpack.c.b16 %v716, %v714
      %v793 = vpack.c.b16 %v719, %v717
      %v794 = vpack.c.b16 %v720, %v718
      %v795 = vpack.c.b16 %v723, %v721
      %v796 = vpack.c.b16 %v724, %v722
      %v797 = vpack.c.b16 %v727, %v725
      %v798 = vpack.c.b16 %v728, %v726
      %v799 = vpack.c.b16 %v731, %v729
      %v800 = vpack.c.b16 %v732, %v730
      %v801 = vpack.c.b16 %v735, %v733
      %v802 = vpack.c.b16 %v736, %v734
      %v803 = vpack.c.b16 %v739, %v737
      %v804 = vpack.c.b16 %v740, %v738
      %v805 = vpack.c.b16 %v743, %v741
      %v806 = vpack.c.b16 %v744, %v742
      %v807 = vpack.c.b16 %v747, %v745
      %v808 = vpack.c.b16 %v748, %v746
      %v809 = vpack.c.b16 %v751, %v749
      %v810 = vpack.c.b16 %v752, %v750
      %v811 = vpack.c.b16 %v755, %v753
      %v812 = vpack.c.b16 %v756, %v754
      %v813 = vpack.c.b16 %v759, %v757
      %v814 = vpack.c.b16 %v760, %v758
      %v815 = vpack.c.b16 %v763, %v761
      %v816 = vpack.c.b16 %v764, %v762
      %v817 = vpack.c.b16 %v767, %v765
      %v818 = vpack.c.b16 %v768, %v766
      %v819 = vpack.c.b16 %v771, %v769
      %v820 = vpack.c.b16 %v772, %v770
      %869 = vmatprep.subr.bf16.mxu0 %v788
      %870 = vmatpush1.bf16.msra.mxu0 %v787
      %871 = vmatprep.subr.bf16.mxu0 %v786
      %872 = vmatpush1.bf16.msra.mxu0 %v785
      %873 = vmatprep.subr.bf16.mxu0 %v784
      %874 = vmatpush1.bf16.msra.mxu0 %v783
      %875 = vmatprep.subr.bf16.mxu0 %v782
      %876 = vmatpush1.bf16.msra.mxu0 %v781
      %877 = vmatprep.subr.bf16.mxu0 %v780
      %878 = vmatpush1.bf16.msra.mxu0 %v779
      %879 = vmatprep.subr.bf16.mxu0 %v778
      %880 = vmatpush1.bf16.msra.mxu0 %v777
      %881 = vmatprep.subr.bf16.mxu0 %v776
      %882 = vmatpush1.bf16.msra.mxu0 %v775
      %883 = vmatprep.subr.bf16.mxu0 %v774
      %884 = vmatpush1.bf16.msra.mxu0 %v773
      %885 = vmatprep.subr.bf16.mxu0 %v804
      %886 = vmatpush2.bf16.msra.mxu0 %v803
      %887 = vmatprep.subr.bf16.mxu0 %v802
      %888 = vmatpush2.bf16.msra.mxu0 %v801
      %889 = vmatprep.subr.bf16.mxu0 %v800
      %890 = vmatpush2.bf16.msra.mxu0 %v799
      %891 = vmatprep.subr.bf16.mxu0 %v798
      %892 = vmatpush2.bf16.msra.mxu0 %v797
      %893 = vmatprep.subr.bf16.mxu0 %v796
      %894 = vmatpush2.bf16.msra.mxu0 %v795
      %895 = vmatprep.subr.bf16.mxu0 %v794
      %896 = vmatpush2.bf16.msra.mxu0 %v793
      %897 = vmatprep.subr.bf16.mxu0 %v792
      %898 = vmatpush2.bf16.msra.mxu0 %v791
      %899 = vmatprep.subr.bf16.mxu0 %v790
      %900 = vmatpush2.bf16.msra.mxu0 %v789
      %901 = vmatprep.mubr.bf16.mxu0 %v473
      %902 = vmatmul.mubr.bf16.gmra.mxu0 %v461
      %v903 = vpop.f32.mrf.mxu0
      %v904 = vadd.f32 0.0, %v903
      %v905 = vpop.f32.mrf.mxu0
      %v906 = vadd.f32 0.0, %v905
      %v907 = vpop.f32.mrf.mxu0
      %v908 = vadd.f32 0.0, %v907
      %v909 = vpop.f32.mrf.mxu0
      %v910 = vadd.f32 0.0, %v909
      %911 = vmatprep.mubr.bf16.mxu0 %v485
      %912 = vmatmul.mubr.bf16.gmra.mxu0 %v473
      %v913 = vpop.f32.mrf.mxu0
      %v914 = vadd.f32 0.0, %v913
      %v915 = vpop.f32.mrf.mxu0
      %v916 = vadd.f32 0.0, %v915
      %v917 = vpop.f32.mrf.mxu0
      %v918 = vadd.f32 0.0, %v917
      %v919 = vpop.f32.mrf.mxu0
      %v920 = vadd.f32 0.0, %v919
      %921 = vmatprep.mubr.bf16.mxu0 %v497
      %922 = vmatmul.mubr.bf16.gmra.mxu0 %v485
      %v923 = vpop.f32.mrf.mxu0
      %v924 = vadd.f32 0.0, %v923
      %v925 = vpop.f32.mrf.mxu0
      %v926 = vadd.f32 0.0, %v925
      %v927 = vpop.f32.mrf.mxu0
      %v928 = vadd.f32 0.0, %v927
      %v929 = vpop.f32.mrf.mxu0
      %v930 = vadd.f32 0.0, %v929
      %931 = vmatprep.mubr.bf16.mxu0 %v509
      %932 = vmatmul.mubr.bf16.gmra.mxu0 %v497
      %v933 = vpop.f32.mrf.mxu0
      %v934 = vadd.f32 0.0, %v933
      %v935 = vpop.f32.mrf.mxu0
      %v936 = vadd.f32 0.0, %v935
      %v937 = vpop.f32.mrf.mxu0
      %v938 = vadd.f32 0.0, %v937
      %v939 = vpop.f32.mrf.mxu0
      %v940 = vadd.f32 0.0, %v939
      %941 = vmatprep.mubr.bf16.mxu0 %v521
      %942 = vmatmul.mubr.bf16.gmra.mxu0 %v509
      %v943 = vpop.f32.mrf.mxu0
      %v944 = vadd.f32 0.0, %v943
      %v945 = vpop.f32.mrf.mxu0
      %v946 = vadd.f32 0.0, %v945
      %v947 = vpop.f32.mrf.mxu0
      %v948 = vadd.f32 0.0, %v947
      %v949 = vpop.f32.mrf.mxu0
      %v950 = vadd.f32 0.0, %v949
      %951 = vmatprep.mubr.bf16.mxu0 %v533
      %952 = vmatmul.mubr.bf16.gmra.mxu0 %v521
      %v953 = vpop.f32.mrf.mxu0
      %v954 = vadd.f32 0.0, %v953
      %v955 = vpop.f32.mrf.mxu0
      %v956 = vadd.f32 0.0, %v955
      %v957 = vpop.f32.mrf.mxu0
      %v958 = vadd.f32 0.0, %v957
      %v959 = vpop.f32.mrf.mxu0
      %v960 = vadd.f32 0.0, %v959
      %961 = vmatprep.mubr.bf16.mxu0 %v545
      %962 = vmatmul.mubr.bf16.gmra.mxu0 %v533
      %v963 = vpop.f32.mrf.mxu0
      %v964 = vadd.f32 0.0, %v963
      %v965 = vpop.f32.mrf.mxu0
      %v966 = vadd.f32 0.0, %v965
      %v967 = vpop.f32.mrf.mxu0
      %v968 = vadd.f32 0.0, %v967
      %v969 = vpop.f32.mrf.mxu0
      %v970 = vadd.f32 0.0, %v969
      %971 = vmatprep.mubr.bf16.mxu0 %v557
      %972 = vmatmul.mubr.bf16.gmra.mxu0 %v545
      %v973 = vpop.f32.mrf.mxu0
      %v974 = vadd.f32 0.0, %v973
      %v975 = vpop.f32.mrf.mxu0
      %v976 = vadd.f32 0.0, %v975
      %v977 = vpop.f32.mrf.mxu0
      %v978 = vadd.f32 0.0, %v977
      %v979 = vpop.f32.mrf.mxu0
      %v980 = vadd.f32 0.0, %v979
      %981 = vdwg.mxu0
      %982 = vmatprep.subr.bf16.mxu0 %v820
      %983 = vmatpush1.bf16.msra.mxu0 %v819
      %984 = vmatprep.subr.bf16.mxu0 %v818
      %985 = vmatpush1.bf16.msra.mxu0 %v817
      %986 = vmatprep.subr.bf16.mxu0 %v816
      %987 = vmatpush1.bf16.msra.mxu0 %v815
      %988 = vmatprep.subr.bf16.mxu0 %v814
      %989 = vmatpush1.bf16.msra.mxu0 %v813
      %990 = vmatprep.subr.bf16.mxu0 %v812
      %991 = vmatpush1.bf16.msra.mxu0 %v811
      %992 = vmatprep.subr.bf16.mxu0 %v810
      %993 = vmatpush1.bf16.msra.mxu0 %v809
      %994 = vmatprep.subr.bf16.mxu0 %v808
      %995 = vmatpush1.bf16.msra.mxu0 %v807
      %996 = vmatprep.subr.bf16.mxu0 %v806
      %997 = vmatpush1.bf16.msra.mxu0 %v805
      %998 = vmatprep.subr.bf16.mxu0 0
      %999 = vmatpush2.bf16.msra.mxu0 0
      %1000 = vmatprep.subr.bf16.mxu0 0
      %1001 = vmatpush2.bf16.msra.mxu0 0
      %1002 = vmatprep.subr.bf16.mxu0 0
      %1003 = vmatpush2.bf16.msra.mxu0 0
      %1004 = vmatprep.subr.bf16.mxu0 0
      %1005 = vmatpush2.bf16.msra.mxu0 0
      %1006 = vmatprep.subr.bf16.mxu0 0
      %1007 = vmatpush2.bf16.msra.mxu0 0
      %1008 = vmatprep.subr.bf16.mxu0 0
      %1009 = vmatpush2.bf16.msra.mxu0 0
      %1010 = vmatprep.subr.bf16.mxu0 0
      %1011 = vmatpush2.bf16.msra.mxu0 0
      %1012 = vmatprep.subr.bf16.mxu0 0
      %1013 = vmatpush2.bf16.msra.mxu0 0
      %1014 = vmatprep.mubr.bf16.mxu0 0
      %1015 = vmatmul.mubr.bf16.gmra.mxu0 %v485
      %v1016 = vpop.f32.mrf.mxu0
      %v1017 = vadd.f32 %v904, %v1016
      %v1018 = vpop.f32.mrf.mxu0
      %v1019 = vadd.f32 %v906, %v1018
      %v1020 = vpop.f32.mrf.mxu0
      %v1021 = vadd.f32 %v908, %v1020
      %v1022 = vpop.f32.mrf.mxu0
      %v1023 = vadd.f32 %v910, %v1022
      %1024 = vmatprep.mubr.bf16.mxu0 0
      %1025 = vmatmul.mubr.bf16.gmra.mxu0 %v497
      %v1026 = vpop.f32.mrf.mxu0
      %v1027 = vadd.f32 %v914, %v1026
      %v1028 = vpop.f32.mrf.mxu0
      %v1029 = vadd.f32 %v916, %v1028
      %v1030 = vpop.f32.mrf.mxu0
      %v1031 = vadd.f32 %v918, %v1030
      %v1032 = vpop.f32.mrf.mxu0
      %v1033 = vadd.f32 %v920, %v1032
      %1034 = vmatprep.mubr.bf16.mxu0 0
      %1035 = vmatmul.mubr.bf16.gmra.mxu0 %v509
      %v1036 = vpop.f32.mrf.mxu0
      %v1037 = vadd.f32 %v924, %v1036
      %v1038 = vpop.f32.mrf.mxu0
      %v1039 = vadd.f32 %v926, %v1038
      %v1040 = vpop.f32.mrf.mxu0
      %v1041 = vadd.f32 %v928, %v1040
      %v1042 = vpop.f32.mrf.mxu0
      %v1043 = vadd.f32 %v930, %v1042
      %1044 = vmatprep.mubr.bf16.mxu0 0
      %1045 = vmatmul.mubr.bf16.gmra.mxu0 %v521
      %v1046 = vpop.f32.mrf.mxu0
      %v1047 = vadd.f32 %v934, %v1046
      %v1048 = vpop.f32.mrf.mxu0
      %v1049 = vadd.f32 %v936, %v1048
      %v1050 = vpop.f32.mrf.mxu0
      %v1051 = vadd.f32 %v938, %v1050
      %v1052 = vpop.f32.mrf.mxu0
      %v1053 = vadd.f32 %v940, %v1052
      %1054 = vmatprep.mubr.bf16.mxu0 0
      %1055 = vmatmul.mubr.bf16.gmra.mxu0 %v533
      %v1056 = vpop.f32.mrf.mxu0
      %v1057 = vadd.f32 %v944, %v1056
      %v1058 = vpop.f32.mrf.mxu0
      %v1059 = vadd.f32 %v946, %v1058
      %v1060 = vpop.f32.mrf.mxu0
      %v1061 = vadd.f32 %v948, %v1060
      %v1062 = vpop.f32.mrf.mxu0
      %v1063 = vadd.f32 %v950, %v1062
      %1064 = vmatprep.mubr.bf16.mxu0 0
      %1065 = vmatmul.mubr.bf16.gmra.mxu0 %v545
      %v1066 = vpop.f32.mrf.mxu0
      %v1067 = vadd.f32 %v954, %v1066
      %v1068 = vpop.f32.mrf.mxu0
      %v1069 = vadd.f32 %v956, %v1068
      %v1070 = vpop.f32.mrf.mxu0
      %v1071 = vadd.f32 %v958, %v1070
      %v1072 = vpop.f32.mrf.mxu0
      %v1073 = vadd.f32 %v960, %v1072
      %1074 = vmatprep.mubr.bf16.mxu0 0
      %1075 = vmatmul.mubr.bf16.gmra.mxu0 %v557
      %v1076 = vpop.f32.mrf.mxu0
      %v1077 = vadd.f32 %v964, %v1076
      %v1078 = vpop.f32.mrf.mxu0
      %v1079 = vadd.f32 %v966, %v1078
      %v1080 = vpop.f32.mrf.mxu0
      %v1081 = vadd.f32 %v968, %v1080
      %v1082 = vpop.f32.mrf.mxu0
      %v1083 = vadd.f32 %v970, %v1082
      %1084 = vmatprep.mubr.bf16.mxu0 0
      %1085 = vmatmul.mubr.bf16.gmra.mxu0 %v569
      %v1086 = vpop.f32.mrf.mxu0
      %v1087 = vadd.f32 %v974, %v1086
      %v1088 = vpop.f32.mrf.mxu0
      %v1089 = vadd.f32 %v976, %v1088
      %v1090 = vpop.f32.mrf.mxu0
      %v1091 = vadd.f32 %v978, %v1090
      %v1092 = vpop.f32.mrf.mxu0
      %v1093 = vadd.f32 %v980, %v1092
      %1094 = vdwg.mxu0
      %v1143 = vunpack.c.l.b16 %v371
      %v1144 = vunpack.c.h.b16 %v371
      %v1145 = vunpack.c.l.b16 %v372
      %v1146 = vunpack.c.h.b16 %v372
      %v1147 = vunpack.c.l.b16 %v373
      %v1148 = vunpack.c.h.b16 %v373
      %v1149 = vunpack.c.l.b16 %v374
      %v1150 = vunpack.c.h.b16 %v374
      %v1151 = vunpack.c.l.b16 %v375
      %v1152 = vunpack.c.h.b16 %v375
      %v1153 = vunpack.c.l.b16 %v376
      %v1154 = vunpack.c.h.b16 %v376
      %v1155 = vunpack.c.l.b16 %v377
      %v1156 = vunpack.c.h.b16 %v377
      %v1157 = vunpack.c.l.b16 %v378
      %v1158 = vunpack.c.h.b16 %v378
      %v1159 = vunpack.c.l.b16 %v379
      %v1160 = vunpack.c.h.b16 %v379
      %v1161 = vunpack.c.l.b16 %v380
      %v1162 = vunpack.c.h.b16 %v380
      %v1163 = vunpack.c.l.b16 %v381
      %v1164 = vunpack.c.h.b16 %v381
      %v1165 = vunpack.c.l.b16 %v382
      %v1166 = vunpack.c.h.b16 %v382
      %v1167 = vunpack.c.l.b16 %v383
      %v1168 = vunpack.c.h.b16 %v383
      %v1169 = vunpack.c.l.b16 %v384
      %v1170 = vunpack.c.h.b16 %v384
      %v1171 = vunpack.c.l.b16 %v385
      %v1172 = vunpack.c.h.b16 %v385
      %v1173 = vunpack.c.l.b16 %v386
      %v1174 = vunpack.c.h.b16 %v386
      %v1175 = vunpack.c.l.b16 %v387
      %v1176 = vunpack.c.h.b16 %v387
      %v1177 = vunpack.c.l.b16 %v388
      %v1178 = vunpack.c.h.b16 %v388
      %v1179 = vunpack.c.l.b16 %v389
      %v1180 = vunpack.c.h.b16 %v389
      %v1181 = vunpack.c.l.b16 %v390
      %v1182 = vunpack.c.h.b16 %v390
      %v1183 = vunpack.c.l.b16 %v391
      %v1184 = vunpack.c.h.b16 %v391
      %v1185 = vunpack.c.l.b16 %v392
      %v1186 = vunpack.c.h.b16 %v392
      %v1187 = vunpack.c.l.b16 %v393
      %v1188 = vunpack.c.h.b16 %v393
      %v1189 = vunpack.c.l.b16 %v394
      %v1190 = vunpack.c.h.b16 %v394
      %v1191 = vunpack.c.l.b16 %v395
      %v1192 = vunpack.c.h.b16 %v395
      %v1193 = vunpack.c.l.b16 %v396
      %v1194 = vunpack.c.h.b16 %v396
      %v1195 = vunpack.c.l.b16 %v397
      %v1196 = vunpack.c.h.b16 %v397
      %v1197 = vunpack.c.l.b16 %v398
      %v1198 = vunpack.c.h.b16 %v398
      %v1199 = vunpack.c.l.b16 %v399
      %v1200 = vunpack.c.h.b16 %v399
      %v1201 = vunpack.c.l.b16 %v400
      %v1202 = vunpack.c.h.b16 %v400
      %v1203 = vunpack.c.l.b16 %v401
      %v1204 = vunpack.c.h.b16 %v401
      %v1205 = vunpack.c.l.b16 %v402
      %v1206 = vunpack.c.h.b16 %v402
      %v1207 = vunpack.c.l.b16 %v403
      %v1208 = vunpack.c.h.b16 %v403
      %v1209 = vunpack.c.l.b16 %v404
      %v1210 = vunpack.c.h.b16 %v404
      %v1211 = vunpack.c.l.b16 %v405
      %v1212 = vunpack.c.h.b16 %v405
      %v1213 = vunpack.c.l.b16 %v406
      %v1214 = vunpack.c.h.b16 %v406
      %v1215 = vunpack.c.l.b16 %v407
      %v1216 = vunpack.c.h.b16 %v407
      %v1217 = vunpack.c.l.b16 %v408
      %v1218 = vunpack.c.h.b16 %v408
      %v1219 = vunpack.c.l.b16 %v409
      %v1220 = vunpack.c.h.b16 %v409
      %v1221 = vunpack.c.l.b16 %v410
      %v1222 = vunpack.c.h.b16 %v410
      %v1223 = vunpack.c.l.b16 %v411
      %v1224 = vunpack.c.h.b16 %v411
      %v1225 = vunpack.c.l.b16 %v412
      %v1226 = vunpack.c.h.b16 %v412
      %v1227 = vunpack.c.l.b16 %v413
      %v1228 = vunpack.c.h.b16 %v413
      %v1229 = vunpack.c.l.b16 %v414
      %v1230 = vunpack.c.h.b16 %v414
      %v1231 = vunpack.c.l.b16 %v415
      %v1232 = vunpack.c.h.b16 %v415
      %v1233 = vunpack.c.l.b16 %v416
      %v1234 = vunpack.c.h.b16 %v416
      %v1235 = vunpack.c.l.b16 %v417
      %v1236 = vunpack.c.h.b16 %v417
      %v1237 = vunpack.c.l.b16 %v418
      %v1238 = vunpack.c.h.b16 %v418
      %v1239 = vpack.c.b16 %v1145, %v1143
      %v1240 = vpack.c.b16 %v1146, %v1144
      %v1241 = vpack.c.b16 %v1149, %v1147
      %v1242 = vpack.c.b16 %v1150, %v1148
      %v1243 = vpack.c.b16 %v1153, %v1151
      %v1244 = vpack.c.b16 %v1154, %v1152
      %v1245 = vpack.c.b16 %v1157, %v1155
      %v1246 = vpack.c.b16 %v1158, %v1156
      %v1247 = vpack.c.b16 %v1161, %v1159
      %v1248 = vpack.c.b16 %v1162, %v1160
      %v1249 = vpack.c.b16 %v1165, %v1163
      %v1250 = vpack.c.b16 %v1166, %v1164
      %v1251 = vpack.c.b16 %v1169, %v1167
      %v1252 = vpack.c.b16 %v1170, %v1168
      %v1253 = vpack.c.b16 %v1173, %v1171
      %v1254 = vpack.c.b16 %v1174, %v1172
      %v1255 = vpack.c.b16 %v1177, %v1175
      %v1256 = vpack.c.b16 %v1178, %v1176
      %v1257 = vpack.c.b16 %v1181, %v1179
      %v1258 = vpack.c.b16 %v1182, %v1180
      %v1259 = vpack.c.b16 %v1185, %v1183
      %v1260 = vpack.c.b16 %v1186, %v1184
      %v1261 = vpack.c.b16 %v1189, %v1187
      %v1262 = vpack.c.b16 %v1190, %v1188
      %v1263 = vpack.c.b16 %v1193, %v1191
      %v1264 = vpack.c.b16 %v1194, %v1192
      %v1265 = vpack.c.b16 %v1197, %v1195
      %v1266 = vpack.c.b16 %v1198, %v1196
      %v1267 = vpack.c.b16 %v1201, %v1199
      %v1268 = vpack.c.b16 %v1202, %v1200
      %v1269 = vpack.c.b16 %v1205, %v1203
      %v1270 = vpack.c.b16 %v1206, %v1204
      %v1271 = vpack.c.b16 %v1209, %v1207
      %v1272 = vpack.c.b16 %v1210, %v1208
      %v1273 = vpack.c.b16 %v1213, %v1211
      %v1274 = vpack.c.b16 %v1214, %v1212
      %v1275 = vpack.c.b16 %v1217, %v1215
      %v1276 = vpack.c.b16 %v1218, %v1216
      %v1277 = vpack.c.b16 %v1221, %v1219
      %v1278 = vpack.c.b16 %v1222, %v1220
      %v1279 = vpack.c.b16 %v1225, %v1223
      %v1280 = vpack.c.b16 %v1226, %v1224
      %v1281 = vpack.c.b16 %v1229, %v1227
      %v1282 = vpack.c.b16 %v1230, %v1228
      %v1283 = vpack.c.b16 %v1233, %v1231
      %v1284 = vpack.c.b16 %v1234, %v1232
      %v1285 = vpack.c.b16 %v1237, %v1235
      %v1286 = vpack.c.b16 %v1238, %v1236
      %1335 = vmatprep.subr.bf16.mxu0 %v1254
      %1336 = vmatpush1.bf16.msra.mxu0 %v1253
      %1337 = vmatprep.subr.bf16.mxu0 %v1252
      %1338 = vmatpush1.bf16.msra.mxu0 %v1251
      %1339 = vmatprep.subr.bf16.mxu0 %v1250
      %1340 = vmatpush1.bf16.msra.mxu0 %v1249
      %1341 = vmatprep.subr.bf16.mxu0 %v1248
      %1342 = vmatpush1.bf16.msra.mxu0 %v1247
      %1343 = vmatprep.subr.bf16.mxu0 %v1246
      %1344 = vmatpush1.bf16.msra.mxu0 %v1245
      %1345 = vmatprep.subr.bf16.mxu0 %v1244
      %1346 = vmatpush1.bf16.msra.mxu0 %v1243
      %1347 = vmatprep.subr.bf16.mxu0 %v1242
      %1348 = vmatpush1.bf16.msra.mxu0 %v1241
      %1349 = vmatprep.subr.bf16.mxu0 %v1240
      %1350 = vmatpush1.bf16.msra.mxu0 %v1239
      %1351 = vmatprep.subr.bf16.mxu0 %v1270
      %1352 = vmatpush2.bf16.msra.mxu0 %v1269
      %1353 = vmatprep.subr.bf16.mxu0 %v1268
      %1354 = vmatpush2.bf16.msra.mxu0 %v1267
      %1355 = vmatprep.subr.bf16.mxu0 %v1266
      %1356 = vmatpush2.bf16.msra.mxu0 %v1265
      %1357 = vmatprep.subr.bf16.mxu0 %v1264
      %1358 = vmatpush2.bf16.msra.mxu0 %v1263
      %1359 = vmatprep.subr.bf16.mxu0 %v1262
      %1360 = vmatpush2.bf16.msra.mxu0 %v1261
      %1361 = vmatprep.subr.bf16.mxu0 %v1260
      %1362 = vmatpush2.bf16.msra.mxu0 %v1259
      %1363 = vmatprep.subr.bf16.mxu0 %v1258
      %1364 = vmatpush2.bf16.msra.mxu0 %v1257
      %1365 = vmatprep.subr.bf16.mxu0 %v1256
      %1366 = vmatpush2.bf16.msra.mxu0 %v1255
      %1367 = vmatprep.mubr.bf16.mxu0 %v344
      %1368 = vmatmul.mubr.bf16.gmra.mxu0 %v343
      %v1369 = vpop.f32.mrf.mxu0
      %v1370 = vadd.f32 %v1017, %v1369
      %v1371 = vpop.f32.mrf.mxu0
      %v1372 = vadd.f32 %v1019, %v1371
      %v1373 = vpop.f32.mrf.mxu0
      %v1374 = vadd.f32 %v1021, %v1373
      %v1375 = vpop.f32.mrf.mxu0
      %v1376 = vadd.f32 %v1023, %v1375
      %1377 = vmatprep.mubr.bf16.mxu0 %v345
      %1378 = vmatmul.mubr.bf16.gmra.mxu0 %v344
      %v1379 = vpop.f32.mrf.mxu0
      %v1380 = vadd.f32 %v1027, %v1379
      %v1381 = vpop.f32.mrf.mxu0
      %v1382 = vadd.f32 %v1029, %v1381
      %v1383 = vpop.f32.mrf.mxu0
      %v1384 = vadd.f32 %v1031, %v1383
      %v1385 = vpop.f32.mrf.mxu0
      %v1386 = vadd.f32 %v1033, %v1385
      %1387 = vmatprep.mubr.bf16.mxu0 %v346
      %1388 = vmatmul.mubr.bf16.gmra.mxu0 %v345
      %v1389 = vpop.f32.mrf.mxu0
      %v1390 = vadd.f32 %v1037, %v1389
      %v1391 = vpop.f32.mrf.mxu0
      %v1392 = vadd.f32 %v1039, %v1391
      %v1393 = vpop.f32.mrf.mxu0
      %v1394 = vadd.f32 %v1041, %v1393
      %v1395 = vpop.f32.mrf.mxu0
      %v1396 = vadd.f32 %v1043, %v1395
      %1397 = vmatprep.mubr.bf16.mxu0 %v347
      %1398 = vmatmul.mubr.bf16.gmra.mxu0 %v346
      %v1399 = vpop.f32.mrf.mxu0
      %v1400 = vadd.f32 %v1047, %v1399
      %v1401 = vpop.f32.mrf.mxu0
      %v1402 = vadd.f32 %v1049, %v1401
      %v1403 = vpop.f32.mrf.mxu0
      %v1404 = vadd.f32 %v1051, %v1403
      %v1405 = vpop.f32.mrf.mxu0
      %v1406 = vadd.f32 %v1053, %v1405
      %1407 = vmatprep.mubr.bf16.mxu0 %v348
      %1408 = vmatmul.mubr.bf16.gmra.mxu0 %v347
      %v1409 = vpop.f32.mrf.mxu0
      %v1410 = vadd.f32 %v1057, %v1409
      %v1411 = vpop.f32.mrf.mxu0
      %v1412 = vadd.f32 %v1059, %v1411
      %v1413 = vpop.f32.mrf.mxu0
      %v1414 = vadd.f32 %v1061, %v1413
      %v1415 = vpop.f32.mrf.mxu0
      %v1416 = vadd.f32 %v1063, %v1415
      %1417 = vmatprep.mubr.bf16.mxu0 %v349
      %1418 = vmatmul.mubr.bf16.gmra.mxu0 %v348
      %v1419 = vpop.f32.mrf.mxu0
      %v1420 = vadd.f32 %v1067, %v1419
      %v1421 = vpop.f32.mrf.mxu0
      %v1422 = vadd.f32 %v1069, %v1421
      %v1423 = vpop.f32.mrf.mxu0
      %v1424 = vadd.f32 %v1071, %v1423
      %v1425 = vpop.f32.mrf.mxu0
      %v1426 = vadd.f32 %v1073, %v1425
      %1427 = vmatprep.mubr.bf16.mxu0 %v350
      %1428 = vmatmul.mubr.bf16.gmra.mxu0 %v349
      %v1429 = vpop.f32.mrf.mxu0
      %v1430 = vadd.f32 %v1077, %v1429
      %v1431 = vpop.f32.mrf.mxu0
      %v1432 = vadd.f32 %v1079, %v1431
      %v1433 = vpop.f32.mrf.mxu0
      %v1434 = vadd.f32 %v1081, %v1433
      %v1435 = vpop.f32.mrf.mxu0
      %v1436 = vadd.f32 %v1083, %v1435
      %1437 = vmatprep.mubr.bf16.mxu0 %v363
      %1438 = vmatmul.mubr.bf16.gmra.mxu0 %v350
      %v1439 = vpop.f32.mrf.mxu0
      %v1440 = vadd.f32 %v1087, %v1439
      %v1441 = vpop.f32.mrf.mxu0
      %v1442 = vadd.f32 %v1089, %v1441
      %v1443 = vpop.f32.mrf.mxu0
      %v1444 = vadd.f32 %v1091, %v1443
      %v1445 = vpop.f32.mrf.mxu0
      %v1446 = vadd.f32 %v1093, %v1445
      %1447 = vdwg.mxu0
      %1448 = vmatprep.subr.bf16.mxu0 %v1286
      %1449 = vmatpush1.bf16.msra.mxu0 %v1285
      %1450 = vmatprep.subr.bf16.mxu0 %v1284
      %1451 = vmatpush1.bf16.msra.mxu0 %v1283
      %1452 = vmatprep.subr.bf16.mxu0 %v1282
      %1453 = vmatpush1.bf16.msra.mxu0 %v1281
      %1454 = vmatprep.subr.bf16.mxu0 %v1280
      %1455 = vmatpush1.bf16.msra.mxu0 %v1279
      %1456 = vmatprep.subr.bf16.mxu0 %v1278
      %1457 = vmatpush1.bf16.msra.mxu0 %v1277
      %1458 = vmatprep.subr.bf16.mxu0 %v1276
      %1459 = vmatpush1.bf16.msra.mxu0 %v1275
      %1460 = vmatprep.subr.bf16.mxu0 %v1274
      %1461 = vmatpush1.bf16.msra.mxu0 %v1273
      %1462 = vmatprep.subr.bf16.mxu0 %v1272
      %1463 = vmatpush1.bf16.msra.mxu0 %v1271
      %1464 = vmatprep.subr.bf16.mxu0 0
      %1465 = vmatpush2.bf16.msra.mxu0 0
      %1466 = vmatprep.subr.bf16.mxu0 0
      %1467 = vmatpush2.bf16.msra.mxu0 0
      %1468 = vmatprep.subr.bf16.mxu0 0
      %1469 = vmatpush2.bf16.msra.mxu0 0
      %1470 = vmatprep.subr.bf16.mxu0 0
      %1471 = vmatpush2.bf16.msra.mxu0 0
      %1472 = vmatprep.subr.bf16.mxu0 0
      %1473 = vmatpush2.bf16.msra.mxu0 0
      %1474 = vmatprep.subr.bf16.mxu0 0
      %1475 = vmatpush2.bf16.msra.mxu0 0
      %1476 = vmatprep.subr.bf16.mxu0 0
      %1477 = vmatpush2.bf16.msra.mxu0 0
      %1478 = vmatprep.subr.bf16.mxu0 0
      %1479 = vmatpush2.bf16.msra.mxu0 0
      %1480 = vmatprep.mubr.bf16.mxu0 0
      %1481 = vmatmul.mubr.bf16.gmra.mxu0 %v345
      %v1482 = vpop.f32.mrf.mxu0
      %v1483 = vadd.f32 %v1370, %v1482
      %v1484 = vpop.f32.mrf.mxu0
      %v1485 = vadd.f32 %v1372, %v1484
      %v1486 = vpop.f32.mrf.mxu0
      %v1487 = vadd.f32 %v1374, %v1486
      %v1488 = vpop.f32.mrf.mxu0
      %v1489 = vadd.f32 %v1376, %v1488
      %1490 = vmatprep.mubr.bf16.mxu0 0
      %1491 = vmatmul.mubr.bf16.gmra.mxu0 %v346
      %v1492 = vpop.f32.mrf.mxu0
      %v1493 = vadd.f32 %v1380, %v1492
      %v1494 = vpop.f32.mrf.mxu0
      %v1495 = vadd.f32 %v1382, %v1494
      %v1496 = vpop.f32.mrf.mxu0
      %v1497 = vadd.f32 %v1384, %v1496
      %v1498 = vpop.f32.mrf.mxu0
      %v1499 = vadd.f32 %v1386, %v1498
      %1500 = vmatprep.mubr.bf16.mxu0 0
      %1501 = vmatmul.mubr.bf16.gmra.mxu0 %v347
      %v1502 = vpop.f32.mrf.mxu0
      %v1503 = vadd.f32 %v1390, %v1502
      %v1504 = vpop.f32.mrf.mxu0
      %v1505 = vadd.f32 %v1392, %v1504
      %v1506 = vpop.f32.mrf.mxu0
      %v1507 = vadd.f32 %v1394, %v1506
      %v1508 = vpop.f32.mrf.mxu0
      %v1509 = vadd.f32 %v1396, %v1508
      %1510 = vmatprep.mubr.bf16.mxu0 0
      %1511 = vmatmul.mubr.bf16.gmra.mxu0 %v348
      %v1512 = vpop.f32.mrf.mxu0
      %v1513 = vadd.f32 %v1400, %v1512
      %v1514 = vpop.f32.mrf.mxu0
      %v1515 = vadd.f32 %v1402, %v1514
      %v1516 = vpop.f32.mrf.mxu0
      %v1517 = vadd.f32 %v1404, %v1516
      %v1518 = vpop.f32.mrf.mxu0
      %v1519 = vadd.f32 %v1406, %v1518
      %1520 = vmatprep.mubr.bf16.mxu0 0
      %1521 = vmatmul.mubr.bf16.gmra.mxu0 %v349
      %v1522 = vpop.f32.mrf.mxu0
      %v1523 = vadd.f32 %v1410, %v1522
      %v1524 = vpop.f32.mrf.mxu0
      %v1525 = vadd.f32 %v1412, %v1524
      %v1526 = vpop.f32.mrf.mxu0
      %v1527 = vadd.f32 %v1414, %v1526
      %v1528 = vpop.f32.mrf.mxu0
      %v1529 = vadd.f32 %v1416, %v1528
      %1530 = vmatprep.mubr.bf16.mxu0 0
      %1531 = vmatmul.mubr.bf16.gmra.mxu0 %v350
      %v1532 = vpop.f32.mrf.mxu0
      %v1533 = vadd.f32 %v1420, %v1532
      %v1534 = vpop.f32.mrf.mxu0
      %v1535 = vadd.f32 %v1422, %v1534
      %v1536 = vpop.f32.mrf.mxu0
      %v1537 = vadd.f32 %v1424, %v1536
      %v1538 = vpop.f32.mrf.mxu0
      %v1539 = vadd.f32 %v1426, %v1538
      %1540 = vmatprep.mubr.bf16.mxu0 0
      %1541 = vmatmul.mubr.bf16.gmra.mxu0 %v363
      %v1542 = vpop.f32.mrf.mxu0
      %v1543 = vadd.f32 %v1430, %v1542
      %v1544 = vpop.f32.mrf.mxu0
      %v1545 = vadd.f32 %v1432, %v1544
      %v1546 = vpop.f32.mrf.mxu0
      %v1547 = vadd.f32 %v1434, %v1546
      %v1548 = vpop.f32.mrf.mxu0
      %v1549 = vadd.f32 %v1436, %v1548
      %1550 = vmatprep.mubr.bf16.mxu0 0
      %1551 = vmatmul.mubr.bf16.gmra.mxu0 %v369
      %v1552 = vpop.f32.mrf.mxu0
      %v1553 = vadd.f32 %v1440, %v1552
      %v1554 = vpop.f32.mrf.mxu0
      %v1555 = vadd.f32 %v1442, %v1554
      %v1556 = vpop.f32.mrf.mxu0
      %v1557 = vadd.f32 %v1444, %v1556
      %v1558 = vpop.f32.mrf.mxu0
      %v1559 = vadd.f32 %v1446, %v1558
      %1560 = vdwg.mxu0
      %vm1561 = vcmask 1046528
      %v1562 = vrot.slane %v343, 1
      %v1563 = vrot.slane %v435, 1
      %v1564 = vsel %vm1561, %v1562, %v1563
      %v1565 = vrot.slane %v344, 1
      %v1566 = vrot.slane %v436, 1
      %v1567 = vsel %vm1561, %v1565, %v1566
      %v1568 = vrot.slane %v345, 1
      %v1569 = vrot.slane %v437, 1
      %v1570 = vsel %vm1561, %v1568, %v1569
      %v1571 = vrot.slane %v346, 1
      %v1572 = vrot.slane %v438, 1
      %v1573 = vsel %vm1561, %v1571, %v1572
      %v1574 = vrot.slane %v347, 1
      %v1575 = vrot.slane %v439, 1
      %v1576 = vsel %vm1561, %v1574, %v1575
      %v1577 = vrot.slane %v348, 1
      %v1578 = vrot.slane %v440, 1
      %v1579 = vsel %vm1561, %v1577, %v1578
      %v1580 = vrot.slane %v349, 1
      %v1581 = vrot.slane %v441, 1
      %v1582 = vsel %vm1561, %v1580, %v1581
      %v1583 = vrot.slane %v350, 1
      %v1584 = vrot.slane %v442, 1
      %v1585 = vsel %vm1561, %v1583, %v1584
      %v1586 = vrot.slane %v363, 1
      %v1587 = vrot.slane %v445, 1
      %v1588 = vsel %vm1561, %v1586, %v1587
      %v1589 = vrot.slane %v369, 1
      %v1590 = vrot.slane %v448, 1
      %v1591 = vsel %vm1561, %v1589, %v1590
      %s1602 = scalar_lea.vmem %s1, 768
      %v1603 = vld [vmem:[%s1602] sm:$0xff]
      %v1604 = vld [vmem:[%s1602 + $0x8] sm:$0xff]
      %v1605 = vld [vmem:[%s1602 + $0x10] sm:$0xff]
      %v1606 = vld [vmem:[%s1602 + $0x18] sm:$0xff]
      %v1607 = vld [vmem:[%s1602 + $0x20] sm:$0xff]
      %v1608 = vld [vmem:[%s1602 + $0x28] sm:$0xff]
      %v1609 = vld [vmem:[%s1602 + $0x30] sm:$0xff]
      %v1610 = vld [vmem:[%s1602 + $0x38] sm:$0xff]
      %v1611 = vld [vmem:[%s1602 + $0x40] sm:$0xff]
      %v1612 = vld [vmem:[%s1602 + $0x48] sm:$0xff]
      %v1613 = vld [vmem:[%s1602 + $0x50] sm:$0xff]
      %v1614 = vld [vmem:[%s1602 + $0x58] sm:$0xff]
      %v1615 = vld [vmem:[%s1602 + $0x60] sm:$0xff]
      %v1616 = vld [vmem:[%s1602 + $0x68] sm:$0xff]
      %v1617 = vld [vmem:[%s1602 + $0x70] sm:$0xff]
      %v1618 = vld [vmem:[%s1602 + $0x78] sm:$0xff]
      %v1619 = vld [vmem:[%s1602 + $0x80] sm:$0xff]
      %v1620 = vld [vmem:[%s1602 + $0x88] sm:$0xff]
      %v1621 = vld [vmem:[%s1602 + $0x90] sm:$0xff]
      %v1622 = vld [vmem:[%s1602 + $0x98] sm:$0xff]
      %v1623 = vld [vmem:[%s1602 + $0xa0] sm:$0xff]
      %v1624 = vld [vmem:[%s1602 + $0xa8] sm:$0xff]
      %v1625 = vld [vmem:[%s1602 + $0xb0] sm:$0xff]
      %v1626 = vld [vmem:[%s1602 + $0xb8] sm:$0xff]
      %v1627 = vld [vmem:[%s1602 + $0xc0] sm:$0xff]
      %v1628 = vld [vmem:[%s1602 + $0xc8] sm:$0xff]
      %v1629 = vld [vmem:[%s1602 + $0xd0] sm:$0xff]
      %v1630 = vld [vmem:[%s1602 + $0xd8] sm:$0xff]
      %v1631 = vld [vmem:[%s1602 + $0xe0] sm:$0xff]
      %v1632 = vld [vmem:[%s1602 + $0xe8] sm:$0xff]
      %v1633 = vld [vmem:[%s1602 + $0xf0] sm:$0xff]
      %v1634 = vld [vmem:[%s1602 + $0xf8] sm:$0xff]
      %v1635 = vld [vmem:[%s1602 + $0x100] sm:$0xff]
      %v1636 = vld [vmem:[%s1602 + $0x108] sm:$0xff]
      %v1637 = vld [vmem:[%s1602 + $0x110] sm:$0xff]
      %v1638 = vld [vmem:[%s1602 + $0x118] sm:$0xff]
      %v1639 = vld [vmem:[%s1602 + $0x120] sm:$0xff]
      %v1640 = vld [vmem:[%s1602 + $0x128] sm:$0xff]
      %v1641 = vld [vmem:[%s1602 + $0x130] sm:$0xff]
      %v1642 = vld [vmem:[%s1602 + $0x138] sm:$0xff]
      %v1643 = vld [vmem:[%s1602 + $0x140] sm:$0xff]
      %v1644 = vld [vmem:[%s1602 + $0x148] sm:$0xff]
      %v1645 = vld [vmem:[%s1602 + $0x150] sm:$0xff]
      %v1646 = vld [vmem:[%s1602 + $0x158] sm:$0xff]
      %v1647 = vld [vmem:[%s1602 + $0x160] sm:$0xff]
      %v1648 = vld [vmem:[%s1602 + $0x168] sm:$0xff]
      %v1649 = vld [vmem:[%s1602 + $0x170] sm:$0xff]
      %v1650 = vld [vmem:[%s1602 + $0x178] sm:$0xff]
      %v1699 = vunpack.c.l.b16 %v1603
      %v1700 = vunpack.c.h.b16 %v1603
      %v1701 = vunpack.c.l.b16 %v1604
      %v1702 = vunpack.c.h.b16 %v1604
      %v1703 = vunpack.c.l.b16 %v1605
      %v1704 = vunpack.c.h.b16 %v1605
      %v1705 = vunpack.c.l.b16 %v1606
      %v1706 = vunpack.c.h.b16 %v1606
      %v1707 = vunpack.c.l.b16 %v1607
      %v1708 = vunpack.c.h.b16 %v1607
      %v1709 = vunpack.c.l.b16 %v1608
      %v1710 = vunpack.c.h.b16 %v1608
      %v1711 = vunpack.c.l.b16 %v1609
      %v1712 = vunpack.c.h.b16 %v1609
      %v1713 = vunpack.c.l.b16 %v1610
      %v1714 = vunpack.c.h.b16 %v1610
      %v1715 = vunpack.c.l.b16 %v1611
      %v1716 = vunpack.c.h.b16 %v1611
      %v1717 = vunpack.c.l.b16 %v1612
      %v1718 = vunpack.c.h.b16 %v1612
      %v1719 = vunpack.c.l.b16 %v1613
      %v1720 = vunpack.c.h.b16 %v1613
      %v1721 = vunpack.c.l.b16 %v1614
      %v1722 = vunpack.c.h.b16 %v1614
      %v1723 = vunpack.c.l.b16 %v1615
      %v1724 = vunpack.c.h.b16 %v1615
      %v1725 = vunpack.c.l.b16 %v1616
      %v1726 = vunpack.c.h.b16 %v1616
      %v1727 = vunpack.c.l.b16 %v1617
      %v1728 = vunpack.c.h.b16 %v1617
      %v1729 = vunpack.c.l.b16 %v1618
      %v1730 = vunpack.c.h.b16 %v1618
      %v1731 = vunpack.c.l.b16 %v1619
      %v1732 = vunpack.c.h.b16 %v1619
      %v1733 = vunpack.c.l.b16 %v1620
      %v1734 = vunpack.c.h.b16 %v1620
      %v1735 = vunpack.c.l.b16 %v1621
      %v1736 = vunpack.c.h.b16 %v1621
      %v1737 = vunpack.c.l.b16 %v1622
      %v1738 = vunpack.c.h.b16 %v1622
      %v1739 = vunpack.c.l.b16 %v1623
      %v1740 = vunpack.c.h.b16 %v1623
      %v1741 = vunpack.c.l.b16 %v1624
      %v1742 = vunpack.c.h.b16 %v1624
      %v1743 = vunpack.c.l.b16 %v1625
      %v1744 = vunpack.c.h.b16 %v1625
      %v1745 = vunpack.c.l.b16 %v1626
      %v1746 = vunpack.c.h.b16 %v1626
      %v1747 = vunpack.c.l.b16 %v1627
      %v1748 = vunpack.c.h.b16 %v1627
      %v1749 = vunpack.c.l.b16 %v1628
      %v1750 = vunpack.c.h.b16 %v1628
      %v1751 = vunpack.c.l.b16 %v1629
      %v1752 = vunpack.c.h.b16 %v1629
      %v1753 = vunpack.c.l.b16 %v1630
      %v1754 = vunpack.c.h.b16 %v1630
      %v1755 = vunpack.c.l.b16 %v1631
      %v1756 = vunpack.c.h.b16 %v1631
      %v1757 = vunpack.c.l.b16 %v1632
      %v1758 = vunpack.c.h.b16 %v1632
      %v1759 = vunpack.c.l.b16 %v1633
      %v1760 = vunpack.c.h.b16 %v1633
      %v1761 = vunpack.c.l.b16 %v1634
      %v1762 = vunpack.c.h.b16 %v1634
      %v1763 = vunpack.c.l.b16 %v1635
      %v1764 = vunpack.c.h.b16 %v1635
      %v1765 = vunpack.c.l.b16 %v1636
      %v1766 = vunpack.c.h.b16 %v1636
      %v1767 = vunpack.c.l.b16 %v1637
      %v1768 = vunpack.c.h.b16 %v1637
      %v1769 = vunpack.c.l.b16 %v1638
      %v1770 = vunpack.c.h.b16 %v1638
      %v1771 = vunpack.c.l.b16 %v1639
      %v1772 = vunpack.c.h.b16 %v1639
      %v1773 = vunpack.c.l.b16 %v1640
      %v1774 = vunpack.c.h.b16 %v1640
      %v1775 = vunpack.c.l.b16 %v1641
      %v1776 = vunpack.c.h.b16 %v1641
      %v1777 = vunpack.c.l.b16 %v1642
      %v1778 = vunpack.c.h.b16 %v1642
      %v1779 = vunpack.c.l.b16 %v1643
      %v1780 = vunpack.c.h.b16 %v1643
      %v1781 = vunpack.c.l.b16 %v1644
      %v1782 = vunpack.c.h.b16 %v1644
      %v1783 = vunpack.c.l.b16 %v1645
      %v1784 = vunpack.c.h.b16 %v1645
      %v1785 = vunpack.c.l.b16 %v1646
      %v1786 = vunpack.c.h.b16 %v1646
      %v1787 = vunpack.c.l.b16 %v1647
      %v1788 = vunpack.c.h.b16 %v1647
      %v1789 = vunpack.c.l.b16 %v1648
      %v1790 = vunpack.c.h.b16 %v1648
      %v1791 = vunpack.c.l.b16 %v1649
      %v1792 = vunpack.c.h.b16 %v1649
      %v1793 = vunpack.c.l.b16 %v1650
      %v1794 = vunpack.c.h.b16 %v1650
      %v1795 = vpack.c.b16 %v1701, %v1699
      %v1796 = vpack.c.b16 %v1702, %v1700
      %v1797 = vpack.c.b16 %v1705, %v1703
      %v1798 = vpack.c.b16 %v1706, %v1704
      %v1799 = vpack.c.b16 %v1709, %v1707
      %v1800 = vpack.c.b16 %v1710, %v1708
      %v1801 = vpack.c.b16 %v1713, %v1711
      %v1802 = vpack.c.b16 %v1714, %v1712
      %v1803 = vpack.c.b16 %v1717, %v1715
      %v1804 = vpack.c.b16 %v1718, %v1716
      %v1805 = vpack.c.b16 %v1721, %v1719
      %v1806 = vpack.c.b16 %v1722, %v1720
      %v1807 = vpack.c.b16 %v1725, %v1723
      %v1808 = vpack.c.b16 %v1726, %v1724
      %v1809 = vpack.c.b16 %v1729, %v1727
      %v1810 = vpack.c.b16 %v1730, %v1728
      %v1811 = vpack.c.b16 %v1733, %v1731
      %v1812 = vpack.c.b16 %v1734, %v1732
      %v1813 = vpack.c.b16 %v1737, %v1735
      %v1814 = vpack.c.b16 %v1738, %v1736
      %v1815 = vpack.c.b16 %v1741, %v1739
      %v1816 = vpack.c.b16 %v1742, %v1740
      %v1817 = vpack.c.b16 %v1745, %v1743
      %v1818 = vpack.c.b16 %v1746, %v1744
      %v1819 = vpack.c.b16 %v1749, %v1747
      %v1820 = vpack.c.b16 %v1750, %v1748
      %v1821 = vpack.c.b16 %v1753, %v1751
      %v1822 = vpack.c.b16 %v1754, %v1752
      %v1823 = vpack.c.b16 %v1757, %v1755
      %v1824 = vpack.c.b16 %v1758, %v1756
      %v1825 = vpack.c.b16 %v1761, %v1759
      %v1826 = vpack.c.b16 %v1762, %v1760
      %v1827 = vpack.c.b16 %v1765, %v1763
      %v1828 = vpack.c.b16 %v1766, %v1764
      %v1829 = vpack.c.b16 %v1769, %v1767
      %v1830 = vpack.c.b16 %v1770, %v1768
      %v1831 = vpack.c.b16 %v1773, %v1771
      %v1832 = vpack.c.b16 %v1774, %v1772
      %v1833 = vpack.c.b16 %v1777, %v1775
      %v1834 = vpack.c.b16 %v1778, %v1776
      %v1835 = vpack.c.b16 %v1781, %v1779
      %v1836 = vpack.c.b16 %v1782, %v1780
      %v1837 = vpack.c.b16 %v1785, %v1783
      %v1838 = vpack.c.b16 %v1786, %v1784
      %v1839 = vpack.c.b16 %v1789, %v1787
      %v1840 = vpack.c.b16 %v1790, %v1788
      %v1841 = vpack.c.b16 %v1793, %v1791
      %v1842 = vpack.c.b16 %v1794, %v1792
      %1891 = vmatprep.subr.bf16.mxu0 %v1810
      %1892 = vmatpush1.bf16.msra.mxu0 %v1809
      %1893 = vmatprep.subr.bf16.mxu0 %v1808
      %1894 = vmatpush1.bf16.msra.mxu0 %v1807
      %1895 = vmatprep.subr.bf16.mxu0 %v1806
      %1896 = vmatpush1.bf16.msra.mxu0 %v1805
      %1897 = vmatprep.subr.bf16.mxu0 %v1804
      %1898 = vmatpush1.bf16.msra.mxu0 %v1803
      %1899 = vmatprep.subr.bf16.mxu0 %v1802
      %1900 = vmatpush1.bf16.msra.mxu0 %v1801
      %1901 = vmatprep.subr.bf16.mxu0 %v1800
      %1902 = vmatpush1.bf16.msra.mxu0 %v1799
      %1903 = vmatprep.subr.bf16.mxu0 %v1798
      %1904 = vmatpush1.bf16.msra.mxu0 %v1797
      %1905 = vmatprep.subr.bf16.mxu0 %v1796
      %1906 = vmatpush1.bf16.msra.mxu0 %v1795
      %1907 = vmatprep.subr.bf16.mxu0 %v1826
      %1908 = vmatpush2.bf16.msra.mxu0 %v1825
      %1909 = vmatprep.subr.bf16.mxu0 %v1824
      %1910 = vmatpush2.bf16.msra.mxu0 %v1823
      %1911 = vmatprep.subr.bf16.mxu0 %v1822
      %1912 = vmatpush2.bf16.msra.mxu0 %v1821
      %1913 = vmatprep.subr.bf16.mxu0 %v1820
      %1914 = vmatpush2.bf16.msra.mxu0 %v1819
      %1915 = vmatprep.subr.bf16.mxu0 %v1818
      %1916 = vmatpush2.bf16.msra.mxu0 %v1817
      %1917 = vmatprep.subr.bf16.mxu0 %v1816
      %1918 = vmatpush2.bf16.msra.mxu0 %v1815
      %1919 = vmatprep.subr.bf16.mxu0 %v1814
      %1920 = vmatpush2.bf16.msra.mxu0 %v1813
      %1921 = vmatprep.subr.bf16.mxu0 %v1812
      %1922 = vmatpush2.bf16.msra.mxu0 %v1811
      %1923 = vmatprep.mubr.bf16.mxu0 %v1567
      %1924 = vmatmul.mubr.bf16.gmra.mxu0 %v1564
      %v1925 = vpop.f32.mrf.mxu0
      %v1926 = vadd.f32 0.0, %v1925
      %v1927 = vpop.f32.mrf.mxu0
      %v1928 = vadd.f32 0.0, %v1927
      %v1929 = vpop.f32.mrf.mxu0
      %v1930 = vadd.f32 0.0, %v1929
      %v1931 = vpop.f32.mrf.mxu0
      %v1932 = vadd.f32 0.0, %v1931
      %1933 = vmatprep.mubr.bf16.mxu0 %v1570
      %1934 = vmatmul.mubr.bf16.gmra.mxu0 %v1567
      %v1935 = vpop.f32.mrf.mxu0
      %v1936 = vadd.f32 0.0, %v1935
      %v1937 = vpop.f32.mrf.mxu0
      %v1938 = vadd.f32 0.0, %v1937
      %v1939 = vpop.f32.mrf.mxu0
      %v1940 = vadd.f32 0.0, %v1939
      %v1941 = vpop.f32.mrf.mxu0
      %v1942 = vadd.f32 0.0, %v1941
      %1943 = vmatprep.mubr.bf16.mxu0 %v1573
      %1944 = vmatmul.mubr.bf16.gmra.mxu0 %v1570
      %v1945 = vpop.f32.mrf.mxu0
      %v1946 = vadd.f32 0.0, %v1945
      %v1947 = vpop.f32.mrf.mxu0
      %v1948 = vadd.f32 0.0, %v1947
      %v1949 = vpop.f32.mrf.mxu0
      %v1950 = vadd.f32 0.0, %v1949
      %v1951 = vpop.f32.mrf.mxu0
      %v1952 = vadd.f32 0.0, %v1951
      %1953 = vmatprep.mubr.bf16.mxu0 %v1576
      %1954 = vmatmul.mubr.bf16.gmra.mxu0 %v1573
      %v1955 = vpop.f32.mrf.mxu0
      %v1956 = vadd.f32 0.0, %v1955
      %v1957 = vpop.f32.mrf.mxu0
      %v1958 = vadd.f32 0.0, %v1957
      %v1959 = vpop.f32.mrf.mxu0
      %v1960 = vadd.f32 0.0, %v1959
      %v1961 = vpop.f32.mrf.mxu0
      %v1962 = vadd.f32 0.0, %v1961
      %1963 = vmatprep.mubr.bf16.mxu0 %v1579
      %1964 = vmatmul.mubr.bf16.gmra.mxu0 %v1576
      %v1965 = vpop.f32.mrf.mxu0
      %v1966 = vadd.f32 0.0, %v1965
      %v1967 = vpop.f32.mrf.mxu0
      %v1968 = vadd.f32 0.0, %v1967
      %v1969 = vpop.f32.mrf.mxu0
      %v1970 = vadd.f32 0.0, %v1969
      %v1971 = vpop.f32.mrf.mxu0
      %v1972 = vadd.f32 0.0, %v1971
      %1973 = vmatprep.mubr.bf16.mxu0 %v1582
      %1974 = vmatmul.mubr.bf16.gmra.mxu0 %v1579
      %v1975 = vpop.f32.mrf.mxu0
      %v1976 = vadd.f32 0.0, %v1975
      %v1977 = vpop.f32.mrf.mxu0
      %v1978 = vadd.f32 0.0, %v1977
      %v1979 = vpop.f32.mrf.mxu0
      %v1980 = vadd.f32 0.0, %v1979
      %v1981 = vpop.f32.mrf.mxu0
      %v1982 = vadd.f32 0.0, %v1981
      %1983 = vmatprep.mubr.bf16.mxu0 %v1585
      %1984 = vmatmul.mubr.bf16.gmra.mxu0 %v1582
      %v1985 = vpop.f32.mrf.mxu0
      %v1986 = vadd.f32 0.0, %v1985
      %v1987 = vpop.f32.mrf.mxu0
      %v1988 = vadd.f32 0.0, %v1987
      %v1989 = vpop.f32.mrf.mxu0
      %v1990 = vadd.f32 0.0, %v1989
      %v1991 = vpop.f32.mrf.mxu0
      %v1992 = vadd.f32 0.0, %v1991
      %1993 = vmatprep.mubr.bf16.mxu0 %v1588
      %1994 = vmatmul.mubr.bf16.gmra.mxu0 %v1585
      %v1995 = vpop.f32.mrf.mxu0
      %v1996 = vadd.f32 0.0, %v1995
      %v1997 = vpop.f32.mrf.mxu0
      %v1998 = vadd.f32 0.0, %v1997
      %v1999 = vpop.f32.mrf.mxu0
      %v2000 = vadd.f32 0.0, %v1999
      %v2001 = vpop.f32.mrf.mxu0
      %v2002 = vadd.f32 0.0, %v2001
      %2003 = vdwg.mxu0
      %2004 = vmatprep.subr.bf16.mxu0 %v1842
      %2005 = vmatpush1.bf16.msra.mxu0 %v1841
      %2006 = vmatprep.subr.bf16.mxu0 %v1840
      %2007 = vmatpush1.bf16.msra.mxu0 %v1839
      %2008 = vmatprep.subr.bf16.mxu0 %v1838
      %2009 = vmatpush1.bf16.msra.mxu0 %v1837
      %2010 = vmatprep.subr.bf16.mxu0 %v1836
      %2011 = vmatpush1.bf16.msra.mxu0 %v1835
      %2012 = vmatprep.subr.bf16.mxu0 %v1834
      %2013 = vmatpush1.bf16.msra.mxu0 %v1833
      %2014 = vmatprep.subr.bf16.mxu0 %v1832
      %2015 = vmatpush1.bf16.msra.mxu0 %v1831
      %2016 = vmatprep.subr.bf16.mxu0 %v1830
      %2017 = vmatpush1.bf16.msra.mxu0 %v1829
      %2018 = vmatprep.subr.bf16.mxu0 %v1828
      %2019 = vmatpush1.bf16.msra.mxu0 %v1827
      %2020 = vmatprep.subr.bf16.mxu0 0
      %2021 = vmatpush2.bf16.msra.mxu0 0
      %2022 = vmatprep.subr.bf16.mxu0 0
      %2023 = vmatpush2.bf16.msra.mxu0 0
      %2024 = vmatprep.subr.bf16.mxu0 0
      %2025 = vmatpush2.bf16.msra.mxu0 0
      %2026 = vmatprep.subr.bf16.mxu0 0
      %2027 = vmatpush2.bf16.msra.mxu0 0
      %2028 = vmatprep.subr.bf16.mxu0 0
      %2029 = vmatpush2.bf16.msra.mxu0 0
      %2030 = vmatprep.subr.bf16.mxu0 0
      %2031 = vmatpush2.bf16.msra.mxu0 0
      %2032 = vmatprep.subr.bf16.mxu0 0
      %2033 = vmatpush2.bf16.msra.mxu0 0
      %2034 = vmatprep.subr.bf16.mxu0 0
      %2035 = vmatpush2.bf16.msra.mxu0 0
      %2036 = vmatprep.mubr.bf16.mxu0 0
      %2037 = vmatmul.mubr.bf16.gmra.mxu0 %v1570
      %v2038 = vpop.f32.mrf.mxu0
      %v2039 = vadd.f32 %v1926, %v2038
      %v2040 = vpop.f32.mrf.mxu0
      %v2041 = vadd.f32 %v1928, %v2040
      %v2042 = vpop.f32.mrf.mxu0
      %v2043 = vadd.f32 %v1930, %v2042
      %v2044 = vpop.f32.mrf.mxu0
      %v2045 = vadd.f32 %v1932, %v2044
      %2046 = vmatprep.mubr.bf16.mxu0 0
      %2047 = vmatmul.mubr.bf16.gmra.mxu0 %v1573
      %v2048 = vpop.f32.mrf.mxu0
      %v2049 = vadd.f32 %v1936, %v2048
      %v2050 = vpop.f32.mrf.mxu0
      %v2051 = vadd.f32 %v1938, %v2050
      %v2052 = vpop.f32.mrf.mxu0
      %v2053 = vadd.f32 %v1940, %v2052
      %v2054 = vpop.f32.mrf.mxu0
      %v2055 = vadd.f32 %v1942, %v2054
      %2056 = vmatprep.mubr.bf16.mxu0 0
      %2057 = vmatmul.mubr.bf16.gmra.mxu0 %v1576
      %v2058 = vpop.f32.mrf.mxu0
      %v2059 = vadd.f32 %v1946, %v2058
      %v2060 = vpop.f32.mrf.mxu0
      %v2061 = vadd.f32 %v1948, %v2060
      %v2062 = vpop.f32.mrf.mxu0
      %v2063 = vadd.f32 %v1950, %v2062
      %v2064 = vpop.f32.mrf.mxu0
      %v2065 = vadd.f32 %v1952, %v2064
      %2066 = vmatprep.mubr.bf16.mxu0 0
      %2067 = vmatmul.mubr.bf16.gmra.mxu0 %v1579
      %v2068 = vpop.f32.mrf.mxu0
      %v2069 = vadd.f32 %v1956, %v2068
      %v2070 = vpop.f32.mrf.mxu0
      %v2071 = vadd.f32 %v1958, %v2070
      %v2072 = vpop.f32.mrf.mxu0
      %v2073 = vadd.f32 %v1960, %v2072
      %v2074 = vpop.f32.mrf.mxu0
      %v2075 = vadd.f32 %v1962, %v2074
      %2076 = vmatprep.mubr.bf16.mxu0 0
      %2077 = vmatmul.mubr.bf16.gmra.mxu0 %v1582
      %v2078 = vpop.f32.mrf.mxu0
      %v2079 = vadd.f32 %v1966, %v2078
      %v2080 = vpop.f32.mrf.mxu0
      %v2081 = vadd.f32 %v1968, %v2080
      %v2082 = vpop.f32.mrf.mxu0
      %v2083 = vadd.f32 %v1970, %v2082
      %v2084 = vpop.f32.mrf.mxu0
      %v2085 = vadd.f32 %v1972, %v2084
      %2086 = vmatprep.mubr.bf16.mxu0 0
      %2087 = vmatmul.mubr.bf16.gmra.mxu0 %v1585
      %v2088 = vpop.f32.mrf.mxu0
      %v2089 = vadd.f32 %v1976, %v2088
      %v2090 = vpop.f32.mrf.mxu0
      %v2091 = vadd.f32 %v1978, %v2090
      %v2092 = vpop.f32.mrf.mxu0
      %v2093 = vadd.f32 %v1980, %v2092
      %v2094 = vpop.f32.mrf.mxu0
      %v2095 = vadd.f32 %v1982, %v2094
      %2096 = vmatprep.mubr.bf16.mxu0 0
      %2097 = vmatmul.mubr.bf16.gmra.mxu0 %v1588
      %v2098 = vpop.f32.mrf.mxu0
      %v2099 = vadd.f32 %v1986, %v2098
      %v2100 = vpop.f32.mrf.mxu0
      %v2101 = vadd.f32 %v1988, %v2100
      %v2102 = vpop.f32.mrf.mxu0
      %v2103 = vadd.f32 %v1990, %v2102
      %v2104 = vpop.f32.mrf.mxu0
      %v2105 = vadd.f32 %v1992, %v2104
      %2106 = vmatprep.mubr.bf16.mxu0 0
      %2107 = vmatmul.mubr.bf16.gmra.mxu0 %v1591
      %v2108 = vpop.f32.mrf.mxu0
      %v2109 = vadd.f32 %v1996, %v2108
      %v2110 = vpop.f32.mrf.mxu0
      %v2111 = vadd.f32 %v1998, %v2110
      %v2112 = vpop.f32.mrf.mxu0
      %v2113 = vadd.f32 %v2000, %v2112
      %v2114 = vpop.f32.mrf.mxu0
      %v2115 = vadd.f32 %v2002, %v2114
      %2116 = vdwg.mxu0
      %v2117 = vadd.f32 %v1483, %v2039
      %v2118 = vadd.f32 %v1485, %v2041
      %v2119 = vadd.f32 %v1487, %v2043
      %v2120 = vadd.f32 %v1489, %v2045
      %v2121 = vadd.f32 %v1493, %v2049
      %v2122 = vadd.f32 %v1495, %v2051
      %v2123 = vadd.f32 %v1497, %v2053
      %v2124 = vadd.f32 %v1499, %v2055
      %v2125 = vadd.f32 %v1503, %v2059
      %v2126 = vadd.f32 %v1505, %v2061
      %v2127 = vadd.f32 %v1507, %v2063
      %v2128 = vadd.f32 %v1509, %v2065
      %v2129 = vadd.f32 %v1513, %v2069
      %v2130 = vadd.f32 %v1515, %v2071
      %v2131 = vadd.f32 %v1517, %v2073
      %v2132 = vadd.f32 %v1519, %v2075
      %v2133 = vadd.f32 %v1523, %v2079
      %v2134 = vadd.f32 %v1525, %v2081
      %v2135 = vadd.f32 %v1527, %v2083
      %v2136 = vadd.f32 %v1529, %v2085
      %v2137 = vadd.f32 %v1533, %v2089
      %v2138 = vadd.f32 %v1535, %v2091
      %v2139 = vadd.f32 %v1537, %v2093
      %v2140 = vadd.f32 %v1539, %v2095
      %v2141 = vadd.f32 %v1543, %v2099
      %v2142 = vadd.f32 %v1545, %v2101
      %v2143 = vadd.f32 %v1547, %v2103
      %v2144 = vadd.f32 %v1549, %v2105
      %v2145 = vadd.f32 %v1553, %v2109
      %v2146 = vadd.f32 %v1555, %v2111
      %v2147 = vadd.f32 %v1557, %v2113
      %v2148 = vadd.f32 %v1559, %v2115
      %v2149 = vld [vmem:[%s2] sm:$0x3]
      %v2151 = vlaneseq
      %v2152 = vshrl.u32 %v2151, 7
      %v2153 = vsub.s32 0, %v2152
      %v2154 = vrot.slane %v2149, %v2153
      %v2155 = vlaneseq
      %v2156 = vshrl.u32 %v2155, 7
      %v2157 = vsub.s32 1, %v2156
      %v2158 = vrot.slane %v2149, %v2157
      %v2161 = vmul.f32 %v2117, %v2154
      %v2162 = vmul.f32 %v2118, %v2158
      %v2163 = vmul.f32 %v2119, %v2154
      %v2164 = vmul.f32 %v2120, %v2158
      %v2165 = vmul.f32 %v2121, %v2154
      %v2166 = vmul.f32 %v2122, %v2158
      %v2167 = vmul.f32 %v2123, %v2154
      %v2168 = vmul.f32 %v2124, %v2158
      %v2169 = vmul.f32 %v2125, %v2154
      %v2170 = vmul.f32 %v2126, %v2158
      %v2171 = vmul.f32 %v2127, %v2154
      %v2172 = vmul.f32 %v2128, %v2158
      %v2173 = vmul.f32 %v2129, %v2154
      %v2174 = vmul.f32 %v2130, %v2158
      %v2175 = vmul.f32 %v2131, %v2154
      %v2176 = vmul.f32 %v2132, %v2158
      %v2177 = vmul.f32 %v2133, %v2154
      %v2178 = vmul.f32 %v2134, %v2158
      %v2179 = vmul.f32 %v2135, %v2154
      %v2180 = vmul.f32 %v2136, %v2158
      %v2181 = vmul.f32 %v2137, %v2154
      %v2182 = vmul.f32 %v2138, %v2158
      %v2183 = vmul.f32 %v2139, %v2154
      %v2184 = vmul.f32 %v2140, %v2158
      %v2185 = vmul.f32 %v2141, %v2154
      %v2186 = vmul.f32 %v2142, %v2158
      %v2187 = vmul.f32 %v2143, %v2154
      %v2188 = vmul.f32 %v2144, %v2158
      %v2189 = vmul.f32 %v2145, %v2154
      %v2190 = vmul.f32 %v2146, %v2158
      %v2191 = vmul.f32 %v2147, %v2154
      %v2192 = vmul.f32 %v2148, %v2158
      %v2193 = vld [vmem:[%s3] sm:$0x3]
      %v2195 = vlaneseq
      %v2196 = vshrl.u32 %v2195, 7
      %v2197 = vsub.s32 0, %v2196
      %v2198 = vrot.slane %v2193, %v2197
      %v2199 = vlaneseq
      %v2200 = vshrl.u32 %v2199, 7
      %v2201 = vsub.s32 1, %v2200
      %v2202 = vrot.slane %v2193, %v2201
      %v2205 = vadd.f32 %v2161, %v2198
      %v2206 = vadd.f32 %v2162, %v2202
      %v2207 = vadd.f32 %v2163, %v2198
      %v2208 = vadd.f32 %v2164, %v2202
      %v2209 = vadd.f32 %v2165, %v2198
      %v2210 = vadd.f32 %v2166, %v2202
      %v2211 = vadd.f32 %v2167, %v2198
      %v2212 = vadd.f32 %v2168, %v2202
      %v2213 = vadd.f32 %v2169, %v2198
      %v2214 = vadd.f32 %v2170, %v2202
      %v2215 = vadd.f32 %v2171, %v2198
      %v2216 = vadd.f32 %v2172, %v2202
      %v2217 = vadd.f32 %v2173, %v2198
      %v2218 = vadd.f32 %v2174, %v2202
      %v2219 = vadd.f32 %v2175, %v2198
      %v2220 = vadd.f32 %v2176, %v2202
      %v2221 = vadd.f32 %v2177, %v2198
      %v2222 = vadd.f32 %v2178, %v2202
      %v2223 = vadd.f32 %v2179, %v2198
      %v2224 = vadd.f32 %v2180, %v2202
      %v2225 = vadd.f32 %v2181, %v2198
      %v2226 = vadd.f32 %v2182, %v2202
      %v2227 = vadd.f32 %v2183, %v2198
      %v2228 = vadd.f32 %v2184, %v2202
      %v2229 = vadd.f32 %v2185, %v2198
      %v2230 = vadd.f32 %v2186, %v2202
      %v2231 = vadd.f32 %v2187, %v2198
      %v2232 = vadd.f32 %v2188, %v2202
      %v2233 = vadd.f32 %v2189, %v2198
      %v2234 = vadd.f32 %v2190, %v2202
      %v2235 = vadd.f32 %v2191, %v2198
      %v2236 = vadd.f32 %v2192, %v2202
      %v2237 = vmax.f32 %v2205, 0.0
      %v2238 = vmax.f32 %v2206, 0.0
      %v2239 = vmax.f32 %v2207, 0.0
      %v2240 = vmax.f32 %v2208, 0.0
      %v2241 = vmax.f32 %v2209, 0.0
      %v2242 = vmax.f32 %v2210, 0.0
      %v2243 = vmax.f32 %v2211, 0.0
      %v2244 = vmax.f32 %v2212, 0.0
      %v2245 = vmax.f32 %v2213, 0.0
      %v2246 = vmax.f32 %v2214, 0.0
      %v2247 = vmax.f32 %v2215, 0.0
      %v2248 = vmax.f32 %v2216, 0.0
      %v2249 = vmax.f32 %v2217, 0.0
      %v2250 = vmax.f32 %v2218, 0.0
      %v2251 = vmax.f32 %v2219, 0.0
      %v2252 = vmax.f32 %v2220, 0.0
      %v2253 = vmax.f32 %v2221, 0.0
      %v2254 = vmax.f32 %v2222, 0.0
      %v2255 = vmax.f32 %v2223, 0.0
      %v2256 = vmax.f32 %v2224, 0.0
      %v2257 = vmax.f32 %v2225, 0.0
      %v2258 = vmax.f32 %v2226, 0.0
      %v2259 = vmax.f32 %v2227, 0.0
      %v2260 = vmax.f32 %v2228, 0.0
      %v2261 = vmax.f32 %v2229, 0.0
      %v2262 = vmax.f32 %v2230, 0.0
      %v2263 = vmax.f32 %v2231, 0.0
      %v2264 = vmax.f32 %v2232, 0.0
      %v2265 = vmax.f32 %v2233, 0.0
      %v2266 = vmax.f32 %v2234, 0.0
      %v2267 = vmax.f32 %v2235, 0.0
      %v2268 = vmax.f32 %v2236, 0.0
      %vm2269 = vcmask 785408
      %2270 = vst.msk [vmem:[%s263] sm:$0xff] %vm2269, %v2237
      %2271 = vst.msk [vmem:[%s263 + $0x8] sm:$0xff] %vm2269, %v2239
      %2272 = vst.msk [vmem:[%s263 + $0x10] sm:$0xff] %vm2269, %v2241
      %2273 = vst.msk [vmem:[%s263 + $0x18] sm:$0xff] %vm2269, %v2243
      %2274 = vst.msk [vmem:[%s263 + $0x20] sm:$0xff] %vm2269, %v2245
      %2275 = vst.msk [vmem:[%s263 + $0x28] sm:$0xff] %vm2269, %v2247
      %2276 = vst.msk [vmem:[%s263 + $0x30] sm:$0xff] %vm2269, %v2249
      %2277 = vst.msk [vmem:[%s263 + $0x38] sm:$0xff] %vm2269, %v2251
      %2278 = vst.msk [vmem:[%s263 + $0x40] sm:$0xff] %vm2269, %v2253
      %2279 = vst.msk [vmem:[%s263 + $0x48] sm:$0xff] %vm2269, %v2255
      %2280 = vst.msk [vmem:[%s263 + $0x50] sm:$0xff] %vm2269, %v2257
      %2281 = vst.msk [vmem:[%s263 + $0x58] sm:$0xff] %vm2269, %v2259
      %2282 = vst.msk [vmem:[%s263 + $0x60] sm:$0xff] %vm2269, %v2261
      %2283 = vst.msk [vmem:[%s263 + $0x68] sm:$0xff] %vm2269, %v2263
      %2284 = vst.msk [vmem:[%s263 + $0x70] sm:$0xff] %vm2269, %v2265
      %2285 = vst.msk [vmem:[%s263 + $0x78] sm:$0xff] %vm2269, %v2267
      %v2286 = vpack.c.bf16 %v2240, %v2238
      %v2287 = vpack.c.bf16 %v2244, %v2242
      %v2288 = vpack.c.bf16 %v2248, %v2246
      %v2289 = vpack.c.bf16 %v2252, %v2250
      %v2290 = vpack.c.bf16 %v2256, %v2254
      %v2291 = vpack.c.bf16 %v2260, %v2258
      %v2292 = vpack.c.bf16 %v2264, %v2262
      %v2293 = vpack.c.bf16 %v2268, %v2266
      %v2302 = vunpack.c.l.b16 %v2286
      %v2303 = vunpack.c.h.b16 %v2286
      %v2304 = vunpack.c.l.b16 %v2287
      %v2305 = vunpack.c.h.b16 %v2287
      %v2306 = vunpack.c.l.b16 %v2288
      %v2307 = vunpack.c.h.b16 %v2288
      %v2308 = vunpack.c.l.b16 %v2289
      %v2309 = vunpack.c.h.b16 %v2289
      %v2310 = vunpack.c.l.b16 %v2290
      %v2311 = vunpack.c.h.b16 %v2290
      %v2312 = vunpack.c.l.b16 %v2291
      %v2313 = vunpack.c.h.b16 %v2291
      %v2314 = vunpack.c.l.b16 %v2292
      %v2315 = vunpack.c.h.b16 %v2292
      %v2316 = vunpack.c.l.b16 %v2293
      %v2317 = vunpack.c.h.b16 %v2293
      %v2318 = vpack.c.b16 %v2302, %v2302
      %v2319 = vpack.c.b16 %v2303, %v2303
      %v2320 = vpack.c.b16 %v2304, %v2304
      %v2321 = vpack.c.b16 %v2305, %v2305
      %v2322 = vpack.c.b16 %v2306, %v2306
      %v2323 = vpack.c.b16 %v2307, %v2307
      %v2324 = vpack.c.b16 %v2308, %v2308
      %v2325 = vpack.c.b16 %v2309, %v2309
      %v2326 = vpack.c.b16 %v2310, %v2310
      %v2327 = vpack.c.b16 %v2311, %v2311
      %v2328 = vpack.c.b16 %v2312, %v2312
      %v2329 = vpack.c.b16 %v2313, %v2313
      %v2330 = vpack.c.b16 %v2314, %v2314
      %v2331 = vpack.c.b16 %v2315, %v2315
      %v2332 = vpack.c.b16 %v2316, %v2316
      %v2333 = vpack.c.b16 %v2317, %v2317
      %2350 = vst [vmem:[%s274] sm:$0xf] %v2318
      %2351 = vst [vmem:[%s274 + $0x4] sm:$0xf] %v2319
      %2352 = vst [vmem:[%s274 + $0x8] sm:$0xf] %v2320
      %2353 = vst [vmem:[%s274 + $0xc] sm:$0xf] %v2321
      %2354 = vst [vmem:[%s274 + $0x10] sm:$0xf] %v2322
      %2355 = vst [vmem:[%s274 + $0x14] sm:$0xf] %v2323
      %2356 = vst [vmem:[%s274 + $0x18] sm:$0xf] %v2324
      %2357 = vst [vmem:[%s274 + $0x1c] sm:$0xf] %v2325
      %2358 = vst [vmem:[%s274 + $0x20] sm:$0xf] %v2326
      %2359 = vst [vmem:[%s274 + $0x24] sm:$0xf] %v2327
      %2360 = vst [vmem:[%s274 + $0x28] sm:$0xf] %v2328
      %2361 = vst [vmem:[%s274 + $0x2c] sm:$0xf] %v2329
      %2362 = vst [vmem:[%s274 + $0x30] sm:$0xf] %v2330
      %2363 = vst [vmem:[%s274 + $0x34] sm:$0xf] %v2331
      %2364 = vst [vmem:[%s274 + $0x38] sm:$0xf] %v2332
      %2365 = vst [vmem:[%s274 + $0x3c] sm:$0xf] %v2333
      %s2366 = smul.u32 8, %s22
      %p2367 = scmp.lt.s32.totalorder %s21, 1
      %s2368 = scalar_select %p2367, %s21, 1
      %p2369 = scmp.lt.s32.totalorder %s2366, 15
      %s2370 = scalar_select %p2369, %s2366, 15
      %s2371 = smul.addr %s2370, 2
      %s2372 = smul.addr %s2368, 32
      %s2373 = sadd.s32 %s2371, %s2372
      %s2374 = smul.addr %s2373, 8
      %s2375 = scalar_lea.vmem %s4, %s2374
      %s2376 = smul.u32 8, %s22
      %p2377 = scmp.lt.s32.totalorder %s21, 1
      %s2378 = scalar_select %p2377, %s21, 1
      %p2379 = scmp.lt.s32.totalorder %s2376, 15
      %s2380 = scalar_select %p2379, %s2376, 15
      %s2381 = smul.addr %s2380, 2
      %s2382 = smul.addr %s2378, 32
      %s2383 = sadd.s32 %s2381, %s2382
      %s2384 = smul.addr %s2383, 4
      %s2385 = scalar_lea.vmem %s5, %s2384
      // Predicated region
      $region37: #{inception_a_forward.5} parent=35 // pred_check
        %p2386 = pneg %p138
      $region38: #{inception_a_forward.5} parent=35 // pred_check_branch
        %2388 = sbr.rel (%p2386) target = $region40
      $region39: #{inception_a_forward.5} parent=35 // pred_region
        %s2389 = smul.u32 8, %s22
      $region40: #{inception_a_forward.5} parent=35 // pred_fallthru
        _
      // Predicated region
      $region41: #{inception_a_forward.5} parent=35 // pred_check
        %p2390 = pneg %p166
      $region42: #{inception_a_forward.5} parent=35 // pred_check_branch
        %2392 = sbr.rel (%p2390) target = $region44
      $region43: #{inception_a_forward.5} parent=35 // pred_region
        %s2393 = smul.u32 8, %s22
      $region44: #{inception_a_forward.5} parent=35 // pred_fallthru
        _
    $region36: #{inception_a_forward.5} parent=5 // pred_fallthru
      _
    %p2394 = scmp.le.s32.totalorder 2, %s12
    // Predicated region
    $region45: #{inception_a_forward.5} parent=5 // pred_check
      %p2395 = pneg %p2394
    $region46: #{inception_a_forward.5} parent=5 // pred_check_branch
      %2397 = sbr.rel (%p2395) target = $region48
    $region47: #{inception_a_forward.5} parent=5 // pred_region
      %s2398 = ssub.s32 %s12, 2
      // Predicated region
      $region49: #{inception_a_forward.5} parent=47 // pred_check
        %p2399 = pneg %p144
      $region50: #{inception_a_forward.5} parent=47 // pred_check_branch
        %2401 = sbr.rel (%p2399) target = $region52
      $region51: #{inception_a_forward.5} parent=47 // pred_region
        %s2402 = smul.u32 8, %s24
        %p2403 = scmp.lt.s32.totalorder %s23, 1
        %s2404 = scalar_select %p2403, %s23, 1
        %p2405 = scmp.lt.s32.totalorder %s2402, 15
        %s2406 = scalar_select %p2405, %s2402, 15
        %s2407 = smul.addr %s2406, 2
        %s2408 = smul.addr %s2404, 32
        %s2409 = sadd.s32 %s2407, %s2408
        %s2410 = smul.addr %s2409, 8
        %s2411 = scalar_lea.vmem %s4, %s2410
      $region52: #{inception_a_forward.5} parent=47 // pred_fallthru
        _
      // Predicated region
      $region53: #{inception_a_forward.5} parent=47 // pred_check
        %p2412 = pneg %p172
      $region54: #{inception_a_forward.5} parent=47 // pred_check_branch
        %2414 = sbr.rel (%p2412) target = $region56
      $region55: #{inception_a_forward.5} parent=47 // pred_region
        %s2415 = smul.u32 8, %s24
        %p2416 = scmp.lt.s32.totalorder %s23, 1
        %s2417 = scalar_select %p2416, %s23, 1
        %p2418 = scmp.lt.s32.totalorder %s2415, 15
        %s2419 = scalar_select %p2418, %s2415, 15
        %s2420 = smul.addr %s2419, 2
        %s2421 = smul.addr %s2417, 32
        %s2422 = sadd.s32 %s2420, %s2421
        %s2423 = smul.addr %s2422, 4
        %s2424 = scalar_lea.vmem %s5, %s2423
      $region56: #{inception_a_forward.5} parent=47 // pred_fallthru
        _
    $region48: #{inception_a_forward.5} parent=5 // pred_fallthru
      _
  $region6: #{inception_a_forward.5} parent=0 // loop_footer
    %s16 = sadd.s32 1, %s12
  $region7: #{inception_a_forward.5} parent=0 // loop_footer_branch
    %11 = sbr.rel target = $region3
  $region8: #{inception_a_forward.5} parent=0 // loop_exit
    _

// kernel: inception_a_forward.7
$region0: #{inception_a_forward.7}
  #allocation0 [shape = 'u32[]', space=smem, size = 0x4, offset = 0x4, fixed_abs, tag = 'smem constant byte address 0x4 - core index']
  #allocation1 [shape = 'u32[144,128]{1,0:T(1,128)}', space=vmem, size = 0x12000, scoped, tag = 'internal scratch']
  %s0 = inlined_call_operand.vmem [shape: bf16[2,18,18,32], index: 0, kind: input, shape index: {}]
  %s1 = inlined_call_operand.vmem [shape: bf16[32,128], index: 1, kind: input, shape index: {}]
  %s2 = inlined_call_operand.vmem [shape: f32[1,128], index: 2, kind: input, shape index: {}]
  %s3 = inlined_call_operand.vmem [shape: f32[1,128], index: 3, kind: input, shape index: {}]
  %s4 = inlined_call_operand.vmem [shape: f32[2,16,16,96], index: 4, kind: output, shape index: {}]
  %s5 = sld [smem:[#allocation0]]
  $region49: #{inception_a_forward.7} parent=0
    _
  %s7 = ssub.s32 1, %s5
  %s8 = scalar_select 0, %s7, %s5
  loop: start=0, step=1, limit=6
  $region2: #{inception_a_forward.7} parent=0 // loop_pre_header
    _
  $region3: #{inception_a_forward.7} parent=0 // loop_header
    %s10 = sphi 0, %s14
    %p11 = scmp.ge.s32.totalorder %s10, 6
    %s17 = sphi 0, %s29
    %s18 = sphi 0, %s25
    %s19 = sphi 0, %s17
    %s20 = sphi 0, %s18
    %s21 = sphi 0, %s19
    %s22 = sphi 0, %s20
    %s32 = sphi 0, %s34
    %s35 = sphi 0, %s32
    %s36 = sphi 0, %s35
    %s52 = sphi 0, %s36
    %s56 = sphi 0, %s56
    %s58 = sphi 0, %s56
    %s59 = sphi 0, %s58
    %s73 = sphi 0, %s59
    %s77 = sphi 0, %s77
    %s79 = sphi 0, %s77
    %s80 = sphi 0, %s79
    %s94 = sphi 0, %s80
    %s98 = sphi 0, %s98
    %s100 = sphi 0, %s98
    %s101 = sphi 0, %s100
    %s115 = sphi 0, %s101
    %s123 = sphi 0, %s125
    %s126 = sphi 0, %s123
    %s127 = sphi 0, %s126
    %s143 = sphi 0, %s127
  $region4: #{inception_a_forward.7} parent=0 // loop_header_branch
    %13 = sbr.rel (%p11) target = $region8
  $region5: #{inception_a_forward.7} parent=0 // loop_body
    %s15 = ssub.s32 %s10, 1
    %s16 = ssub.s32 %s10, 2
    %s23 = sadd.s32 1, %s18
    %p24 = scmp.ge.s32.totalorder %s23, 2
    %s25 = scalar_select %p24, 0, %s23
    %s26 = sadd.s32 1, %s17
    %s27 = scalar_select %p24, %s26, %s17
    %p28 = scmp.ge.s32.totalorder %s27, 2
    %s29 = scalar_select %p28, 0, %s27
    %s30 = ssub.s32 %s17, %s29
    %p31 = scmp.eq.s32.totalorder %s30, 0
    %s33 = sadd.s32 %s32, 1
    %s34 = scalar_select %p31, %s32, %s33
    %p37 = pneg %p31
    %p38 = scmp.eq.s32.totalorder %s10, 3
    %p39 = por %p37, %p38
    %p40 = scmp.ne.s32.totalorder %s32, %s35
    %p41 = scmp.eq.s32.totalorder %s10, 0
    %p42 = por %p40, %p41
    %p43 = scmp.ne.s32.totalorder %s32, %s35
    %p44 = scmp.eq.s32.totalorder %s15, 3
    %p45 = por %p43, %p44
    %p46 = scmp.ne.s32.totalorder %s35, %s36
    %p47 = scmp.eq.s32.totalorder %s15, 0
    %p48 = por %p46, %p47
    %p49 = scmp.ne.s32.totalorder %s35, %s36
    %p50 = scmp.eq.s32.totalorder %s16, 3
    %p51 = por %p49, %p50
    %p53 = scmp.ne.s32.totalorder %s36, %s52
    %p54 = scmp.eq.s32.totalorder %s16, 0
    %p55 = por %p53, %p54
    %s57 = sadd.s32 %s56, 1
    %p60 = scmp.eq.s32.totalorder %s10, 3
    %p61 = scmp.ne.s32.totalorder %s56, %s58
    %p62 = scmp.eq.s32.totalorder %s10, 0
    %p63 = por %p61, %p62
    %p64 = scmp.ne.s32.totalorder %s56, %s58
    %p65 = scmp.eq.s32.totalorder %s15, 3
    %p66 = por %p64, %p65
    %p67 = scmp.ne.s32.totalorder %s58, %s59
    %p68 = scmp.eq.s32.totalorder %s15, 0
    %p69 = por %p67, %p68
    %p70 = scmp.ne.s32.totalorder %s58, %s59
    %p71 = scmp.eq.s32.totalorder %s16, 3
    %p72 = por %p70, %p71
    %p74 = scmp.ne.s32.totalorder %s59, %s73
    %p75 = scmp.eq.s32.totalorder %s16, 0
    %p76 = por %p74, %p75
    %s78 = sadd.s32 %s77, 1
    %p81 = scmp.eq.s32.totalorder %s10, 3
    %p82 = scmp.ne.s32.totalorder %s77, %s79
    %p83 = scmp.eq.s32.totalorder %s10, 0
    %p84 = por %p82, %p83
    %p85 = scmp.ne.s32.totalorder %s77, %s79
    %p86 = scmp.eq.s32.totalorder %s15, 3
    %p87 = por %p85, %p86
    %p88 = scmp.ne.s32.totalorder %s79, %s80
    %p89 = scmp.eq.s32.totalorder %s15, 0
    %p90 = por %p88, %p89
    %p91 = scmp.ne.s32.totalorder %s79, %s80
    %p92 = scmp.eq.s32.totalorder %s16, 3
    %p93 = por %p91, %p92
    %p95 = scmp.ne.s32.totalorder %s80, %s94
    %p96 = scmp.eq.s32.totalorder %s16, 0
    %p97 = por %p95, %p96
    %s99 = sadd.s32 %s98, 1
    %p102 = scmp.eq.s32.totalorder %s10, 3
    %p103 = scmp.ne.s32.totalorder %s98, %s100
    %p104 = scmp.eq.s32.totalorder %s10, 0
    %p105 = por %p103, %p104
    %p106 = scmp.ne.s32.totalorder %s98, %s100
    %p107 = scmp.eq.s32.totalorder %s15, 3
    %p108 = por %p106, %p107
    %p109 = scmp.ne.s32.totalorder %s100, %s101
    %p110 = scmp.eq.s32.totalorder %s15, 0
    %p111 = por %p109, %p110
    %p112 = scmp.ne.s32.totalorder %s100, %s101
    %p113 = scmp.eq.s32.totalorder %s16, 3
    %p114 = por %p112, %p113
    %p116 = scmp.ne.s32.totalorder %s101, %s115
    %p117 = scmp.eq.s32.totalorder %s16, 0
    %p118 = por %p116, %p117
    %s119 = ssub.s32 %s17, %s29
    %s120 = ssub.s32 %s18, %s25
    %s121 = sor.u32 %s119, %s120
    %p122 = scmp.eq.s32.totalorder %s121, 0
    %s124 = sadd.s32 %s123, 1
    %s125 = scalar_select %p122, %s123, %s124
    %p128 = pneg %p122
    %p129 = scmp.eq.s32.totalorder %s10, 3
    %p130 = por %p128, %p129
    %p131 = scmp.ne.s32.totalorder %s123, %s126
    %p132 = scmp.eq.s32.totalorder %s10, 0
    %p133 = por %p131, %p132
    %p134 = scmp.ne.s32.totalorder %s123, %s126
    %p135 = scmp.eq.s32.totalorder %s15, 3
    %p136 = por %p134, %p135
    %p137 = scmp.ne.s32.totalorder %s126, %s127
    %p138 = scmp.eq.s32.totalorder %s15, 0
    %p139 = por %p137, %p138
    %p140 = scmp.ne.s32.totalorder %s126, %s127
    %p141 = scmp.eq.s32.totalorder %s16, 3
    %p142 = por %p140, %p141
    %p144 = scmp.ne.s32.totalorder %s127, %s143
    %p145 = scmp.eq.s32.totalorder %s16, 0
    %p146 = por %p144, %p145
    %p147 = scmp.le.s32.totalorder 1, %s10
    %p148 = scmp.lt.s32.totalorder %s10, 5
    %p149 = pnand %p147, %p148
    %p150 = pneg %p149
    // Predicated region
    $region9: #{inception_a_forward.7} parent=5 // pred_check
      _
    $region10: #{inception_a_forward.7} parent=5 // pred_check_branch
      %152 = sbr.rel (%p149) target = $region12
    $region11: #{inception_a_forward.7} parent=5 // pred_region
      %s153 = ssub.s32 %s10, 1
      // Predicated region
      $region13: #{inception_a_forward.7} parent=11 // pred_check
        %p154 = pneg %p69
      $region14: #{inception_a_forward.7} parent=11 // pred_check_branch
        %156 = sbr.rel (%p154) target = $region16
      $region15: #{inception_a_forward.7} parent=11 // pred_region
        _
      $region16: #{inception_a_forward.7} parent=11 // pred_fallthru
        _
      // Predicated region
      $region17: #{inception_a_forward.7} parent=11 // pred_check
        %p157 = pneg %p90
      $region18: #{inception_a_forward.7} parent=11 // pred_check_branch
        %159 = sbr.rel (%p157) target = $region20
      $region19: #{inception_a_forward.7} parent=11 // pred_region
        _
      $region20: #{inception_a_forward.7} parent=11 // pred_fallthru
        _
      // Predicated region
      $region21: #{inception_a_forward.7} parent=11 // pred_check
        %p160 = pneg %p111
      $region22: #{inception_a_forward.7} parent=11 // pred_check_branch
        %162 = sbr.rel (%p160) target = $region24
      $region23: #{inception_a_forward.7} parent=11 // pred_region
        _
      $region24: #{inception_a_forward.7} parent=11 // pred_fallthru
        _
    $region12: #{inception_a_forward.7} parent=5 // pred_fallthru
      _
    %p163 = scmp.lt.s32.totalorder %s10, 4
    // Predicated region
    $region25: #{inception_a_forward.7} parent=5 // pred_check
      %p164 = pneg %p163
    $region26: #{inception_a_forward.7} parent=5 // pred_check_branch
      %166 = sbr.rel (%p164) target = $region28
    $region27: #{inception_a_forward.7} parent=5 // pred_region
      // Predicated region
      $region29: #{inception_a_forward.7} parent=27 // pred_check
        %p167 = pneg %p42
      $region30: #{inception_a_forward.7} parent=27 // pred_check_branch
        %169 = sbr.rel (%p167) target = $region32
      $region31: #{inception_a_forward.7} parent=27 // pred_region
        %p170 = scmp.lt.s32.totalorder %s17, 1
        %s171 = scalar_select %p170, %s17, 1
        %s172 = smul.addr %s171, 54
        %s173 = smul.addr %s172, 4
        %s174 = scalar_lea.vmem %s0, %s173
      $region32: #{inception_a_forward.7} parent=27 // pred_fallthru
        _
    $region28: #{inception_a_forward.7} parent=5 // pred_fallthru
      _
    %p175 = scmp.le.s32.totalorder 1, %s10
    %p176 = scmp.lt.s32.totalorder %s10, 5
    %p177 = pnand %p175, %p176
    %p178 = pneg %p177
    // Predicated region
    $region33: #{inception_a_forward.7} parent=5 // pred_check
      _
    $region34: #{inception_a_forward.7} parent=5 // pred_check_branch
      %180 = sbr.rel (%p177) target = $region36
    $region35: #{inception_a_forward.7} parent=5 // pred_region
      %s181 = ssub.s32 %s10, 1
      %p182 = scmp.lt.s32.totalorder %s19, 1
      %s183 = scalar_select %p182, %s19, 1
      %s184 = smul.addr %s183, 54
      %s185 = smul.addr %s184, 4
      %s186 = scalar_lea.vmem %s0, %s185
      %p187 = pneg %p48
      %p188 = pneg %p45
      %p189 = pneg %p69
      %p190 = pneg %p66
      %p191 = pneg %p90
      %p192 = pneg %p87
      %p193 = pneg %p111
      %p194 = pneg %p108
      %p195 = pneg %p139
      %p196 = pneg %p136
      %s197 = smul.u32 8, %s20
      %p198 = scmp.lt.s32.totalorder %s19, 1
      %s199 = scalar_select %p198, %s19, 1
      %p200 = scmp.lt.s32.totalorder %s197, 15
      %s201 = scalar_select %p200, %s197, 15
      %s202 = smul.addr %s201, 2
      %s203 = smul.addr %s199, 32
      %s204 = sadd.s32 %s202, %s203
      %s205 = smul.addr %s204, 8
      %s206 = scalar_lea.vmem %s4, %s205
      %p207 = scmp.lt.s32.totalorder %s19, 1
      %s208 = scalar_select %p207, %s19, 1
      %s209 = smul.addr %s208, 54
      %s210 = smul.addr %s209, 4
      %s211 = scalar_lea.vmem %s0, %s210
      %s212 = smul.u32 8, %s20
      %p213 = scmp.lt.s32.totalorder %s19, 1
      %s214 = scalar_select %p213, %s19, 1
      %p215 = scmp.lt.s32.totalorder %s212, 15
      %s216 = scalar_select %p215, %s212, 15
      %s217 = smul.addr %s216, 2
      %s218 = smul.addr %s214, 32
      %s219 = sadd.s32 %s217, %s218
      %s220 = smul.addr %s219, 8
      %s221 = scalar_lea.vmem %s4, %s220
      %s222 = smul.u32 8, %s20
      %s224 = smul.u32 %s20, 8
      %s225 = smul.u32 %s224, 3
      %s226 = smul.addr %s225, 4
      %s227 = scalar_lea.vmem %s211, %s226
      %v228 = vld [vmem:[%s227] sm:$0xf]
      %v229 = vld [vmem:[%s227 + $0x4] sm:$0xf]
      %v230 = vld [vmem:[%s227 + $0x8] sm:$0x1]
      %v231 = vld [vmem:[%s227 + $0xc] sm:$0xf]
      %v232 = vld [vmem:[%s227 + $0x10] sm:$0xf]
      %v233 = vld [vmem:[%s227 + $0x14] sm:$0x1]
      %v234 = vld [vmem:[%s227 + $0x18] sm:$0xf]
      %v235 = vld [vmem:[%s227 + $0x1c] sm:$0xf]
      %v236 = vld [vmem:[%s227 + $0x20] sm:$0x1]
      %v237 = vld [vmem:[%s227 + $0x24] sm:$0xf]
      %v238 = vld [vmem:[%s227 + $0x28] sm:$0xf]
      %v239 = vld [vmem:[%s227 + $0x2c] sm:$0x1]
      %v240 = vld [vmem:[%s227 + $0x30] sm:$0xf]
      %v241 = vld [vmem:[%s227 + $0x34] sm:$0xf]
      %v242 = vld [vmem:[%s227 + $0x38] sm:$0x1]
      %v243 = vld [vmem:[%s227 + $0x3c] sm:$0xf]
      %v244 = vld [vmem:[%s227 + $0x40] sm:$0xf]
      %v245 = vld [vmem:[%s227 + $0x44] sm:$0x1]
      %v246 = vld [vmem:[%s227 + $0x48] sm:$0xf]
      %v247 = vld [vmem:[%s227 + $0x4c] sm:$0xf]
      %v248 = vld [vmem:[%s227 + $0x50] sm:$0x1]
      %v249 = vld [vmem:[%s227 + $0x54] sm:$0xf]
      %v250 = vld [vmem:[%s227 + $0x58] sm:$0xf]
      %v251 = vld [vmem:[%s227 + $0x5c] sm:$0x1]
      %v252 = vld [vmem:[%s227 + $0x60] sm:$0xf]
      %v253 = vld [vmem:[%s227 + $0x64] sm:$0xf]
      %v254 = vld [vmem:[%s227 + $0x68] sm:$0x1]
      %v255 = vld [vmem:[%s227 + $0x6c] sm:$0xf]
      %v256 = vld [vmem:[%s227 + $0x70] sm:$0xf]
      %v257 = vld [vmem:[%s227 + $0x74] sm:$0x1]
      %v258 = vunpack.c.l.bf16 %v228
      %v259 = vunpack.c.l.bf16 %v229
      %v260 = vunpack.c.l.bf16 %v230
      %v261 = vunpack.c.l.bf16 %v231
      %v262 = vunpack.c.l.bf16 %v232
      %v263 = vunpack.c.l.bf16 %v233
      %v264 = vunpack.c.l.bf16 %v234
      %v265 = vunpack.c.l.bf16 %v235
      %v266 = vunpack.c.l.bf16 %v236
      %v267 = vunpack.c.l.bf16 %v237
      %v268 = vunpack.c.l.bf16 %v238
      %v269 = vunpack.c.l.bf16 %v239
      %v270 = vunpack.c.l.bf16 %v240
      %v271 = vunpack.c.l.bf16 %v241
      %v272 = vunpack.c.l.bf16 %v242
      %v273 = vunpack.c.l.bf16 %v243
      %v274 = vunpack.c.l.bf16 %v244
      %v275 = vunpack.c.l.bf16 %v245
      %v276 = vunpack.c.l.bf16 %v246
      %v277 = vunpack.c.l.bf16 %v247
      %v278 = vunpack.c.l.bf16 %v248
      %v279 = vunpack.c.l.bf16 %v249
      %v280 = vunpack.c.l.bf16 %v250
      %v281 = vunpack.c.l.bf16 %v251
      %v282 = vunpack.c.l.bf16 %v252
      %v283 = vunpack.c.l.bf16 %v253
      %v284 = vunpack.c.l.bf16 %v254
      %v285 = vunpack.c.l.bf16 %v255
      %v286 = vunpack.c.l.bf16 %v256
      %v287 = vunpack.c.l.bf16 %v257
      %vm318 = vcmask 1046528
      %v319 = vrot.slane %v258, 1
      %v320 = vrot.slane %v259, 1
      %v321 = vsel %vm318, %v319, %v320
      %v322 = vrot.slane %v260, 1
      %v323 = vsel %vm318, %v320, %v322
      %v324 = vrot.slane %v261, 1
      %v325 = vrot.slane %v262, 1
      %v326 = vsel %vm318, %v324, %v325
      %v327 = vrot.slane %v263, 1
      %v328 = vsel %vm318, %v325, %v327
      %v329 = vrot.slane %v264, 1
      %v330 = vrot.slane %v265, 1
      %v331 = vsel %vm318, %v329, %v330
      %v332 = vrot.slane %v266, 1
      %v333 = vsel %vm318, %v330, %v332
      %v334 = vrot.slane %v267, 1
      %v335 = vrot.slane %v268, 1
      %v336 = vsel %vm318, %v334, %v335
      %v337 = vrot.slane %v269, 1
      %v338 = vsel %vm318, %v335, %v337
      %v339 = vrot.slane %v270, 1
      %v340 = vrot.slane %v271, 1
      %v341 = vsel %vm318, %v339, %v340
      %v342 = vrot.slane %v272, 1
      %v343 = vsel %vm318, %v340, %v342
      %v344 = vrot.slane %v273, 1
      %v345 = vrot.slane %v274, 1
      %v346 = vsel %vm318, %v344, %v345
      %v347 = vrot.slane %v275, 1
      %v348 = vsel %vm318, %v345, %v347
      %v349 = vrot.slane %v276, 1
      %v350 = vrot.slane %v277, 1
      %v351 = vsel %vm318, %v349, %v350
      %v352 = vrot.slane %v278, 1
      %v353 = vsel %vm318, %v350, %v352
      %v354 = vrot.slane %v279, 1
      %v355 = vrot.slane %v280, 1
      %v356 = vsel %vm318, %v354, %v355
      %v357 = vrot.slane %v281, 1
      %v358 = vsel %vm318, %v355, %v357
      %v359 = vrot.slane %v282, 1
      %v360 = vrot.slane %v283, 1
      %v361 = vsel %vm318, %v359, %v360
      %v362 = vrot.slane %v284, 1
      %v363 = vsel %vm318, %v360, %v362
      %v364 = vrot.slane %v285, 1
      %v365 = vrot.slane %v286, 1
      %v366 = vsel %vm318, %v364, %v365
      %v367 = vrot.slane %v287, 1
      %v368 = vsel %vm318, %v365, %v367
      %v389 = vadd.f32 %v258, %v321
      %v390 = vadd.f32 %v259, %v323
      %v391 = vadd.f32 %v261, %v326
      %v392 = vadd.f32 %v262, %v328
      %v393 = vadd.f32 %v264, %v331
      %v394 = vadd.f32 %v265, %v333
      %v395 = vadd.f32 %v267, %v336
      %v396 = vadd.f32 %v268, %v338
      %v397 = vadd.f32 %v270, %v341
      %v398 = vadd.f32 %v271, %v343
      %v399 = vadd.f32 %v273, %v346
      %v400 = vadd.f32 %v274, %v348
      %v401 = vadd.f32 %v276, %v351
      %v402 = vadd.f32 %v277, %v353
      %v403 = vadd.f32 %v279, %v356
      %v404 = vadd.f32 %v280, %v358
      %v405 = vadd.f32 %v282, %v361
      %v406 = vadd.f32 %v283, %v363
      %v407 = vadd.f32 %v285, %v366
      %v408 = vadd.f32 %v286, %v368
      %vm409 = vcmask 1045504
      %v410 = vrot.slane %v258, 2
      %v411 = vrot.slane %v259, 2
      %v412 = vsel %vm409, %v410, %v411
      %v413 = vrot.slane %v260, 2
      %v414 = vsel %vm409, %v411, %v413
      %v415 = vrot.slane %v261, 2
      %v416 = vrot.slane %v262, 2
      %v417 = vsel %vm409, %v415, %v416
      %v418 = vrot.slane %v263, 2
      %v419 = vsel %vm409, %v416, %v418
      %v420 = vrot.slane %v264, 2
      %v421 = vrot.slane %v265, 2
      %v422 = vsel %vm409, %v420, %v421
      %v423 = vrot.slane %v266, 2
      %v424 = vsel %vm409, %v421, %v423
      %v425 = vrot.slane %v267, 2
      %v426 = vrot.slane %v268, 2
      %v427 = vsel %vm409, %v425, %v426
      %v428 = vrot.slane %v269, 2
      %v429 = vsel %vm409, %v426, %v428
      %v430 = vrot.slane %v270, 2
      %v431 = vrot.slane %v271, 2
      %v432 = vsel %vm409, %v430, %v431
      %v433 = vrot.slane %v272, 2
      %v434 = vsel %vm409, %v431, %v433
      %v435 = vrot.slane %v273, 2
      %v436 = vrot.slane %v274, 2
      %v437 = vsel %vm409, %v435, %v436
      %v438 = vrot.slane %v275, 2
      %v439 = vsel %vm409, %v436, %v438
      %v440 = vrot.slane %v276, 2
      %v441 = vrot.slane %v277, 2
      %v442 = vsel %vm409, %v440, %v441
      %v443 = vrot.slane %v278, 2
      %v444 = vsel %vm409, %v441, %v443
      %v445 = vrot.slane %v279, 2
      %v446 = vrot.slane %v280, 2
      %v447 = vsel %vm409, %v445, %v446
      %v448 = vrot.slane %v281, 2
      %v449 = vsel %vm409, %v446, %v448
      %v450 = vrot.slane %v282, 2
      %v451 = vrot.slane %v283, 2
      %v452 = vsel %vm409, %v450, %v451
      %v453 = vrot.slane %v284, 2
      %v454 = vsel %vm409, %v451, %v453
      %v455 = vrot.slane %v285, 2
      %v456 = vrot.slane %v286, 2
      %v457 = vsel %vm409, %v455, %v456
      %v458 = vrot.slane %v287, 2
      %v459 = vsel %vm409, %v456, %v458
      %v480 = vadd.f32 %v389, %v412
      %v481 = vadd.f32 %v390, %v414
      %v482 = vadd.f32 %v391, %v417
      %v483 = vadd.f32 %v392, %v419
      %v484 = vadd.f32 %v393, %v422
      %v485 = vadd.f32 %v394, %v424
      %v486 = vadd.f32 %v395, %v427
      %v487 = vadd.f32 %v396, %v429
      %v488 = vadd.f32 %v397, %v432
      %v489 = vadd.f32 %v398, %v434
      %v490 = vadd.f32 %v399, %v437
      %v491 = vadd.f32 %v400, %v439
      %v492 = vadd.f32 %v401, %v442
      %v493 = vadd.f32 %v402, %v444
      %v494 = vadd.f32 %v403, %v447
      %v495 = vadd.f32 %v404, %v449
      %v496 = vadd.f32 %v405, %v452
      %v497 = vadd.f32 %v406, %v454
      %v498 = vadd.f32 %v407, %v457
      %v499 = vadd.f32 %v408, %v459
      %v500 = vadd.f32 %v480, %v482
      %v501 = vadd.f32 %v481, %v483
      %v502 = vadd.f32 %v482, %v484
      %v503 = vadd.f32 %v483, %v485
      %v504 = vadd.f32 %v484, %v486
      %v505 = vadd.f32 %v485, %v487
      %v506 = vadd.f32 %v486, %v488
      %v507 = vadd.f32 %v487, %v489
      %v508 = vadd.f32 %v488, %v490
      %v509 = vadd.f32 %v489, %v491
      %v510 = vadd.f32 %v490, %v492
      %v511 = vadd.f32 %v491, %v493
      %v512 = vadd.f32 %v492, %v494
      %v513 = vadd.f32 %v493, %v495
      %v514 = vadd.f32 %v494, %v496
      %v515 = vadd.f32 %v495, %v497
      %v516 = vadd.f32 %v500, %v484
      %v517 = vadd.f32 %v501, %v485
      %v518 = vadd.f32 %v502, %v486
      %v519 = vadd.f32 %v503, %v487
      %v520 = vadd.f32 %v504, %v488
      %v521 = vadd.f32 %v505, %v489
      %v522 = vadd.f32 %v506, %v490
      %v523 = vadd.f32 %v507, %v491
      %v524 = vadd.f32 %v508, %v492
      %v525 = vadd.f32 %v509, %v493
      %v526 = vadd.f32 %v510, %v494
      %v527 = vadd.f32 %v511, %v495
      %v528 = vadd.f32 %v512, %v496
      %v529 = vadd.f32 %v513, %v497
      %v530 = vadd.f32 %v514, %v498
      %v531 = vadd.f32 %v515, %v499
      %v532 = vstv %s224
      %v533 = vadd.s32 %v532, 1
      %v534 = vadd.s32 %v532, 2
      %v535 = vadd.s32 %v532, 3
      %v536 = vadd.s32 %v532, 4
      %v537 = vadd.s32 %v532, 5
      %v538 = vadd.s32 %v532, 6
      %v539 = vadd.s32 %v532, 7
      %v540 = vlaneseq
      %v541 = vshrl.u32 %v540, 7
      %v542 = vadd.s32 %v541, 8
      %v543 = vadd.s32 %v533, 1
      %v544 = vadd.s32 %v534, 1
      %v545 = vadd.s32 %v535, 1
      %v546 = vadd.s32 %v536, 1
      %v547 = vadd.s32 %v537, 1
      %v548 = vadd.s32 %v538, 1
      %v549 = vadd.s32 %v539, 1
      %vm550 = vcmp.lt.s32.totalorder %v533, 15
      %v551 = vsel %vm550, %v533, 15
      %vm552 = vcmp.lt.s32.totalorder %v543, 15
      %v553 = vsel %vm552, %v543, 15
      %vm554 = vcmp.lt.s32.totalorder %v544, 15
      %v555 = vsel %vm554, %v544, 15
      %vm556 = vcmp.lt.s32.totalorder %v545, 15
      %v557 = vsel %vm556, %v545, 15
      %vm558 = vcmp.lt.s32.totalorder %v546, 15
      %v559 = vsel %vm558, %v546, 15
      %vm560 = vcmp.lt.s32.totalorder %v547, 15
      %v561 = vsel %vm560, %v547, 15
      %vm562 = vcmp.lt.s32.totalorder %v548, 15
      %v563 = vsel %vm562, %v548, 15
      %vm564 = vcmp.lt.s32.totalorder %v549, 15
      %v565 = vsel %vm564, %v549, 15
      %v566 = vsub.s32 %v532, 1
      %v567 = vsub.s32 %v534, 1
      %v568 = vsub.s32 %v535, 1
      %v569 = vsub.s32 %v536, 1
      %v570 = vsub.s32 %v537, 1
      %v571 = vsub.s32 %v538, 1
      %v572 = vsub.s32 %v539, 1
      %vm573 = vcmp.gt.s32.totalorder %v566, 0
      %v574 = vsel %vm573, %v566, 0
      %vm575 = vcmp.gt.s32.totalorder %v532, 0
      %v576 = vsel %vm575, %v532, 0
      %vm577 = vcmp.gt.s32.totalorder %v567, 0
      %v578 = vsel %vm577, %v567, 0
      %vm579 = vcmp.gt.s32.totalorder %v568, 0
      %v580 = vsel %vm579, %v568, 0
      %vm581 = vcmp.gt.s32.totalorder %v569, 0
      %v582 = vsel %vm581, %v569, 0
      %vm583 = vcmp.gt.s32.totalorder %v570, 0
      %v584 = vsel %vm583, %v570, 0
      %vm585 = vcmp.gt.s32.totalorder %v571, 0
      %v586 = vsel %vm585, %v571, 0
      %vm587 = vcmp.gt.s32.totalorder %v572, 0
      %v588 = vsel %vm587, %v572, 0
      %v589 = vsub.s32 %v551, %v574
      %v590 = vsub.s32 %v553, %v576
      %v591 = vsub.s32 %v555, %v578
      %v592 = vsub.s32 %v557, %v580
      %v593 = vsub.s32 %v559, %v582
      %v594 = vsub.s32 %v561, %v584
      %v595 = vsub.s32 %v563, %v586
      %v596 = vsub.s32 %v565, %v588
      %v597 = vadd.s32 %v589, 1
      %v598 = vadd.s32 %v590, 1
      %v599 = vadd.s32 %v591, 1
      %v600 = vadd.s32 %v592, 1
      %v601 = vadd.s32 %v593, 1
      %v602 = vadd.s32 %v594, 1
      %v603 = vadd.s32 %v595, 1
      %v604 = vadd.s32 %v596, 1
      %v605 = vadd.s32 %v541, 1
      %v606 = vadd.s32 %v542, 1
      %vm607 = vcmp.lt.s32.totalorder %v605, 15
      %v608 = vsel %vm607, %v605, 15
      %vm609 = vcmp.lt.s32.totalorder %v606, 15
      %v610 = vsel %vm609, %v606, 15
      %v611 = vsub.s32 %v541, 1
      %v612 = vsub.s32 %v542, 1
      %vm613 = vcmp.gt.s32.totalorder %v611, 0
      %v614 = vsel %vm613, %v611, 0
      %vm615 = vcmp.gt.s32.totalorder %v612, 0
      %v616 = vsel %vm615, %v612, 0
      %v617 = vsub.s32 %v608, %v614
      %v618 = vsub.s32 %v610, %v616
      %v619 = vadd.s32 %v617, 1
      %v620 = vadd.s32 %v618, 1
      %v621 = vmul.u32 %v597, %v619
      %v622 = vmul.u32 %v597, %v620
      %v623 = vmul.u32 %v598, %v619
      %v624 = vmul.u32 %v598, %v620
      %v625 = vmul.u32 %v599, %v619
      %v626 = vmul.u32 %v599, %v620
      %v627 = vmul.u32 %v600, %v619
      %v628 = vmul.u32 %v600, %v620
      %v629 = vmul.u32 %v601, %v619
      %v630 = vmul.u32 %v601, %v620
      %v631 = vmul.u32 %v602, %v619
      %v632 = vmul.u32 %v602, %v620
      %v633 = vmul.u32 %v603, %v619
      %v634 = vmul.u32 %v603, %v620
      %v635 = vmul.u32 %v604, %v619
      %v636 = vmul.u32 %v604, %v620
      %v637 = vcvt.s32.f32 %v621
      %v638 = vcvt.s32.f32 %v622
      %v639 = vcvt.s32.f32 %v623
      %v640 = vcvt.s32.f32 %v624
      %v641 = vcvt.s32.f32 %v625
      %v642 = vcvt.s32.f32 %v626
      %v643 = vcvt.s32.f32 %v627
      %v644 = vcvt.s32.f32 %v628
      %v645 = vcvt.s32.f32 %v629
      %v646 = vcvt.s32.f32 %v630
      %v647 = vcvt.s32.f32 %v631
      %v648 = vcvt.s32.f32 %v632
      %v649 = vcvt.s32.f32 %v633
      %v650 = vcvt.s32.f32 %v634
      %v651 = vcvt.s32.f32 %v635
      %v652 = vcvt.s32.f32 %v636
      %v653 = vrcp.pop %v637
      %v654 = vrcp.pop %v638
      %v655 = vrcp.pop %v639
      %v656 = vrcp.pop %v640
      %v657 = vrcp.pop %v641
      %v658 = vrcp.pop %v642
      %v659 = vrcp.pop %v643
      %v660 = vrcp.pop %v644
      %v661 = vrcp.pop %v645
      %v662 = vrcp.pop %v646
      %v663 = vrcp.pop %v647
      %v664 = vrcp.pop %v648
      %v665 = vrcp.pop %v649
      %v666 = vrcp.pop %v650
      %v667 = vrcp.pop %v651
      %v668 = vrcp.pop %v652
      %v669 = vmul.f32 %v516, %v653
      %v670 = vmul.f32 %v517, %v654
      %v671 = vmul.f32 %v518, %v655
      %v672 = vmul.f32 %v519, %v656
      %v673 = vmul.f32 %v520, %v657
      %v674 = vmul.f32 %v521, %v658
      %v675 = vmul.f32 %v522, %v659
      %v676 = vmul.f32 %v523, %v660
      %v677 = vmul.f32 %v524, %v661
      %v678 = vmul.f32 %v525, %v662
      %v679 = vmul.f32 %v526, %v663
      %v680 = vmul.f32 %v527, %v664
      %v681 = vmul.f32 %v528, %v665
      %v682 = vmul.f32 %v529, %v666
      %v683 = vmul.f32 %v530, %v667
      %v684 = vmul.f32 %v531, %v668
      %v685 = vpack.c.bf16 %v670, %v669
      %v686 = vpack.c.bf16 %v672, %v671
      %v687 = vpack.c.bf16 %v674, %v673
      %v688 = vpack.c.bf16 %v676, %v675
      %v689 = vpack.c.bf16 %v678, %v677
      %v690 = vpack.c.bf16 %v680, %v679
      %v691 = vpack.c.bf16 %v682, %v681
      %v692 = vpack.c.bf16 %v684, %v683
      %v693 = vld [vmem:[%s1] sm:$0xf]
      %v694 = vld [vmem:[%s1 + $0x4] sm:$0xf]
      %v695 = vld [vmem:[%s1 + $0x8] sm:$0xf]
      %v696 = vld [vmem:[%s1 + $0xc] sm:$0xf]
      %v701 = vunpack.c.l.b16 %v693
      %v702 = vunpack.c.l.b16 %v694
      %v703 = vunpack.c.l.b16 %v695
      %v704 = vunpack.c.l.b16 %v696
      %v705 = vpack.c.b16 %v702, %v701
      %v706 = vpack.c.b16 %v704, %v703
      %vm709 = vcmask 261120
      %v711 = vsel %vm709, %v685, 0
      %v714 = vsel %vm709, %v686, 0
      %v717 = vsel %vm709, %v687, 0
      %v720 = vsel %vm709, %v688, 0
      %v723 = vsel %vm709, %v689, 0
      %v726 = vsel %vm709, %v690, 0
      %v729 = vsel %vm709, %v691, 0
      %v732 = vsel %vm709, %v692, 0
      %734 = vmatprep.subr.bf16.mxu0 0
      %735 = vmatpush1.bf16.msra.mxu0 0
      %736 = vmatprep.subr.bf16.mxu0 0
      %737 = vmatpush1.bf16.msra.mxu0 0
      %738 = vmatprep.subr.bf16.mxu0 0
      %739 = vmatpush1.bf16.msra.mxu0 0
      %740 = vmatprep.subr.bf16.mxu0 0
      %741 = vmatpush1.bf16.msra.mxu0 0
      %742 = vmatprep.subr.bf16.mxu0 0
      %743 = vmatpush1.bf16.msra.mxu0 0
      %744 = vmatprep.subr.bf16.mxu0 0
      %745 = vmatpush1.bf16.msra.mxu0 0
      %746 = vmatprep.subr.bf16.mxu0 0
      %747 = vmatpush1.bf16.msra.mxu0 %v706
      %748 = vmatprep.subr.bf16.mxu0 0
      %749 = vmatpush1.bf16.msra.mxu0 %v705
      %750 = vmatprep.subr.bf16.mxu0 0
      %751 = vmatpush2.bf16.msra.mxu0 0
      %752 = vmatprep.subr.bf16.mxu0 0
      %753 = vmatpush2.bf16.msra.mxu0 0
      %754 = vmatprep.subr.bf16.mxu0 0
      %755 = vmatpush2.bf16.msra.mxu0 0
      %756 = vmatprep.subr.bf16.mxu0 0
      %757 = vmatpush2.bf16.msra.mxu0 0
      %758 = vmatprep.subr.bf16.mxu0 0
      %759 = vmatpush2.bf16.msra.mxu0 0
      %760 = vmatprep.subr.bf16.mxu0 0
      %761 = vmatpush2.bf16.msra.mxu0 0
      %762 = vmatprep.subr.bf16.mxu0 0
      %763 = vmatpush2.bf16.msra.mxu0 0
      %764 = vmatprep.subr.bf16.mxu0 0
      %765 = vmatpush2.bf16.msra.mxu0 0
      %766 = vmatprep.mubr.bf16.mxu0 0
      %767 = vmatmul.mubr.bf16.gmra.mxu0 %v711
      %v768 = vpop.f32.mrf.mxu0
      %v769 = vadd.f32 0.0, %v768
      %v770 = vpop.f32.mrf.mxu0
      %v771 = vpop.f32.mrf.mxu0
      %v772 = vadd.f32 0.0, %v771
      %v773 = vpop.f32.mrf.mxu0
      %774 = vmatprep.mubr.bf16.mxu0 0
      %775 = vmatmul.mubr.bf16.gmra.mxu0 %v714
      %v776 = vpop.f32.mrf.mxu0
      %v777 = vadd.f32 0.0, %v776
      %v778 = vpop.f32.mrf.mxu0
      %v779 = vpop.f32.mrf.mxu0
      %v780 = vadd.f32 0.0, %v779
      %v781 = vpop.f32.mrf.mxu0
      %782 = vmatprep.mubr.bf16.mxu0 0
      %783 = vmatmul.mubr.bf16.gmra.mxu0 %v717
      %v784 = vpop.f32.mrf.mxu0
      %v785 = vadd.f32 0.0, %v784
      %v786 = vpop.f32.mrf.mxu0
      %v787 = vpop.f32.mrf.mxu0
      %v788 = vadd.f32 0.0, %v787
      %v789 = vpop.f32.mrf.mxu0
      %790 = vmatprep.mubr.bf16.mxu0 0
      %791 = vmatmul.mubr.bf16.gmra.mxu0 %v720
      %v792 = vpop.f32.mrf.mxu0
      %v793 = vadd.f32 0.0, %v792
      %v794 = vpop.f32.mrf.mxu0
      %v795 = vpop.f32.mrf.mxu0
      %v796 = vadd.f32 0.0, %v795
      %v797 = vpop.f32.mrf.mxu0
      %798 = vmatprep.mubr.bf16.mxu0 0
      %799 = vmatmul.mubr.bf16.gmra.mxu0 %v723
      %v800 = vpop.f32.mrf.mxu0
      %v801 = vadd.f32 0.0, %v800
      %v802 = vpop.f32.mrf.mxu0
      %v803 = vpop.f32.mrf.mxu0
      %v804 = vadd.f32 0.0, %v803
      %v805 = vpop.f32.mrf.mxu0
      %806 = vmatprep.mubr.bf16.mxu0 0
      %807 = vmatmul.mubr.bf16.gmra.mxu0 %v726
      %v808 = vpop.f32.mrf.mxu0
      %v809 = vadd.f32 0.0, %v808
      %v810 = vpop.f32.mrf.mxu0
      %v811 = vpop.f32.mrf.mxu0
      %v812 = vadd.f32 0.0, %v811
      %v813 = vpop.f32.mrf.mxu0
      %814 = vmatprep.mubr.bf16.mxu0 0
      %815 = vmatmul.mubr.bf16.gmra.mxu0 %v729
      %v816 = vpop.f32.mrf.mxu0
      %v817 = vadd.f32 0.0, %v816
      %v818 = vpop.f32.mrf.mxu0
      %v819 = vpop.f32.mrf.mxu0
      %v820 = vadd.f32 0.0, %v819
      %v821 = vpop.f32.mrf.mxu0
      %822 = vmatprep.mubr.bf16.mxu0 0
      %823 = vmatmul.mubr.bf16.gmra.mxu0 %v732
      %v824 = vpop.f32.mrf.mxu0
      %v825 = vadd.f32 0.0, %v824
      %v826 = vpop.f32.mrf.mxu0
      %v827 = vpop.f32.mrf.mxu0
      %v828 = vadd.f32 0.0, %v827
      %v829 = vpop.f32.mrf.mxu0
      %830 = vdwg.mxu0
      %v831 = vld [vmem:[%s2] sm:$0x1]
      %v833 = vlaneseq
      %v834 = vshrl.u32 %v833, 7
      %v835 = vsub.s32 0, %v834
      %v836 = vrot.slane %v831, %v835
      %v838 = vmul.f32 %v769, %v836
      %v839 = vmul.f32 %v772, %v836
      %v840 = vmul.f32 %v777, %v836
      %v841 = vmul.f32 %v780, %v836
      %v842 = vmul.f32 %v785, %v836
      %v843 = vmul.f32 %v788, %v836
      %v844 = vmul.f32 %v793, %v836
      %v845 = vmul.f32 %v796, %v836
      %v846 = vmul.f32 %v801, %v836
      %v847 = vmul.f32 %v804, %v836
      %v848 = vmul.f32 %v809, %v836
      %v849 = vmul.f32 %v812, %v836
      %v850 = vmul.f32 %v817, %v836
      %v851 = vmul.f32 %v820, %v836
      %v852 = vmul.f32 %v825, %v836
      %v853 = vmul.f32 %v828, %v836
      %v854 = vld [vmem:[%s3] sm:$0x1]
      %v856 = vlaneseq
      %v857 = vshrl.u32 %v856, 7
      %v858 = vsub.s32 0, %v857
      %v859 = vrot.slane %v854, %v858
      %v861 = vadd.f32 %v838, %v859
      %v862 = vadd.f32 %v839, %v859
      %v863 = vadd.f32 %v840, %v859
      %v864 = vadd.f32 %v841, %v859
      %v865 = vadd.f32 %v842, %v859
      %v866 = vadd.f32 %v843, %v859
      %v867 = vadd.f32 %v844, %v859
      %v868 = vadd.f32 %v845, %v859
      %v869 = vadd.f32 %v846, %v859
      %v870 = vadd.f32 %v847, %v859
      %v871 = vadd.f32 %v848, %v859
      %v872 = vadd.f32 %v849, %v859
      %v873 = vadd.f32 %v850, %v859
      %v874 = vadd.f32 %v851, %v859
      %v875 = vadd.f32 %v852, %v859
      %v876 = vadd.f32 %v853, %v859
      %v877 = vmax.f32 %v861, 0.0
      %v878 = vmax.f32 %v862, 0.0
      %v879 = vmax.f32 %v863, 0.0
      %v880 = vmax.f32 %v864, 0.0
      %v881 = vmax.f32 %v865, 0.0
      %v882 = vmax.f32 %v866, 0.0
      %v883 = vmax.f32 %v867, 0.0
      %v884 = vmax.f32 %v868, 0.0
      %v885 = vmax.f32 %v869, 0.0
      %v886 = vmax.f32 %v870, 0.0
      %v887 = vmax.f32 %v871, 0.0
      %v888 = vmax.f32 %v872, 0.0
      %v889 = vmax.f32 %v873, 0.0
      %v890 = vmax.f32 %v874, 0.0
      %v891 = vmax.f32 %v875, 0.0
      %v892 = vmax.f32 %v876, 0.0
      %vm893 = vcmask 785408
      %894 = vst.msk [vmem:[%s221] sm:$0xff] %vm893, %v877
      %895 = vst.msk [vmem:[%s221 + $0x8] sm:$0xff] %vm893, %v878
      %896 = vst.msk [vmem:[%s221 + $0x10] sm:$0xff] %vm893, %v879
      %897 = vst.msk [vmem:[%s221 + $0x18] sm:$0xff] %vm893, %v880
      %898 = vst.msk [vmem:[%s221 + $0x20] sm:$0xff] %vm893, %v881
      %899 = vst.msk [vmem:[%s221 + $0x28] sm:$0xff] %vm893, %v882
      %900 = vst.msk [vmem:[%s221 + $0x30] sm:$0xff] %vm893, %v883
      %901 = vst.msk [vmem:[%s221 + $0x38] sm:$0xff] %vm893, %v884
      %902 = vst.msk [vmem:[%s221 + $0x40] sm:$0xff] %vm893, %v885
      %903 = vst.msk [vmem:[%s221 + $0x48] sm:$0xff] %vm893, %v886
      %904 = vst.msk [vmem:[%s221 + $0x50] sm:$0xff] %vm893, %v887
      %905 = vst.msk [vmem:[%s221 + $0x58] sm:$0xff] %vm893, %v888
      %906 = vst.msk [vmem:[%s221 + $0x60] sm:$0xff] %vm893, %v889
      %907 = vst.msk [vmem:[%s221 + $0x68] sm:$0xff] %vm893, %v890
      %908 = vst.msk [vmem:[%s221 + $0x70] sm:$0xff] %vm893, %v891
      %909 = vst.msk [vmem:[%s221 + $0x78] sm:$0xff] %vm893, %v892
      %s910 = smul.u32 8, %s20
      %p911 = scmp.lt.s32.totalorder %s19, 1
      %s912 = scalar_select %p911, %s19, 1
      %p913 = scmp.lt.s32.totalorder %s910, 15
      %s914 = scalar_select %p913, %s910, 15
      %s915 = smul.addr %s914, 2
      %s916 = smul.addr %s912, 32
      %s917 = sadd.s32 %s915, %s916
      %s918 = smul.addr %s917, 8
      %s919 = scalar_lea.vmem %s4, %s918
      // Predicated region
      $region37: #{inception_a_forward.7} parent=35 // pred_check
        %p920 = pneg %p136
      $region38: #{inception_a_forward.7} parent=35 // pred_check_branch
        %922 = sbr.rel (%p920) target = $region40
      $region39: #{inception_a_forward.7} parent=35 // pred_region
        %s923 = smul.u32 8, %s20
      $region40: #{inception_a_forward.7} parent=35 // pred_fallthru
        _
    $region36: #{inception_a_forward.7} parent=5 // pred_fallthru
      _
    %p924 = scmp.le.s32.totalorder 2, %s10
    // Predicated region
    $region41: #{inception_a_forward.7} parent=5 // pred_check
      %p925 = pneg %p924
    $region42: #{inception_a_forward.7} parent=5 // pred_check_branch
      %927 = sbr.rel (%p925) target = $region44
    $region43: #{inception_a_forward.7} parent=5 // pred_region
      %s928 = ssub.s32 %s10, 2
      // Predicated region
      $region45: #{inception_a_forward.7} parent=43 // pred_check
        %p929 = pneg %p142
      $region46: #{inception_a_forward.7} parent=43 // pred_check_branch
        %931 = sbr.rel (%p929) target = $region48
      $region47: #{inception_a_forward.7} parent=43 // pred_region
        %s932 = smul.u32 8, %s22
        %p933 = scmp.lt.s32.totalorder %s21, 1
        %s934 = scalar_select %p933, %s21, 1
        %p935 = scmp.lt.s32.totalorder %s932, 15
        %s936 = scalar_select %p935, %s932, 15
        %s937 = smul.addr %s936, 2
        %s938 = smul.addr %s934, 32
        %s939 = sadd.s32 %s937, %s938
        %s940 = smul.addr %s939, 8
        %s941 = scalar_lea.vmem %s4, %s940
      $region48: #{inception_a_forward.7} parent=43 // pred_fallthru
        _
    $region44: #{inception_a_forward.7} parent=5 // pred_fallthru
      _
  $region6: #{inception_a_forward.7} parent=0 // loop_footer
    %s14 = sadd.s32 1, %s10
  $region7: #{inception_a_forward.7} parent=0 // loop_footer_branch
    %9 = sbr.rel target = $region3
  $region8: #{inception_a_forward.7} parent=0 // loop_exit
    _

// kernel: inception_a_forward.6
$region0: #{inception_a_forward.6}
  #allocation0 [shape = 'u32[]', space=smem, size = 0x4, offset = 0x4, fixed_abs, tag = 'smem constant byte address 0x4 - core index']
  #allocation1 [shape = 'u32[144,128]{1,0:T(1,128)}', space=vmem, size = 0x12000, scoped, tag = 'internal scratch']
  %s0 = inlined_call_operand.vmem [shape: bf16[2,18,18,128], index: 0, kind: input, shape index: {}]
  %s1 = inlined_call_operand.vmem [shape: bf16[3,384,128], index: 1, kind: input, shape index: {}]
  %s2 = inlined_call_operand.vmem [shape: f32[1,128], index: 2, kind: input, shape index: {}]
  %s3 = inlined_call_operand.vmem [shape: f32[1,128], index: 3, kind: input, shape index: {}]
  %s4 = inlined_call_operand.vmem [shape: f32[2,16,16,96], index: 4, kind: output, shape index: {}]
  %s5 = sld [smem:[#allocation0]]
  $region49: #{inception_a_forward.6} parent=0
    _
  %s7 = ssub.s32 1, %s5
  %s8 = scalar_select 0, %s7, %s5
  loop: start=0, step=1, limit=6
  $region2: #{inception_a_forward.6} parent=0 // loop_pre_header
    _
  $region3: #{inception_a_forward.6} parent=0 // loop_header
    %s10 = sphi 0, %s14
    %p11 = scmp.ge.s32.totalorder %s10, 6
    %s17 = sphi 0, %s29
    %s18 = sphi 0, %s25
    %s19 = sphi 0, %s17
    %s20 = sphi 0, %s18
    %s21 = sphi 0, %s19
    %s22 = sphi 0, %s20
    %s32 = sphi 0, %s34
    %s35 = sphi 0, %s32
    %s36 = sphi 0, %s35
    %s52 = sphi 0, %s36
    %s56 = sphi 0, %s56
    %s58 = sphi 0, %s56
    %s59 = sphi 0, %s58
    %s73 = sphi 0, %s59
    %s77 = sphi 0, %s77
    %s79 = sphi 0, %s77
    %s80 = sphi 0, %s79
    %s94 = sphi 0, %s80
    %s98 = sphi 0, %s98
    %s100 = sphi 0, %s98
    %s101 = sphi 0, %s100
    %s115 = sphi 0, %s101
    %s123 = sphi 0, %s125
    %s126 = sphi 0, %s123
    %s127 = sphi 0, %s126
    %s143 = sphi 0, %s127
  $region4: #{inception_a_forward.6} parent=0 // loop_header_branch
    %13 = sbr.rel (%p11) target = $region8
  $region5: #{inception_a_forward.6} parent=0 // loop_body
    %s15 = ssub.s32 %s10, 1
    %s16 = ssub.s32 %s10, 2
    %s23 = sadd.s32 1, %s18
    %p24 = scmp.ge.s32.totalorder %s23, 2
    %s25 = scalar_select %p24, 0, %s23
    %s26 = sadd.s32 1, %s17
    %s27 = scalar_select %p24, %s26, %s17
    %p28 = scmp.ge.s32.totalorder %s27, 2
    %s29 = scalar_select %p28, 0, %s27
    %s30 = ssub.s32 %s17, %s29
    %p31 = scmp.eq.s32.totalorder %s30, 0
    %s33 = sadd.s32 %s32, 1
    %s34 = scalar_select %p31, %s32, %s33
    %p37 = pneg %p31
    %p38 = scmp.eq.s32.totalorder %s10, 3
    %p39 = por %p37, %p38
    %p40 = scmp.ne.s32.totalorder %s32, %s35
    %p41 = scmp.eq.s32.totalorder %s10, 0
    %p42 = por %p40, %p41
    %p43 = scmp.ne.s32.totalorder %s32, %s35
    %p44 = scmp.eq.s32.totalorder %s15, 3
    %p45 = por %p43, %p44
    %p46 = scmp.ne.s32.totalorder %s35, %s36
    %p47 = scmp.eq.s32.totalorder %s15, 0
    %p48 = por %p46, %p47
    %p49 = scmp.ne.s32.totalorder %s35, %s36
    %p50 = scmp.eq.s32.totalorder %s16, 3
    %p51 = por %p49, %p50
    %p53 = scmp.ne.s32.totalorder %s36, %s52
    %p54 = scmp.eq.s32.totalorder %s16, 0
    %p55 = por %p53, %p54
    %s57 = sadd.s32 %s56, 1
    %p60 = scmp.eq.s32.totalorder %s10, 3
    %p61 = scmp.ne.s32.totalorder %s56, %s58
    %p62 = scmp.eq.s32.totalorder %s10, 0
    %p63 = por %p61, %p62
    %p64 = scmp.ne.s32.totalorder %s56, %s58
    %p65 = scmp.eq.s32.totalorder %s15, 3
    %p66 = por %p64, %p65
    %p67 = scmp.ne.s32.totalorder %s58, %s59
    %p68 = scmp.eq.s32.totalorder %s15, 0
    %p69 = por %p67, %p68
    %p70 = scmp.ne.s32.totalorder %s58, %s59
    %p71 = scmp.eq.s32.totalorder %s16, 3
    %p72 = por %p70, %p71
    %p74 = scmp.ne.s32.totalorder %s59, %s73
    %p75 = scmp.eq.s32.totalorder %s16, 0
    %p76 = por %p74, %p75
    %s78 = sadd.s32 %s77, 1
    %p81 = scmp.eq.s32.totalorder %s10, 3
    %p82 = scmp.ne.s32.totalorder %s77, %s79
    %p83 = scmp.eq.s32.totalorder %s10, 0
    %p84 = por %p82, %p83
    %p85 = scmp.ne.s32.totalorder %s77, %s79
    %p86 = scmp.eq.s32.totalorder %s15, 3
    %p87 = por %p85, %p86
    %p88 = scmp.ne.s32.totalorder %s79, %s80
    %p89 = scmp.eq.s32.totalorder %s15, 0
    %p90 = por %p88, %p89
    %p91 = scmp.ne.s32.totalorder %s79, %s80
    %p92 = scmp.eq.s32.totalorder %s16, 3
    %p93 = por %p91, %p92
    %p95 = scmp.ne.s32.totalorder %s80, %s94
    %p96 = scmp.eq.s32.totalorder %s16, 0
    %p97 = por %p95, %p96
    %s99 = sadd.s32 %s98, 1
    %p102 = scmp.eq.s32.totalorder %s10, 3
    %p103 = scmp.ne.s32.totalorder %s98, %s100
    %p104 = scmp.eq.s32.totalorder %s10, 0
    %p105 = por %p103, %p104
    %p106 = scmp.ne.s32.totalorder %s98, %s100
    %p107 = scmp.eq.s32.totalorder %s15, 3
    %p108 = por %p106, %p107
    %p109 = scmp.ne.s32.totalorder %s100, %s101
    %p110 = scmp.eq.s32.totalorder %s15, 0
    %p111 = por %p109, %p110
    %p112 = scmp.ne.s32.totalorder %s100, %s101
    %p113 = scmp.eq.s32.totalorder %s16, 3
    %p114 = por %p112, %p113
    %p116 = scmp.ne.s32.totalorder %s101, %s115
    %p117 = scmp.eq.s32.totalorder %s16, 0
    %p118 = por %p116, %p117
    %s119 = ssub.s32 %s17, %s29
    %s120 = ssub.s32 %s18, %s25
    %s121 = sor.u32 %s119, %s120
    %p122 = scmp.eq.s32.totalorder %s121, 0
    %s124 = sadd.s32 %s123, 1
    %s125 = scalar_select %p122, %s123, %s124
    %p128 = pneg %p122
    %p129 = scmp.eq.s32.totalorder %s10, 3
    %p130 = por %p128, %p129
    %p131 = scmp.ne.s32.totalorder %s123, %s126
    %p132 = scmp.eq.s32.totalorder %s10, 0
    %p133 = por %p131, %p132
    %p134 = scmp.ne.s32.totalorder %s123, %s126
    %p135 = scmp.eq.s32.totalorder %s15, 3
    %p136 = por %p134, %p135
    %p137 = scmp.ne.s32.totalorder %s126, %s127
    %p138 = scmp.eq.s32.totalorder %s15, 0
    %p139 = por %p137, %p138
    %p140 = scmp.ne.s32.totalorder %s126, %s127
    %p141 = scmp.eq.s32.totalorder %s16, 3
    %p142 = por %p140, %p141
    %p144 = scmp.ne.s32.totalorder %s127, %s143
    %p145 = scmp.eq.s32.totalorder %s16, 0
    %p146 = por %p144, %p145
    %p147 = scmp.le.s32.totalorder 1, %s10
    %p148 = scmp.lt.s32.totalorder %s10, 5
    %p149 = pnand %p147, %p148
    %p150 = pneg %p149
    // Predicated region
    $region9: #{inception_a_forward.6} parent=5 // pred_check
      _
    $region10: #{inception_a_forward.6} parent=5 // pred_check_branch
      %152 = sbr.rel (%p149) target = $region12
    $region11: #{inception_a_forward.6} parent=5 // pred_region
      %s153 = ssub.s32 %s10, 1
      // Predicated region
      $region13: #{inception_a_forward.6} parent=11 // pred_check
        %p154 = pneg %p69
      $region14: #{inception_a_forward.6} parent=11 // pred_check_branch
        %156 = sbr.rel (%p154) target = $region16
      $region15: #{inception_a_forward.6} parent=11 // pred_region
        _
      $region16: #{inception_a_forward.6} parent=11 // pred_fallthru
        _
      // Predicated region
      $region17: #{inception_a_forward.6} parent=11 // pred_check
        %p157 = pneg %p90
      $region18: #{inception_a_forward.6} parent=11 // pred_check_branch
        %159 = sbr.rel (%p157) target = $region20
      $region19: #{inception_a_forward.6} parent=11 // pred_region
        _
      $region20: #{inception_a_forward.6} parent=11 // pred_fallthru
        _
      // Predicated region
      $region21: #{inception_a_forward.6} parent=11 // pred_check
        %p160 = pneg %p111
      $region22: #{inception_a_forward.6} parent=11 // pred_check_branch
        %162 = sbr.rel (%p160) target = $region24
      $region23: #{inception_a_forward.6} parent=11 // pred_region
        _
      $region24: #{inception_a_forward.6} parent=11 // pred_fallthru
        _
    $region12: #{inception_a_forward.6} parent=5 // pred_fallthru
      _
    %p163 = scmp.lt.s32.totalorder %s10, 4
    // Predicated region
    $region25: #{inception_a_forward.6} parent=5 // pred_check
      %p164 = pneg %p163
    $region26: #{inception_a_forward.6} parent=5 // pred_check_branch
      %166 = sbr.rel (%p164) target = $region28
    $region27: #{inception_a_forward.6} parent=5 // pred_region
      // Predicated region
      $region29: #{inception_a_forward.6} parent=27 // pred_check
        %p167 = pneg %p42
      $region30: #{inception_a_forward.6} parent=27 // pred_check_branch
        %169 = sbr.rel (%p167) target = $region32
      $region31: #{inception_a_forward.6} parent=27 // pred_region
        %p170 = scmp.lt.s32.totalorder %s17, 1
        %s171 = scalar_select %p170, %s17, 1
        %s172 = smul.addr %s171, 54
        %s173 = smul.addr %s172, 4
        %s174 = scalar_lea.vmem %s0, %s173
      $region32: #{inception_a_forward.6} parent=27 // pred_fallthru
        _
    $region28: #{inception_a_forward.6} parent=5 // pred_fallthru
      _
    %p175 = scmp.le.s32.totalorder 1, %s10
    %p176 = scmp.lt.s32.totalorder %s10, 5
    %p177 = pnand %p175, %p176
    %p178 = pneg %p177
    // Predicated region
    $region33: #{inception_a_forward.6} parent=5 // pred_check
      _
    $region34: #{inception_a_forward.6} parent=5 // pred_check_branch
      %180 = sbr.rel (%p177) target = $region36
    $region35: #{inception_a_forward.6} parent=5 // pred_region
      %s181 = ssub.s32 %s10, 1
      %p182 = scmp.lt.s32.totalorder %s19, 1
      %s183 = scalar_select %p182, %s19, 1
      %s184 = smul.addr %s183, 54
      %s185 = smul.addr %s184, 4
      %s186 = scalar_lea.vmem %s0, %s185
      %p187 = pneg %p48
      %p188 = pneg %p45
      %p189 = pneg %p69
      %p190 = pneg %p66
      %p191 = pneg %p90
      %p192 = pneg %p87
      %p193 = pneg %p111
      %p194 = pneg %p108
      %p195 = pneg %p139
      %p196 = pneg %p136
      %s197 = smul.u32 8, %s20
      %p198 = scmp.lt.s32.totalorder %s19, 1
      %s199 = scalar_select %p198, %s19, 1
      %p200 = scmp.lt.s32.totalorder %s197, 15
      %s201 = scalar_select %p200, %s197, 15
      %s202 = smul.addr %s201, 2
      %s203 = smul.addr %s199, 32
      %s204 = sadd.s32 %s202, %s203
      %s205 = smul.addr %s204, 8
      %s206 = scalar_lea.vmem %s4, %s205
      %p207 = scmp.lt.s32.totalorder %s19, 1
      %s208 = scalar_select %p207, %s19, 1
      %s209 = smul.addr %s208, 54
      %s210 = smul.addr %s209, 4
      %s211 = scalar_lea.vmem %s0, %s210
      %s212 = smul.u32 8, %s20
      %p213 = scmp.lt.s32.totalorder %s19, 1
      %s214 = scalar_select %p213, %s19, 1
      %p215 = scmp.lt.s32.totalorder %s212, 15
      %s216 = scalar_select %p215, %s212, 15
      %s217 = smul.addr %s216, 2
      %s218 = smul.addr %s214, 32
      %s219 = sadd.s32 %s217, %s218
      %s220 = smul.addr %s219, 8
      %s221 = scalar_lea.vmem %s4, %s220
      %s222 = smul.u32 8, %s20
      %s224 = smul.u32 %s20, 8
      %s225 = smul.u32 %s224, 3
      %s226 = smul.addr %s225, 4
      %s227 = scalar_lea.vmem %s211, %s226
      %v228 = vld [vmem:[%s227] sm:$0xf]
      %v229 = vld [vmem:[%s227 + $0x4] sm:$0xf]
      %v230 = vld [vmem:[%s227 + $0x8] sm:$0x1]
      %v231 = vld [vmem:[%s227 + $0xc] sm:$0xf]
      %v232 = vld [vmem:[%s227 + $0x10] sm:$0xf]
      %v233 = vld [vmem:[%s227 + $0x14] sm:$0x1]
      %v234 = vld [vmem:[%s227 + $0x18] sm:$0xf]
      %v235 = vld [vmem:[%s227 + $0x1c] sm:$0xf]
      %v236 = vld [vmem:[%s227 + $0x20] sm:$0x1]
      %v237 = vld [vmem:[%s227 + $0x24] sm:$0xf]
      %v238 = vld [vmem:[%s227 + $0x28] sm:$0xf]
      %v239 = vld [vmem:[%s227 + $0x2c] sm:$0x1]
      %v240 = vld [vmem:[%s227 + $0x30] sm:$0xf]
      %v241 = vld [vmem:[%s227 + $0x34] sm:$0xf]
      %v242 = vld [vmem:[%s227 + $0x38] sm:$0x1]
      %v243 = vld [vmem:[%s227 + $0x3c] sm:$0xf]
      %v244 = vld [vmem:[%s227 + $0x40] sm:$0xf]
      %v245 = vld [vmem:[%s227 + $0x44] sm:$0x1]
      %v246 = vld [vmem:[%s227 + $0x48] sm:$0xf]
      %v247 = vld [vmem:[%s227 + $0x4c] sm:$0xf]
      %v248 = vld [vmem:[%s227 + $0x50] sm:$0x1]
      %v249 = vld [vmem:[%s227 + $0x54] sm:$0xf]
      %v250 = vld [vmem:[%s227 + $0x58] sm:$0xf]
      %v251 = vld [vmem:[%s227 + $0x5c] sm:$0x1]
      %v252 = vld [vmem:[%s227 + $0x60] sm:$0xf]
      %v253 = vld [vmem:[%s227 + $0x64] sm:$0xf]
      %v254 = vld [vmem:[%s227 + $0x68] sm:$0x1]
      %v255 = vld [vmem:[%s227 + $0x6c] sm:$0xf]
      %v256 = vld [vmem:[%s227 + $0x70] sm:$0xf]
      %v257 = vld [vmem:[%s227 + $0x74] sm:$0x1]
      %v274 = vunpack.c.l.b16 %v228
      %v275 = vunpack.c.l.b16 %v229
      %v276 = vunpack.c.l.b16 %v231
      %v277 = vunpack.c.l.b16 %v232
      %v278 = vunpack.c.l.b16 %v234
      %v279 = vunpack.c.l.b16 %v235
      %v280 = vunpack.c.l.b16 %v237
      %v281 = vunpack.c.l.b16 %v238
      %v282 = vunpack.c.l.b16 %v240
      %v283 = vunpack.c.l.b16 %v241
      %v284 = vunpack.c.l.b16 %v243
      %v285 = vunpack.c.l.b16 %v244
      %v286 = vunpack.c.l.b16 %v246
      %v287 = vunpack.c.l.b16 %v247
      %v288 = vunpack.c.l.b16 %v249
      %v289 = vunpack.c.l.b16 %v250
      %v290 = vpack.c.b16 %v275, %v274
      %v291 = vpack.c.b16 %v277, %v276
      %v292 = vpack.c.b16 %v279, %v278
      %v293 = vpack.c.b16 %v281, %v280
      %v294 = vpack.c.b16 %v283, %v282
      %v295 = vpack.c.b16 %v285, %v284
      %v296 = vpack.c.b16 %v287, %v286
      %v297 = vpack.c.b16 %v289, %v288
      %v308 = vunpack.c.l.b16 %v252
      %v309 = vunpack.c.l.b16 %v253
      %v310 = vpack.c.b16 %v309, %v308
      %v314 = vunpack.c.l.b16 %v255
      %v315 = vunpack.c.l.b16 %v256
      %v316 = vpack.c.b16 %v315, %v314
      %v318 = vld [vmem:[%s1] sm:$0xf]
      %v319 = vld [vmem:[%s1 + $0x4] sm:$0xf]
      %v320 = vld [vmem:[%s1 + $0x8] sm:$0xf]
      %v321 = vld [vmem:[%s1 + $0xc] sm:$0xf]
      %v322 = vld [vmem:[%s1 + $0x10] sm:$0xf]
      %v323 = vld [vmem:[%s1 + $0x14] sm:$0xf]
      %v324 = vld [vmem:[%s1 + $0x18] sm:$0xf]
      %v325 = vld [vmem:[%s1 + $0x1c] sm:$0xf]
      %v326 = vld [vmem:[%s1 + $0x20] sm:$0xf]
      %v327 = vld [vmem:[%s1 + $0x24] sm:$0xf]
      %v328 = vld [vmem:[%s1 + $0x28] sm:$0xf]
      %v329 = vld [vmem:[%s1 + $0x2c] sm:$0xf]
      %v330 = vld [vmem:[%s1 + $0x30] sm:$0xf]
      %v331 = vld [vmem:[%s1 + $0x34] sm:$0xf]
      %v332 = vld [vmem:[%s1 + $0x38] sm:$0xf]
      %v333 = vld [vmem:[%s1 + $0x3c] sm:$0xf]
      %v334 = vld [vmem:[%s1 + $0x40] sm:$0xf]
      %v335 = vld [vmem:[%s1 + $0x44] sm:$0xf]
      %v336 = vld [vmem:[%s1 + $0x48] sm:$0xf]
      %v337 = vld [vmem:[%s1 + $0x4c] sm:$0xf]
      %v338 = vld [vmem:[%s1 + $0x50] sm:$0xf]
      %v339 = vld [vmem:[%s1 + $0x54] sm:$0xf]
      %v340 = vld [vmem:[%s1 + $0x58] sm:$0xf]
      %v341 = vld [vmem:[%s1 + $0x5c] sm:$0xf]
      %v342 = vld [vmem:[%s1 + $0x60] sm:$0xf]
      %v343 = vld [vmem:[%s1 + $0x64] sm:$0xf]
      %v344 = vld [vmem:[%s1 + $0x68] sm:$0xf]
      %v345 = vld [vmem:[%s1 + $0x6c] sm:$0xf]
      %v346 = vld [vmem:[%s1 + $0x70] sm:$0xf]
      %v347 = vld [vmem:[%s1 + $0x74] sm:$0xf]
      %v348 = vld [vmem:[%s1 + $0x78] sm:$0xf]
      %v349 = vld [vmem:[%s1 + $0x7c] sm:$0xf]
      %v350 = vld [vmem:[%s1 + $0x80] sm:$0xf]
      %v351 = vld [vmem:[%s1 + $0x84] sm:$0xf]
      %v352 = vld [vmem:[%s1 + $0x88] sm:$0xf]
      %v353 = vld [vmem:[%s1 + $0x8c] sm:$0xf]
      %v354 = vld [vmem:[%s1 + $0x90] sm:$0xf]
      %v355 = vld [vmem:[%s1 + $0x94] sm:$0xf]
      %v356 = vld [vmem:[%s1 + $0x98] sm:$0xf]
      %v357 = vld [vmem:[%s1 + $0x9c] sm:$0xf]
      %v358 = vld [vmem:[%s1 + $0xa0] sm:$0xf]
      %v359 = vld [vmem:[%s1 + $0xa4] sm:$0xf]
      %v360 = vld [vmem:[%s1 + $0xa8] sm:$0xf]
      %v361 = vld [vmem:[%s1 + $0xac] sm:$0xf]
      %v362 = vld [vmem:[%s1 + $0xb0] sm:$0xf]
      %v363 = vld [vmem:[%s1 + $0xb4] sm:$0xf]
      %v364 = vld [vmem:[%s1 + $0xb8] sm:$0xf]
      %v365 = vld [vmem:[%s1 + $0xbc] sm:$0xf]
      %v374 = vunpack.c.l.b16 %v230
      %v375 = vunpack.c.l.b16 %v233
      %v376 = vunpack.c.l.b16 %v236
      %v377 = vunpack.c.l.b16 %v239
      %v378 = vunpack.c.l.b16 %v242
      %v379 = vunpack.c.l.b16 %v245
      %v380 = vunpack.c.l.b16 %v248
      %v381 = vunpack.c.l.b16 %v251
      %v382 = vpack.c.b16 %v374, %v374
      %v383 = vpack.c.b16 %v375, %v375
      %v384 = vpack.c.b16 %v376, %v376
      %v385 = vpack.c.b16 %v377, %v377
      %v386 = vpack.c.b16 %v378, %v378
      %v387 = vpack.c.b16 %v379, %v379
      %v388 = vpack.c.b16 %v380, %v380
      %v389 = vpack.c.b16 %v381, %v381
      %v391 = vunpack.c.l.b16 %v254
      %v392 = vpack.c.b16 %v391, %v391
      %v394 = vunpack.c.l.b16 %v257
      %v395 = vpack.c.b16 %v394, %v394
      %vm396 = vsmask.f32 7424
      %v398 = vshrl.u32 %v290, 16
      %v400 = vshll.u32 %v290, 16
      %v402 = vrot.slane %v400, 1
      %v403 = vor.u32 %v398, %v402
      %v405 = vshll.u32 %v382, 16
      %v407 = vrot.slane %v405, 1
      %v408 = vsel %vm396, %v403, %v407
      %v410 = vshrl.u32 %v291, 16
      %v412 = vshll.u32 %v291, 16
      %v414 = vrot.slane %v412, 1
      %v415 = vor.u32 %v410, %v414
      %v417 = vshll.u32 %v383, 16
      %v419 = vrot.slane %v417, 1
      %v420 = vsel %vm396, %v415, %v419
      %v422 = vshrl.u32 %v292, 16
      %v424 = vshll.u32 %v292, 16
      %v426 = vrot.slane %v424, 1
      %v427 = vor.u32 %v422, %v426
      %v429 = vshll.u32 %v384, 16
      %v431 = vrot.slane %v429, 1
      %v432 = vsel %vm396, %v427, %v431
      %v434 = vshrl.u32 %v293, 16
      %v436 = vshll.u32 %v293, 16
      %v438 = vrot.slane %v436, 1
      %v439 = vor.u32 %v434, %v438
      %v441 = vshll.u32 %v385, 16
      %v443 = vrot.slane %v441, 1
      %v444 = vsel %vm396, %v439, %v443
      %v446 = vshrl.u32 %v294, 16
      %v448 = vshll.u32 %v294, 16
      %v450 = vrot.slane %v448, 1
      %v451 = vor.u32 %v446, %v450
      %v453 = vshll.u32 %v386, 16
      %v455 = vrot.slane %v453, 1
      %v456 = vsel %vm396, %v451, %v455
      %v458 = vshrl.u32 %v295, 16
      %v460 = vshll.u32 %v295, 16
      %v462 = vrot.slane %v460, 1
      %v463 = vor.u32 %v458, %v462
      %v465 = vshll.u32 %v387, 16
      %v467 = vrot.slane %v465, 1
      %v468 = vsel %vm396, %v463, %v467
      %v470 = vshrl.u32 %v296, 16
      %v472 = vshll.u32 %v296, 16
      %v474 = vrot.slane %v472, 1
      %v475 = vor.u32 %v470, %v474
      %v477 = vshll.u32 %v388, 16
      %v479 = vrot.slane %v477, 1
      %v480 = vsel %vm396, %v475, %v479
      %v482 = vshrl.u32 %v297, 16
      %v484 = vshll.u32 %v297, 16
      %v486 = vrot.slane %v484, 1
      %v487 = vor.u32 %v482, %v486
      %v489 = vshll.u32 %v389, 16
      %v491 = vrot.slane %v489, 1
      %v492 = vsel %vm396, %v487, %v491
      %v494 = vshrl.u32 %v310, 16
      %v496 = vshll.u32 %v310, 16
      %v498 = vrot.slane %v496, 1
      %v499 = vor.u32 %v494, %v498
      %v501 = vshll.u32 %v392, 16
      %v503 = vrot.slane %v501, 1
      %v504 = vsel %vm396, %v499, %v503
      %v506 = vshrl.u32 %v316, 16
      %v508 = vshll.u32 %v316, 16
      %v510 = vrot.slane %v508, 1
      %v511 = vor.u32 %v506, %v510
      %v513 = vshll.u32 %v395, 16
      %v515 = vrot.slane %v513, 1
      %v516 = vsel %vm396, %v511, %v515
      %s527 = scalar_lea.vmem %s1, 192
      %v528 = vld [vmem:[%s527] sm:$0xf]
      %v529 = vld [vmem:[%s527 + $0x4] sm:$0xf]
      %v530 = vld [vmem:[%s527 + $0x8] sm:$0xf]
      %v531 = vld [vmem:[%s527 + $0xc] sm:$0xf]
      %v532 = vld [vmem:[%s527 + $0x10] sm:$0xf]
      %v533 = vld [vmem:[%s527 + $0x14] sm:$0xf]
      %v534 = vld [vmem:[%s527 + $0x18] sm:$0xf]
      %v535 = vld [vmem:[%s527 + $0x1c] sm:$0xf]
      %v536 = vld [vmem:[%s527 + $0x20] sm:$0xf]
      %v537 = vld [vmem:[%s527 + $0x24] sm:$0xf]
      %v538 = vld [vmem:[%s527 + $0x28] sm:$0xf]
      %v539 = vld [vmem:[%s527 + $0x2c] sm:$0xf]
      %v540 = vld [vmem:[%s527 + $0x30] sm:$0xf]
      %v541 = vld [vmem:[%s527 + $0x34] sm:$0xf]
      %v542 = vld [vmem:[%s527 + $0x38] sm:$0xf]
      %v543 = vld [vmem:[%s527 + $0x3c] sm:$0xf]
      %v544 = vld [vmem:[%s527 + $0x40] sm:$0xf]
      %v545 = vld [vmem:[%s527 + $0x44] sm:$0xf]
      %v546 = vld [vmem:[%s527 + $0x48] sm:$0xf]
      %v547 = vld [vmem:[%s527 + $0x4c] sm:$0xf]
      %v548 = vld [vmem:[%s527 + $0x50] sm:$0xf]
      %v549 = vld [vmem:[%s527 + $0x54] sm:$0xf]
      %v550 = vld [vmem:[%s527 + $0x58] sm:$0xf]
      %v551 = vld [vmem:[%s527 + $0x5c] sm:$0xf]
      %v552 = vld [vmem:[%s527 + $0x60] sm:$0xf]
      %v553 = vld [vmem:[%s527 + $0x64] sm:$0xf]
      %v554 = vld [vmem:[%s527 + $0x68] sm:$0xf]
      %v555 = vld [vmem:[%s527 + $0x6c] sm:$0xf]
      %v556 = vld [vmem:[%s527 + $0x70] sm:$0xf]
      %v557 = vld [vmem:[%s527 + $0x74] sm:$0xf]
      %v558 = vld [vmem:[%s527 + $0x78] sm:$0xf]
      %v559 = vld [vmem:[%s527 + $0x7c] sm:$0xf]
      %v560 = vld [vmem:[%s527 + $0x80] sm:$0xf]
      %v561 = vld [vmem:[%s527 + $0x84] sm:$0xf]
      %v562 = vld [vmem:[%s527 + $0x88] sm:$0xf]
      %v563 = vld [vmem:[%s527 + $0x8c] sm:$0xf]
      %v564 = vld [vmem:[%s527 + $0x90] sm:$0xf]
      %v565 = vld [vmem:[%s527 + $0x94] sm:$0xf]
      %v566 = vld [vmem:[%s527 + $0x98] sm:$0xf]
      %v567 = vld [vmem:[%s527 + $0x9c] sm:$0xf]
      %v568 = vld [vmem:[%s527 + $0xa0] sm:$0xf]
      %v569 = vld [vmem:[%s527 + $0xa4] sm:$0xf]
      %v570 = vld [vmem:[%s527 + $0xa8] sm:$0xf]
      %v571 = vld [vmem:[%s527 + $0xac] sm:$0xf]
      %v572 = vld [vmem:[%s527 + $0xb0] sm:$0xf]
      %v573 = vld [vmem:[%s527 + $0xb4] sm:$0xf]
      %v574 = vld [vmem:[%s527 + $0xb8] sm:$0xf]
      %v575 = vld [vmem:[%s527 + $0xbc] sm:$0xf]
      %v624 = vunpack.c.l.b16 %v528
      %v625 = vunpack.c.l.b16 %v529
      %v626 = vunpack.c.l.b16 %v530
      %v627 = vunpack.c.l.b16 %v531
      %v628 = vunpack.c.l.b16 %v532
      %v629 = vunpack.c.l.b16 %v533
      %v630 = vunpack.c.l.b16 %v534
      %v631 = vunpack.c.l.b16 %v535
      %v632 = vunpack.c.l.b16 %v536
      %v633 = vunpack.c.l.b16 %v537
      %v634 = vunpack.c.l.b16 %v538
      %v635 = vunpack.c.l.b16 %v539
      %v636 = vunpack.c.l.b16 %v540
      %v637 = vunpack.c.l.b16 %v541
      %v638 = vunpack.c.l.b16 %v542
      %v639 = vunpack.c.l.b16 %v543
      %v640 = vunpack.c.l.b16 %v544
      %v641 = vunpack.c.l.b16 %v545
      %v642 = vunpack.c.l.b16 %v546
      %v643 = vunpack.c.l.b16 %v547
      %v644 = vunpack.c.l.b16 %v548
      %v645 = vunpack.c.l.b16 %v549
      %v646 = vunpack.c.l.b16 %v550
      %v647 = vunpack.c.l.b16 %v551
      %v648 = vunpack.c.l.b16 %v552
      %v649 = vunpack.c.l.b16 %v553
      %v650 = vunpack.c.l.b16 %v554
      %v651 = vunpack.c.l.b16 %v555
      %v652 = vunpack.c.l.b16 %v556
      %v653 = vunpack.c.l.b16 %v557
      %v654 = vunpack.c.l.b16 %v558
      %v655 = vunpack.c.l.b16 %v559
      %v656 = vunpack.c.l.b16 %v560
      %v657 = vunpack.c.l.b16 %v561
      %v658 = vunpack.c.l.b16 %v562
      %v659 = vunpack.c.l.b16 %v563
      %v660 = vunpack.c.l.b16 %v564
      %v661 = vunpack.c.l.b16 %v565
      %v662 = vunpack.c.l.b16 %v566
      %v663 = vunpack.c.l.b16 %v567
      %v664 = vunpack.c.l.b16 %v568
      %v665 = vunpack.c.l.b16 %v569
      %v666 = vunpack.c.l.b16 %v570
      %v667 = vunpack.c.l.b16 %v571
      %v668 = vunpack.c.l.b16 %v572
      %v669 = vunpack.c.l.b16 %v573
      %v670 = vunpack.c.l.b16 %v574
      %v671 = vunpack.c.l.b16 %v575
      %v672 = vpack.c.b16 %v625, %v624
      %v673 = vpack.c.b16 %v627, %v626
      %v674 = vpack.c.b16 %v629, %v628
      %v675 = vpack.c.b16 %v631, %v630
      %v676 = vpack.c.b16 %v633, %v632
      %v677 = vpack.c.b16 %v635, %v634
      %v678 = vpack.c.b16 %v637, %v636
      %v679 = vpack.c.b16 %v639, %v638
      %v680 = vpack.c.b16 %v641, %v640
      %v681 = vpack.c.b16 %v643, %v642
      %v682 = vpack.c.b16 %v645, %v644
      %v683 = vpack.c.b16 %v647, %v646
      %v684 = vpack.c.b16 %v649, %v648
      %v685 = vpack.c.b16 %v651, %v650
      %v686 = vpack.c.b16 %v653, %v652
      %v687 = vpack.c.b16 %v655, %v654
      %v688 = vpack.c.b16 %v657, %v656
      %v689 = vpack.c.b16 %v659, %v658
      %v690 = vpack.c.b16 %v661, %v660
      %v691 = vpack.c.b16 %v663, %v662
      %v692 = vpack.c.b16 %v665, %v664
      %v693 = vpack.c.b16 %v667, %v666
      %v694 = vpack.c.b16 %v669, %v668
      %v695 = vpack.c.b16 %v671, %v670
      %720 = vmatprep.subr.bf16.mxu0 0
      %721 = vmatpush1.bf16.msra.mxu0 %v679
      %722 = vmatprep.subr.bf16.mxu0 0
      %723 = vmatpush1.bf16.msra.mxu0 %v678
      %724 = vmatprep.subr.bf16.mxu0 0
      %725 = vmatpush1.bf16.msra.mxu0 %v677
      %726 = vmatprep.subr.bf16.mxu0 0
      %727 = vmatpush1.bf16.msra.mxu0 %v676
      %728 = vmatprep.subr.bf16.mxu0 0
      %729 = vmatpush1.bf16.msra.mxu0 %v675
      %730 = vmatprep.subr.bf16.mxu0 0
      %731 = vmatpush1.bf16.msra.mxu0 %v674
      %732 = vmatprep.subr.bf16.mxu0 0
      %733 = vmatpush1.bf16.msra.mxu0 %v673
      %734 = vmatprep.subr.bf16.mxu0 0
      %735 = vmatpush1.bf16.msra.mxu0 %v672
      %736 = vmatprep.subr.bf16.mxu0 0
      %737 = vmatpush2.bf16.msra.mxu0 %v687
      %738 = vmatprep.subr.bf16.mxu0 0
      %739 = vmatpush2.bf16.msra.mxu0 %v686
      %740 = vmatprep.subr.bf16.mxu0 0
      %741 = vmatpush2.bf16.msra.mxu0 %v685
      %742 = vmatprep.subr.bf16.mxu0 0
      %743 = vmatpush2.bf16.msra.mxu0 %v684
      %744 = vmatprep.subr.bf16.mxu0 0
      %745 = vmatpush2.bf16.msra.mxu0 %v683
      %746 = vmatprep.subr.bf16.mxu0 0
      %747 = vmatpush2.bf16.msra.mxu0 %v682
      %748 = vmatprep.subr.bf16.mxu0 0
      %749 = vmatpush2.bf16.msra.mxu0 %v681
      %750 = vmatprep.subr.bf16.mxu0 0
      %751 = vmatpush2.bf16.msra.mxu0 %v680
      %752 = vmatprep.mubr.bf16.mxu0 %v420
      %753 = vmatmul.mubr.bf16.gmra.mxu0 %v408
      %v754 = vpop.f32.mrf.mxu0
      %v755 = vadd.f32 0.0, %v754
      %v756 = vpop.f32.mrf.mxu0
      %v757 = vpop.f32.mrf.mxu0
      %v758 = vadd.f32 0.0, %v757
      %v759 = vpop.f32.mrf.mxu0
      %760 = vmatprep.mubr.bf16.mxu0 %v432
      %761 = vmatmul.mubr.bf16.gmra.mxu0 %v420
      %v762 = vpop.f32.mrf.mxu0
      %v763 = vadd.f32 0.0, %v762
      %v764 = vpop.f32.mrf.mxu0
      %v765 = vpop.f32.mrf.mxu0
      %v766 = vadd.f32 0.0, %v765
      %v767 = vpop.f32.mrf.mxu0
      %768 = vmatprep.mubr.bf16.mxu0 %v444
      %769 = vmatmul.mubr.bf16.gmra.mxu0 %v432
      %v770 = vpop.f32.mrf.mxu0
      %v771 = vadd.f32 0.0, %v770
      %v772 = vpop.f32.mrf.mxu0
      %v773 = vpop.f32.mrf.mxu0
      %v774 = vadd.f32 0.0, %v773
      %v775 = vpop.f32.mrf.mxu0
      %776 = vmatprep.mubr.bf16.mxu0 %v456
      %777 = vmatmul.mubr.bf16.gmra.mxu0 %v444
      %v778 = vpop.f32.mrf.mxu0
      %v779 = vadd.f32 0.0, %v778
      %v780 = vpop.f32.mrf.mxu0
      %v781 = vpop.f32.mrf.mxu0
      %v782 = vadd.f32 0.0, %v781
      %v783 = vpop.f32.mrf.mxu0
      %784 = vmatprep.mubr.bf16.mxu0 %v468
      %785 = vmatmul.mubr.bf16.gmra.mxu0 %v456
      %v786 = vpop.f32.mrf.mxu0
      %v787 = vadd.f32 0.0, %v786
      %v788 = vpop.f32.mrf.mxu0
      %v789 = vpop.f32.mrf.mxu0
      %v790 = vadd.f32 0.0, %v789
      %v791 = vpop.f32.mrf.mxu0
      %792 = vmatprep.mubr.bf16.mxu0 %v480
      %793 = vmatmul.mubr.bf16.gmra.mxu0 %v468
      %v794 = vpop.f32.mrf.mxu0
      %v795 = vadd.f32 0.0, %v794
      %v796 = vpop.f32.mrf.mxu0
      %v797 = vpop.f32.mrf.mxu0
      %v798 = vadd.f32 0.0, %v797
      %v799 = vpop.f32.mrf.mxu0
      %800 = vmatprep.mubr.bf16.mxu0 %v492
      %801 = vmatmul.mubr.bf16.gmra.mxu0 %v480
      %v802 = vpop.f32.mrf.mxu0
      %v803 = vadd.f32 0.0, %v802
      %v804 = vpop.f32.mrf.mxu0
      %v805 = vpop.f32.mrf.mxu0
      %v806 = vadd.f32 0.0, %v805
      %v807 = vpop.f32.mrf.mxu0
      %808 = vmatprep.mubr.bf16.mxu0 %v504
      %809 = vmatmul.mubr.bf16.gmra.mxu0 %v492
      %v810 = vpop.f32.mrf.mxu0
      %v811 = vadd.f32 0.0, %v810
      %v812 = vpop.f32.mrf.mxu0
      %v813 = vpop.f32.mrf.mxu0
      %v814 = vadd.f32 0.0, %v813
      %v815 = vpop.f32.mrf.mxu0
      %816 = vdwg.mxu0
      %817 = vmatprep.subr.bf16.mxu0 0
      %818 = vmatpush1.bf16.msra.mxu0 %v695
      %819 = vmatprep.subr.bf16.mxu0 0
      %820 = vmatpush1.bf16.msra.mxu0 %v694
      %821 = vmatprep.subr.bf16.mxu0 0
      %822 = vmatpush1.bf16.msra.mxu0 %v693
      %823 = vmatprep.subr.bf16.mxu0 0
      %824 = vmatpush1.bf16.msra.mxu0 %v692
      %825 = vmatprep.subr.bf16.mxu0 0
      %826 = vmatpush1.bf16.msra.mxu0 %v691
      %827 = vmatprep.subr.bf16.mxu0 0
      %828 = vmatpush1.bf16.msra.mxu0 %v690
      %829 = vmatprep.subr.bf16.mxu0 0
      %830 = vmatpush1.bf16.msra.mxu0 %v689
      %831 = vmatprep.subr.bf16.mxu0 0
      %832 = vmatpush1.bf16.msra.mxu0 %v688
      %833 = vmatprep.subr.bf16.mxu0 0
      %834 = vmatpush2.bf16.msra.mxu0 0
      %835 = vmatprep.subr.bf16.mxu0 0
      %836 = vmatpush2.bf16.msra.mxu0 0
      %837 = vmatprep.subr.bf16.mxu0 0
      %838 = vmatpush2.bf16.msra.mxu0 0
      %839 = vmatprep.subr.bf16.mxu0 0
      %840 = vmatpush2.bf16.msra.mxu0 0
      %841 = vmatprep.subr.bf16.mxu0 0
      %842 = vmatpush2.bf16.msra.mxu0 0
      %843 = vmatprep.subr.bf16.mxu0 0
      %844 = vmatpush2.bf16.msra.mxu0 0
      %845 = vmatprep.subr.bf16.mxu0 0
      %846 = vmatpush2.bf16.msra.mxu0 0
      %847 = vmatprep.subr.bf16.mxu0 0
      %848 = vmatpush2.bf16.msra.mxu0 0
      %849 = vmatprep.mubr.bf16.mxu0 0
      %850 = vmatmul.mubr.bf16.gmra.mxu0 %v432
      %v851 = vpop.f32.mrf.mxu0
      %v852 = vadd.f32 %v755, %v851
      %v853 = vpop.f32.mrf.mxu0
      %v854 = vpop.f32.mrf.mxu0
      %v855 = vadd.f32 %v758, %v854
      %v856 = vpop.f32.mrf.mxu0
      %857 = vmatprep.mubr.bf16.mxu0 0
      %858 = vmatmul.mubr.bf16.gmra.mxu0 %v444
      %v859 = vpop.f32.mrf.mxu0
      %v860 = vadd.f32 %v763, %v859
      %v861 = vpop.f32.mrf.mxu0
      %v862 = vpop.f32.mrf.mxu0
      %v863 = vadd.f32 %v766, %v862
      %v864 = vpop.f32.mrf.mxu0
      %865 = vmatprep.mubr.bf16.mxu0 0
      %866 = vmatmul.mubr.bf16.gmra.mxu0 %v456
      %v867 = vpop.f32.mrf.mxu0
      %v868 = vadd.f32 %v771, %v867
      %v869 = vpop.f32.mrf.mxu0
      %v870 = vpop.f32.mrf.mxu0
      %v871 = vadd.f32 %v774, %v870
      %v872 = vpop.f32.mrf.mxu0
      %873 = vmatprep.mubr.bf16.mxu0 0
      %874 = vmatmul.mubr.bf16.gmra.mxu0 %v468
      %v875 = vpop.f32.mrf.mxu0
      %v876 = vadd.f32 %v779, %v875
      %v877 = vpop.f32.mrf.mxu0
      %v878 = vpop.f32.mrf.mxu0
      %v879 = vadd.f32 %v782, %v878
      %v880 = vpop.f32.mrf.mxu0
      %881 = vmatprep.mubr.bf16.mxu0 0
      %882 = vmatmul.mubr.bf16.gmra.mxu0 %v480
      %v883 = vpop.f32.mrf.mxu0
      %v884 = vadd.f32 %v787, %v883
      %v885 = vpop.f32.mrf.mxu0
      %v886 = vpop.f32.mrf.mxu0
      %v887 = vadd.f32 %v790, %v886
      %v888 = vpop.f32.mrf.mxu0
      %889 = vmatprep.mubr.bf16.mxu0 0
      %890 = vmatmul.mubr.bf16.gmra.mxu0 %v492
      %v891 = vpop.f32.mrf.mxu0
      %v892 = vadd.f32 %v795, %v891
      %v893 = vpop.f32.mrf.mxu0
      %v894 = vpop.f32.mrf.mxu0
      %v895 = vadd.f32 %v798, %v894
      %v896 = vpop.f32.mrf.mxu0
      %897 = vmatprep.mubr.bf16.mxu0 0
      %898 = vmatmul.mubr.bf16.gmra.mxu0 %v504
      %v899 = vpop.f32.mrf.mxu0
      %v900 = vadd.f32 %v803, %v899
      %v901 = vpop.f32.mrf.mxu0
      %v902 = vpop.f32.mrf.mxu0
      %v903 = vadd.f32 %v806, %v902
      %v904 = vpop.f32.mrf.mxu0
      %905 = vmatprep.mubr.bf16.mxu0 0
      %906 = vmatmul.mubr.bf16.gmra.mxu0 %v516
      %v907 = vpop.f32.mrf.mxu0
      %v908 = vadd.f32 %v811, %v907
      %v909 = vpop.f32.mrf.mxu0
      %v910 = vpop.f32.mrf.mxu0
      %v911 = vadd.f32 %v814, %v910
      %v912 = vpop.f32.mrf.mxu0
      %913 = vdwg.mxu0
      %v962 = vunpack.c.l.b16 %v318
      %v963 = vunpack.c.l.b16 %v319
      %v964 = vunpack.c.l.b16 %v320
      %v965 = vunpack.c.l.b16 %v321
      %v966 = vunpack.c.l.b16 %v322
      %v967 = vunpack.c.l.b16 %v323
      %v968 = vunpack.c.l.b16 %v324
      %v969 = vunpack.c.l.b16 %v325
      %v970 = vunpack.c.l.b16 %v326
      %v971 = vunpack.c.l.b16 %v327
      %v972 = vunpack.c.l.b16 %v328
      %v973 = vunpack.c.l.b16 %v329
      %v974 = vunpack.c.l.b16 %v330
      %v975 = vunpack.c.l.b16 %v331
      %v976 = vunpack.c.l.b16 %v332
      %v977 = vunpack.c.l.b16 %v333
      %v978 = vunpack.c.l.b16 %v334
      %v979 = vunpack.c.l.b16 %v335
      %v980 = vunpack.c.l.b16 %v336
      %v981 = vunpack.c.l.b16 %v337
      %v982 = vunpack.c.l.b16 %v338
      %v983 = vunpack.c.l.b16 %v339
      %v984 = vunpack.c.l.b16 %v340
      %v985 = vunpack.c.l.b16 %v341
      %v986 = vunpack.c.l.b16 %v342
      %v987 = vunpack.c.l.b16 %v343
      %v988 = vunpack.c.l.b16 %v344
      %v989 = vunpack.c.l.b16 %v345
      %v990 = vunpack.c.l.b16 %v346
      %v991 = vunpack.c.l.b16 %v347
      %v992 = vunpack.c.l.b16 %v348
      %v993 = vunpack.c.l.b16 %v349
      %v994 = vunpack.c.l.b16 %v350
      %v995 = vunpack.c.l.b16 %v351
      %v996 = vunpack.c.l.b16 %v352
      %v997 = vunpack.c.l.b16 %v353
      %v998 = vunpack.c.l.b16 %v354
      %v999 = vunpack.c.l.b16 %v355
      %v1000 = vunpack.c.l.b16 %v356
      %v1001 = vunpack.c.l.b16 %v357
      %v1002 = vunpack.c.l.b16 %v358
      %v1003 = vunpack.c.l.b16 %v359
      %v1004 = vunpack.c.l.b16 %v360
      %v1005 = vunpack.c.l.b16 %v361
      %v1006 = vunpack.c.l.b16 %v362
      %v1007 = vunpack.c.l.b16 %v363
      %v1008 = vunpack.c.l.b16 %v364
      %v1009 = vunpack.c.l.b16 %v365
      %v1010 = vpack.c.b16 %v963, %v962
      %v1011 = vpack.c.b16 %v965, %v964
      %v1012 = vpack.c.b16 %v967, %v966
      %v1013 = vpack.c.b16 %v969, %v968
      %v1014 = vpack.c.b16 %v971, %v970
      %v1015 = vpack.c.b16 %v973, %v972
      %v1016 = vpack.c.b16 %v975, %v974
      %v1017 = vpack.c.b16 %v977, %v976
      %v1018 = vpack.c.b16 %v979, %v978
      %v1019 = vpack.c.b16 %v981, %v980
      %v1020 = vpack.c.b16 %v983, %v982
      %v1021 = vpack.c.b16 %v985, %v984
      %v1022 = vpack.c.b16 %v987, %v986
      %v1023 = vpack.c.b16 %v989, %v988
      %v1024 = vpack.c.b16 %v991, %v990
      %v1025 = vpack.c.b16 %v993, %v992
      %v1026 = vpack.c.b16 %v995, %v994
      %v1027 = vpack.c.b16 %v997, %v996
      %v1028 = vpack.c.b16 %v999, %v998
      %v1029 = vpack.c.b16 %v1001, %v1000
      %v1030 = vpack.c.b16 %v1003, %v1002
      %v1031 = vpack.c.b16 %v1005, %v1004
      %v1032 = vpack.c.b16 %v1007, %v1006
      %v1033 = vpack.c.b16 %v1009, %v1008
      %1058 = vmatprep.subr.bf16.mxu0 0
      %1059 = vmatpush1.bf16.msra.mxu0 %v1017
      %1060 = vmatprep.subr.bf16.mxu0 0
      %1061 = vmatpush1.bf16.msra.mxu0 %v1016
      %1062 = vmatprep.subr.bf16.mxu0 0
      %1063 = vmatpush1.bf16.msra.mxu0 %v1015
      %1064 = vmatprep.subr.bf16.mxu0 0
      %1065 = vmatpush1.bf16.msra.mxu0 %v1014
      %1066 = vmatprep.subr.bf16.mxu0 0
      %1067 = vmatpush1.bf16.msra.mxu0 %v1013
      %1068 = vmatprep.subr.bf16.mxu0 0
      %1069 = vmatpush1.bf16.msra.mxu0 %v1012
      %1070 = vmatprep.subr.bf16.mxu0 0
      %1071 = vmatpush1.bf16.msra.mxu0 %v1011
      %1072 = vmatprep.subr.bf16.mxu0 0
      %1073 = vmatpush1.bf16.msra.mxu0 %v1010
      %1074 = vmatprep.subr.bf16.mxu0 0
      %1075 = vmatpush2.bf16.msra.mxu0 %v1025
      %1076 = vmatprep.subr.bf16.mxu0 0
      %1077 = vmatpush2.bf16.msra.mxu0 %v1024
      %1078 = vmatprep.subr.bf16.mxu0 0
      %1079 = vmatpush2.bf16.msra.mxu0 %v1023
      %1080 = vmatprep.subr.bf16.mxu0 0
      %1081 = vmatpush2.bf16.msra.mxu0 %v1022
      %1082 = vmatprep.subr.bf16.mxu0 0
      %1083 = vmatpush2.bf16.msra.mxu0 %v1021
      %1084 = vmatprep.subr.bf16.mxu0 0
      %1085 = vmatpush2.bf16.msra.mxu0 %v1020
      %1086 = vmatprep.subr.bf16.mxu0 0
      %1087 = vmatpush2.bf16.msra.mxu0 %v1019
      %1088 = vmatprep.subr.bf16.mxu0 0
      %1089 = vmatpush2.bf16.msra.mxu0 %v1018
      %1090 = vmatprep.mubr.bf16.mxu0 %v291
      %1091 = vmatmul.mubr.bf16.gmra.mxu0 %v290
      %v1092 = vpop.f32.mrf.mxu0
      %v1093 = vadd.f32 %v852, %v1092
      %v1094 = vpop.f32.mrf.mxu0
      %v1095 = vpop.f32.mrf.mxu0
      %v1096 = vadd.f32 %v855, %v1095
      %v1097 = vpop.f32.mrf.mxu0
      %1098 = vmatprep.mubr.bf16.mxu0 %v292
      %1099 = vmatmul.mubr.bf16.gmra.mxu0 %v291
      %v1100 = vpop.f32.mrf.mxu0
      %v1101 = vadd.f32 %v860, %v1100
      %v1102 = vpop.f32.mrf.mxu0
      %v1103 = vpop.f32.mrf.mxu0
      %v1104 = vadd.f32 %v863, %v1103
      %v1105 = vpop.f32.mrf.mxu0
      %1106 = vmatprep.mubr.bf16.mxu0 %v293
      %1107 = vmatmul.mubr.bf16.gmra.mxu0 %v292
      %v1108 = vpop.f32.mrf.mxu0
      %v1109 = vadd.f32 %v868, %v1108
      %v1110 = vpop.f32.mrf.mxu0
      %v1111 = vpop.f32.mrf.mxu0
      %v1112 = vadd.f32 %v871, %v1111
      %v1113 = vpop.f32.mrf.mxu0
      %1114 = vmatprep.mubr.bf16.mxu0 %v294
      %1115 = vmatmul.mubr.bf16.gmra.mxu0 %v293
      %v1116 = vpop.f32.mrf.mxu0
      %v1117 = vadd.f32 %v876, %v1116
      %v1118 = vpop.f32.mrf.mxu0
      %v1119 = vpop.f32.mrf.mxu0
      %v1120 = vadd.f32 %v879, %v1119
      %v1121 = vpop.f32.mrf.mxu0
      %1122 = vmatprep.mubr.bf16.mxu0 %v295
      %1123 = vmatmul.mubr.bf16.gmra.mxu0 %v294
      %v1124 = vpop.f32.mrf.mxu0
      %v1125 = vadd.f32 %v884, %v1124
      %v1126 = vpop.f32.mrf.mxu0
      %v1127 = vpop.f32.mrf.mxu0
      %v1128 = vadd.f32 %v887, %v1127
      %v1129 = vpop.f32.mrf.mxu0
      %1130 = vmatprep.mubr.bf16.mxu0 %v296
      %1131 = vmatmul.mubr.bf16.gmra.mxu0 %v295
      %v1132 = vpop.f32.mrf.mxu0
      %v1133 = vadd.f32 %v892, %v1132
      %v1134 = vpop.f32.mrf.mxu0
      %v1135 = vpop.f32.mrf.mxu0
      %v1136 = vadd.f32 %v895, %v1135
      %v1137 = vpop.f32.mrf.mxu0
      %1138 = vmatprep.mubr.bf16.mxu0 %v297
      %1139 = vmatmul.mubr.bf16.gmra.mxu0 %v296
      %v1140 = vpop.f32.mrf.mxu0
      %v1141 = vadd.f32 %v900, %v1140
      %v1142 = vpop.f32.mrf.mxu0
      %v1143 = vpop.f32.mrf.mxu0
      %v1144 = vadd.f32 %v903, %v1143
      %v1145 = vpop.f32.mrf.mxu0
      %1146 = vmatprep.mubr.bf16.mxu0 %v310
      %1147 = vmatmul.mubr.bf16.gmra.mxu0 %v297
      %v1148 = vpop.f32.mrf.mxu0
      %v1149 = vadd.f32 %v908, %v1148
      %v1150 = vpop.f32.mrf.mxu0
      %v1151 = vpop.f32.mrf.mxu0
      %v1152 = vadd.f32 %v911, %v1151
      %v1153 = vpop.f32.mrf.mxu0
      %1154 = vdwg.mxu0
      %1155 = vmatprep.subr.bf16.mxu0 0
      %1156 = vmatpush1.bf16.msra.mxu0 %v1033
      %1157 = vmatprep.subr.bf16.mxu0 0
      %1158 = vmatpush1.bf16.msra.mxu0 %v1032
      %1159 = vmatprep.subr.bf16.mxu0 0
      %1160 = vmatpush1.bf16.msra.mxu0 %v1031
      %1161 = vmatprep.subr.bf16.mxu0 0
      %1162 = vmatpush1.bf16.msra.mxu0 %v1030
      %1163 = vmatprep.subr.bf16.mxu0 0
      %1164 = vmatpush1.bf16.msra.mxu0 %v1029
      %1165 = vmatprep.subr.bf16.mxu0 0
      %1166 = vmatpush1.bf16.msra.mxu0 %v1028
      %1167 = vmatprep.subr.bf16.mxu0 0
      %1168 = vmatpush1.bf16.msra.mxu0 %v1027
      %1169 = vmatprep.subr.bf16.mxu0 0
      %1170 = vmatpush1.bf16.msra.mxu0 %v1026
      %1171 = vmatprep.subr.bf16.mxu0 0
      %1172 = vmatpush2.bf16.msra.mxu0 0
      %1173 = vmatprep.subr.bf16.mxu0 0
      %1174 = vmatpush2.bf16.msra.mxu0 0
      %1175 = vmatprep.subr.bf16.mxu0 0
      %1176 = vmatpush2.bf16.msra.mxu0 0
      %1177 = vmatprep.subr.bf16.mxu0 0
      %1178 = vmatpush2.bf16.msra.mxu0 0
      %1179 = vmatprep.subr.bf16.mxu0 0
      %1180 = vmatpush2.bf16.msra.mxu0 0
      %1181 = vmatprep.subr.bf16.mxu0 0
      %1182 = vmatpush2.bf16.msra.mxu0 0
      %1183 = vmatprep.subr.bf16.mxu0 0
      %1184 = vmatpush2.bf16.msra.mxu0 0
      %1185 = vmatprep.subr.bf16.mxu0 0
      %1186 = vmatpush2.bf16.msra.mxu0 0
      %1187 = vmatprep.mubr.bf16.mxu0 0
      %1188 = vmatmul.mubr.bf16.gmra.mxu0 %v292
      %v1189 = vpop.f32.mrf.mxu0
      %v1190 = vadd.f32 %v1093, %v1189
      %v1191 = vpop.f32.mrf.mxu0
      %v1192 = vpop.f32.mrf.mxu0
      %v1193 = vadd.f32 %v1096, %v1192
      %v1194 = vpop.f32.mrf.mxu0
      %1195 = vmatprep.mubr.bf16.mxu0 0
      %1196 = vmatmul.mubr.bf16.gmra.mxu0 %v293
      %v1197 = vpop.f32.mrf.mxu0
      %v1198 = vadd.f32 %v1101, %v1197
      %v1199 = vpop.f32.mrf.mxu0
      %v1200 = vpop.f32.mrf.mxu0
      %v1201 = vadd.f32 %v1104, %v1200
      %v1202 = vpop.f32.mrf.mxu0
      %1203 = vmatprep.mubr.bf16.mxu0 0
      %1204 = vmatmul.mubr.bf16.gmra.mxu0 %v294
      %v1205 = vpop.f32.mrf.mxu0
      %v1206 = vadd.f32 %v1109, %v1205
      %v1207 = vpop.f32.mrf.mxu0
      %v1208 = vpop.f32.mrf.mxu0
      %v1209 = vadd.f32 %v1112, %v1208
      %v1210 = vpop.f32.mrf.mxu0
      %1211 = vmatprep.mubr.bf16.mxu0 0
      %1212 = vmatmul.mubr.bf16.gmra.mxu0 %v295
      %v1213 = vpop.f32.mrf.mxu0
      %v1214 = vadd.f32 %v1117, %v1213
      %v1215 = vpop.f32.mrf.mxu0
      %v1216 = vpop.f32.mrf.mxu0
      %v1217 = vadd.f32 %v1120, %v1216
      %v1218 = vpop.f32.mrf.mxu0
      %1219 = vmatprep.mubr.bf16.mxu0 0
      %1220 = vmatmul.mubr.bf16.gmra.mxu0 %v296
      %v1221 = vpop.f32.mrf.mxu0
      %v1222 = vadd.f32 %v1125, %v1221
      %v1223 = vpop.f32.mrf.mxu0
      %v1224 = vpop.f32.mrf.mxu0
      %v1225 = vadd.f32 %v1128, %v1224
      %v1226 = vpop.f32.mrf.mxu0
      %1227 = vmatprep.mubr.bf16.mxu0 0
      %1228 = vmatmul.mubr.bf16.gmra.mxu0 %v297
      %v1229 = vpop.f32.mrf.mxu0
      %v1230 = vadd.f32 %v1133, %v1229
      %v1231 = vpop.f32.mrf.mxu0
      %v1232 = vpop.f32.mrf.mxu0
      %v1233 = vadd.f32 %v1136, %v1232
      %v1234 = vpop.f32.mrf.mxu0
      %1235 = vmatprep.mubr.bf16.mxu0 0
      %1236 = vmatmul.mubr.bf16.gmra.mxu0 %v310
      %v1237 = vpop.f32.mrf.mxu0
      %v1238 = vadd.f32 %v1141, %v1237
      %v1239 = vpop.f32.mrf.mxu0
      %v1240 = vpop.f32.mrf.mxu0
      %v1241 = vadd.f32 %v1144, %v1240
      %v1242 = vpop.f32.mrf.mxu0
      %1243 = vmatprep.mubr.bf16.mxu0 0
      %1244 = vmatmul.mubr.bf16.gmra.mxu0 %v316
      %v1245 = vpop.f32.mrf.mxu0
      %v1246 = vadd.f32 %v1149, %v1245
      %v1247 = vpop.f32.mrf.mxu0
      %v1248 = vpop.f32.mrf.mxu0
      %v1249 = vadd.f32 %v1152, %v1248
      %v1250 = vpop.f32.mrf.mxu0
      %1251 = vdwg.mxu0
      %vm1252 = vcmask 1046528
      %v1253 = vrot.slane %v290, 1
      %v1254 = vrot.slane %v382, 1
      %v1255 = vsel %vm1252, %v1253, %v1254
      %v1256 = vrot.slane %v291, 1
      %v1257 = vrot.slane %v383, 1
      %v1258 = vsel %vm1252, %v1256, %v1257
      %v1259 = vrot.slane %v292, 1
      %v1260 = vrot.slane %v384, 1
      %v1261 = vsel %vm1252, %v1259, %v1260
      %v1262 = vrot.slane %v293, 1
      %v1263 = vrot.slane %v385, 1
      %v1264 = vsel %vm1252, %v1262, %v1263
      %v1265 = vrot.slane %v294, 1
      %v1266 = vrot.slane %v386, 1
      %v1267 = vsel %vm1252, %v1265, %v1266
      %v1268 = vrot.slane %v295, 1
      %v1269 = vrot.slane %v387, 1
      %v1270 = vsel %vm1252, %v1268, %v1269
      %v1271 = vrot.slane %v296, 1
      %v1272 = vrot.slane %v388, 1
      %v1273 = vsel %vm1252, %v1271, %v1272
      %v1274 = vrot.slane %v297, 1
      %v1275 = vrot.slane %v389, 1
      %v1276 = vsel %vm1252, %v1274, %v1275
      %v1277 = vrot.slane %v310, 1
      %v1278 = vrot.slane %v392, 1
      %v1279 = vsel %vm1252, %v1277, %v1278
      %v1280 = vrot.slane %v316, 1
      %v1281 = vrot.slane %v395, 1
      %v1282 = vsel %vm1252, %v1280, %v1281
      %s1293 = scalar_lea.vmem %s1, 384
      %v1294 = vld [vmem:[%s1293] sm:$0xf]
      %v1295 = vld [vmem:[%s1293 + $0x4] sm:$0xf]
      %v1296 = vld [vmem:[%s1293 + $0x8] sm:$0xf]
      %v1297 = vld [vmem:[%s1293 + $0xc] sm:$0xf]
      %v1298 = vld [vmem:[%s1293 + $0x10] sm:$0xf]
      %v1299 = vld [vmem:[%s1293 + $0x14] sm:$0xf]
      %v1300 = vld [vmem:[%s1293 + $0x18] sm:$0xf]
      %v1301 = vld [vmem:[%s1293 + $0x1c] sm:$0xf]
      %v1302 = vld [vmem:[%s1293 + $0x20] sm:$0xf]
      %v1303 = vld [vmem:[%s1293 + $0x24] sm:$0xf]
      %v1304 = vld [vmem:[%s1293 + $0x28] sm:$0xf]
      %v1305 = vld [vmem:[%s1293 + $0x2c] sm:$0xf]
      %v1306 = vld [vmem:[%s1293 + $0x30] sm:$0xf]
      %v1307 = vld [vmem:[%s1293 + $0x34] sm:$0xf]
      %v1308 = vld [vmem:[%s1293 + $0x38] sm:$0xf]
      %v1309 = vld [vmem:[%s1293 + $0x3c] sm:$0xf]
      %v1310 = vld [vmem:[%s1293 + $0x40] sm:$0xf]
      %v1311 = vld [vmem:[%s1293 + $0x44] sm:$0xf]
      %v1312 = vld [vmem:[%s1293 + $0x48] sm:$0xf]
      %v1313 = vld [vmem:[%s1293 + $0x4c] sm:$0xf]
      %v1314 = vld [vmem:[%s1293 + $0x50] sm:$0xf]
      %v1315 = vld [vmem:[%s1293 + $0x54] sm:$0xf]
      %v1316 = vld [vmem:[%s1293 + $0x58] sm:$0xf]
      %v1317 = vld [vmem:[%s1293 + $0x5c] sm:$0xf]
      %v1318 = vld [vmem:[%s1293 + $0x60] sm:$0xf]
      %v1319 = vld [vmem:[%s1293 + $0x64] sm:$0xf]
      %v1320 = vld [vmem:[%s1293 + $0x68] sm:$0xf]
      %v1321 = vld [vmem:[%s1293 + $0x6c] sm:$0xf]
      %v1322 = vld [vmem:[%s1293 + $0x70] sm:$0xf]
      %v1323 = vld [vmem:[%s1293 + $0x74] sm:$0xf]
      %v1324 = vld [vmem:[%s1293 + $0x78] sm:$0xf]
      %v1325 = vld [vmem:[%s1293 + $0x7c] sm:$0xf]
      %v1326 = vld [vmem:[%s1293 + $0x80] sm:$0xf]
      %v1327 = vld [vmem:[%s1293 + $0x84] sm:$0xf]
      %v1328 = vld [vmem:[%s1293 + $0x88] sm:$0xf]
      %v1329 = vld [vmem:[%s1293 + $0x8c] sm:$0xf]
      %v1330 = vld [vmem:[%s1293 + $0x90] sm:$0xf]
      %v1331 = vld [vmem:[%s1293 + $0x94] sm:$0xf]
      %v1332 = vld [vmem:[%s1293 + $0x98] sm:$0xf]
      %v1333 = vld [vmem:[%s1293 + $0x9c] sm:$0xf]
      %v1334 = vld [vmem:[%s1293 + $0xa0] sm:$0xf]
      %v1335 = vld [vmem:[%s1293 + $0xa4] sm:$0xf]
      %v1336 = vld [vmem:[%s1293 + $0xa8] sm:$0xf]
      %v1337 = vld [vmem:[%s1293 + $0xac] sm:$0xf]
      %v1338 = vld [vmem:[%s1293 + $0xb0] sm:$0xf]
      %v1339 = vld [vmem:[%s1293 + $0xb4] sm:$0xf]
      %v1340 = vld [vmem:[%s1293 + $0xb8] sm:$0xf]
      %v1341 = vld [vmem:[%s1293 + $0xbc] sm:$0xf]
      %v1390 = vunpack.c.l.b16 %v1294
      %v1391 = vunpack.c.l.b16 %v1295
      %v1392 = vunpack.c.l.b16 %v1296
      %v1393 = vunpack.c.l.b16 %v1297
      %v1394 = vunpack.c.l.b16 %v1298
      %v1395 = vunpack.c.l.b16 %v1299
      %v1396 = vunpack.c.l.b16 %v1300
      %v1397 = vunpack.c.l.b16 %v1301
      %v1398 = vunpack.c.l.b16 %v1302
      %v1399 = vunpack.c.l.b16 %v1303
      %v1400 = vunpack.c.l.b16 %v1304
      %v1401 = vunpack.c.l.b16 %v1305
      %v1402 = vunpack.c.l.b16 %v1306
      %v1403 = vunpack.c.l.b16 %v1307
      %v1404 = vunpack.c.l.b16 %v1308
      %v1405 = vunpack.c.l.b16 %v1309
      %v1406 = vunpack.c.l.b16 %v1310
      %v1407 = vunpack.c.l.b16 %v1311
      %v1408 = vunpack.c.l.b16 %v1312
      %v1409 = vunpack.c.l.b16 %v1313
      %v1410 = vunpack.c.l.b16 %v1314
      %v1411 = vunpack.c.l.b16 %v1315
      %v1412 = vunpack.c.l.b16 %v1316
      %v1413 = vunpack.c.l.b16 %v1317
      %v1414 = vunpack.c.l.b16 %v1318
      %v1415 = vunpack.c.l.b16 %v1319
      %v1416 = vunpack.c.l.b16 %v1320
      %v1417 = vunpack.c.l.b16 %v1321
      %v1418 = vunpack.c.l.b16 %v1322
      %v1419 = vunpack.c.l.b16 %v1323
      %v1420 = vunpack.c.l.b16 %v1324
      %v1421 = vunpack.c.l.b16 %v1325
      %v1422 = vunpack.c.l.b16 %v1326
      %v1423 = vunpack.c.l.b16 %v1327
      %v1424 = vunpack.c.l.b16 %v1328
      %v1425 = vunpack.c.l.b16 %v1329
      %v1426 = vunpack.c.l.b16 %v1330
      %v1427 = vunpack.c.l.b16 %v1331
      %v1428 = vunpack.c.l.b16 %v1332
      %v1429 = vunpack.c.l.b16 %v1333
      %v1430 = vunpack.c.l.b16 %v1334
      %v1431 = vunpack.c.l.b16 %v1335
      %v1432 = vunpack.c.l.b16 %v1336
      %v1433 = vunpack.c.l.b16 %v1337
      %v1434 = vunpack.c.l.b16 %v1338
      %v1435 = vunpack.c.l.b16 %v1339
      %v1436 = vunpack.c.l.b16 %v1340
      %v1437 = vunpack.c.l.b16 %v1341
      %v1438 = vpack.c.b16 %v1391, %v1390
      %v1439 = vpack.c.b16 %v1393, %v1392
      %v1440 = vpack.c.b16 %v1395, %v1394
      %v1441 = vpack.c.b16 %v1397, %v1396
      %v1442 = vpack.c.b16 %v1399, %v1398
      %v1443 = vpack.c.b16 %v1401, %v1400
      %v1444 = vpack.c.b16 %v1403, %v1402
      %v1445 = vpack.c.b16 %v1405, %v1404
      %v1446 = vpack.c.b16 %v1407, %v1406
      %v1447 = vpack.c.b16 %v1409, %v1408
      %v1448 = vpack.c.b16 %v1411, %v1410
      %v1449 = vpack.c.b16 %v1413, %v1412
      %v1450 = vpack.c.b16 %v1415, %v1414
      %v1451 = vpack.c.b16 %v1417, %v1416
      %v1452 = vpack.c.b16 %v1419, %v1418
      %v1453 = vpack.c.b16 %v1421, %v1420
      %v1454 = vpack.c.b16 %v1423, %v1422
      %v1455 = vpack.c.b16 %v1425, %v1424
      %v1456 = vpack.c.b16 %v1427, %v1426
      %v1457 = vpack.c.b16 %v1429, %v1428
      %v1458 = vpack.c.b16 %v1431, %v1430
      %v1459 = vpack.c.b16 %v1433, %v1432
      %v1460 = vpack.c.b16 %v1435, %v1434
      %v1461 = vpack.c.b16 %v1437, %v1436
      %1486 = vmatprep.subr.bf16.mxu0 0
      %1487 = vmatpush1.bf16.msra.mxu0 %v1445
      %1488 = vmatprep.subr.bf16.mxu0 0
      %1489 = vmatpush1.bf16.msra.mxu0 %v1444
      %1490 = vmatprep.subr.bf16.mxu0 0
      %1491 = vmatpush1.bf16.msra.mxu0 %v1443
      %1492 = vmatprep.subr.bf16.mxu0 0
      %1493 = vmatpush1.bf16.msra.mxu0 %v1442
      %1494 = vmatprep.subr.bf16.mxu0 0
      %1495 = vmatpush1.bf16.msra.mxu0 %v1441
      %1496 = vmatprep.subr.bf16.mxu0 0
      %1497 = vmatpush1.bf16.msra.mxu0 %v1440
      %1498 = vmatprep.subr.bf16.mxu0 0
      %1499 = vmatpush1.bf16.msra.mxu0 %v1439
      %1500 = vmatprep.subr.bf16.mxu0 0
      %1501 = vmatpush1.bf16.msra.mxu0 %v1438
      %1502 = vmatprep.subr.bf16.mxu0 0
      %1503 = vmatpush2.bf16.msra.mxu0 %v1453
      %1504 = vmatprep.subr.bf16.mxu0 0
      %1505 = vmatpush2.bf16.msra.mxu0 %v1452
      %1506 = vmatprep.subr.bf16.mxu0 0
      %1507 = vmatpush2.bf16.msra.mxu0 %v1451
      %1508 = vmatprep.subr.bf16.mxu0 0
      %1509 = vmatpush2.bf16.msra.mxu0 %v1450
      %1510 = vmatprep.subr.bf16.mxu0 0
      %1511 = vmatpush2.bf16.msra.mxu0 %v1449
      %1512 = vmatprep.subr.bf16.mxu0 0
      %1513 = vmatpush2.bf16.msra.mxu0 %v1448
      %1514 = vmatprep.subr.bf16.mxu0 0
      %1515 = vmatpush2.bf16.msra.mxu0 %v1447
      %1516 = vmatprep.subr.bf16.mxu0 0
      %1517 = vmatpush2.bf16.msra.mxu0 %v1446
      %1518 = vmatprep.mubr.bf16.mxu0 %v1258
      %1519 = vmatmul.mubr.bf16.gmra.mxu0 %v1255
      %v1520 = vpop.f32.mrf.mxu0
      %v1521 = vadd.f32 0.0, %v1520
      %v1522 = vpop.f32.mrf.mxu0
      %v1523 = vpop.f32.mrf.mxu0
      %v1524 = vadd.f32 0.0, %v1523
      %v1525 = vpop.f32.mrf.mxu0
      %1526 = vmatprep.mubr.bf16.mxu0 %v1261
      %1527 = vmatmul.mubr.bf16.gmra.mxu0 %v1258
      %v1528 = vpop.f32.mrf.mxu0
      %v1529 = vadd.f32 0.0, %v1528
      %v1530 = vpop.f32.mrf.mxu0
      %v1531 = vpop.f32.mrf.mxu0
      %v1532 = vadd.f32 0.0, %v1531
      %v1533 = vpop.f32.mrf.mxu0
      %1534 = vmatprep.mubr.bf16.mxu0 %v1264
      %1535 = vmatmul.mubr.bf16.gmra.mxu0 %v1261
      %v1536 = vpop.f32.mrf.mxu0
      %v1537 = vadd.f32 0.0, %v1536
      %v1538 = vpop.f32.mrf.mxu0
      %v1539 = vpop.f32.mrf.mxu0
      %v1540 = vadd.f32 0.0, %v1539
      %v1541 = vpop.f32.mrf.mxu0
      %1542 = vmatprep.mubr.bf16.mxu0 %v1267
      %1543 = vmatmul.mubr.bf16.gmra.mxu0 %v1264
      %v1544 = vpop.f32.mrf.mxu0
      %v1545 = vadd.f32 0.0, %v1544
      %v1546 = vpop.f32.mrf.mxu0
      %v1547 = vpop.f32.mrf.mxu0
      %v1548 = vadd.f32 0.0, %v1547
      %v1549 = vpop.f32.mrf.mxu0
      %1550 = vmatprep.mubr.bf16.mxu0 %v1270
      %1551 = vmatmul.mubr.bf16.gmra.mxu0 %v1267
      %v1552 = vpop.f32.mrf.mxu0
      %v1553 = vadd.f32 0.0, %v1552
      %v1554 = vpop.f32.mrf.mxu0
      %v1555 = vpop.f32.mrf.mxu0
      %v1556 = vadd.f32 0.0, %v1555
      %v1557 = vpop.f32.mrf.mxu0
      %1558 = vmatprep.mubr.bf16.mxu0 %v1273
      %1559 = vmatmul.mubr.bf16.gmra.mxu0 %v1270
      %v1560 = vpop.f32.mrf.mxu0
      %v1561 = vadd.f32 0.0, %v1560
      %v1562 = vpop.f32.mrf.mxu0
      %v1563 = vpop.f32.mrf.mxu0
      %v1564 = vadd.f32 0.0, %v1563
      %v1565 = vpop.f32.mrf.mxu0
      %1566 = vmatprep.mubr.bf16.mxu0 %v1276
      %1567 = vmatmul.mubr.bf16.gmra.mxu0 %v1273
      %v1568 = vpop.f32.mrf.mxu0
      %v1569 = vadd.f32 0.0, %v1568
      %v1570 = vpop.f32.mrf.mxu0
      %v1571 = vpop.f32.mrf.mxu0
      %v1572 = vadd.f32 0.0, %v1571
      %v1573 = vpop.f32.mrf.mxu0
      %1574 = vmatprep.mubr.bf16.mxu0 %v1279
      %1575 = vmatmul.mubr.bf16.gmra.mxu0 %v1276
      %v1576 = vpop.f32.mrf.mxu0
      %v1577 = vadd.f32 0.0, %v1576
      %v1578 = vpop.f32.mrf.mxu0
      %v1579 = vpop.f32.mrf.mxu0
      %v1580 = vadd.f32 0.0, %v1579
      %v1581 = vpop.f32.mrf.mxu0
      %1582 = vdwg.mxu0
      %1583 = vmatprep.subr.bf16.mxu0 0
      %1584 = vmatpush1.bf16.msra.mxu0 %v1461
      %1585 = vmatprep.subr.bf16.mxu0 0
      %1586 = vmatpush1.bf16.msra.mxu0 %v1460
      %1587 = vmatprep.subr.bf16.mxu0 0
      %1588 = vmatpush1.bf16.msra.mxu0 %v1459
      %1589 = vmatprep.subr.bf16.mxu0 0
      %1590 = vmatpush1.bf16.msra.mxu0 %v1458
      %1591 = vmatprep.subr.bf16.mxu0 0
      %1592 = vmatpush1.bf16.msra.mxu0 %v1457
      %1593 = vmatprep.subr.bf16.mxu0 0
      %1594 = vmatpush1.bf16.msra.mxu0 %v1456
      %1595 = vmatprep.subr.bf16.mxu0 0
      %1596 = vmatpush1.bf16.msra.mxu0 %v1455
      %1597 = vmatprep.subr.bf16.mxu0 0
      %1598 = vmatpush1.bf16.msra.mxu0 %v1454
      %1599 = vmatprep.subr.bf16.mxu0 0
      %1600 = vmatpush2.bf16.msra.mxu0 0
      %1601 = vmatprep.subr.bf16.mxu0 0
      %1602 = vmatpush2.bf16.msra.mxu0 0
      %1603 = vmatprep.subr.bf16.mxu0 0
      %1604 = vmatpush2.bf16.msra.mxu0 0
      %1605 = vmatprep.subr.bf16.mxu0 0
      %1606 = vmatpush2.bf16.msra.mxu0 0
      %1607 = vmatprep.subr.bf16.mxu0 0
      %1608 = vmatpush2.bf16.msra.mxu0 0
      %1609 = vmatprep.subr.bf16.mxu0 0
      %1610 = vmatpush2.bf16.msra.mxu0 0
      %1611 = vmatprep.subr.bf16.mxu0 0
      %1612 = vmatpush2.bf16.msra.mxu0 0
      %1613 = vmatprep.subr.bf16.mxu0 0
      %1614 = vmatpush2.bf16.msra.mxu0 0
      %1615 = vmatprep.mubr.bf16.mxu0 0
      %1616 = vmatmul.mubr.bf16.gmra.mxu0 %v1261
      %v1617 = vpop.f32.mrf.mxu0
      %v1618 = vadd.f32 %v1521, %v1617
      %v1619 = vpop.f32.mrf.mxu0
      %v1620 = vpop.f32.mrf.mxu0
      %v1621 = vadd.f32 %v1524, %v1620
      %v1622 = vpop.f32.mrf.mxu0
      %1623 = vmatprep.mubr.bf16.mxu0 0
      %1624 = vmatmul.mubr.bf16.gmra.mxu0 %v1264
      %v1625 = vpop.f32.mrf.mxu0
      %v1626 = vadd.f32 %v1529, %v1625
      %v1627 = vpop.f32.mrf.mxu0
      %v1628 = vpop.f32.mrf.mxu0
      %v1629 = vadd.f32 %v1532, %v1628
      %v1630 = vpop.f32.mrf.mxu0
      %1631 = vmatprep.mubr.bf16.mxu0 0
      %1632 = vmatmul.mubr.bf16.gmra.mxu0 %v1267
      %v1633 = vpop.f32.mrf.mxu0
      %v1634 = vadd.f32 %v1537, %v1633
      %v1635 = vpop.f32.mrf.mxu0
      %v1636 = vpop.f32.mrf.mxu0
      %v1637 = vadd.f32 %v1540, %v1636
      %v1638 = vpop.f32.mrf.mxu0
      %1639 = vmatprep.mubr.bf16.mxu0 0
      %1640 = vmatmul.mubr.bf16.gmra.mxu0 %v1270
      %v1641 = vpop.f32.mrf.mxu0
      %v1642 = vadd.f32 %v1545, %v1641
      %v1643 = vpop.f32.mrf.mxu0
      %v1644 = vpop.f32.mrf.mxu0
      %v1645 = vadd.f32 %v1548, %v1644
      %v1646 = vpop.f32.mrf.mxu0
      %1647 = vmatprep.mubr.bf16.mxu0 0
      %1648 = vmatmul.mubr.bf16.gmra.mxu0 %v1273
      %v1649 = vpop.f32.mrf.mxu0
      %v1650 = vadd.f32 %v1553, %v1649
      %v1651 = vpop.f32.mrf.mxu0
      %v1652 = vpop.f32.mrf.mxu0
      %v1653 = vadd.f32 %v1556, %v1652
      %v1654 = vpop.f32.mrf.mxu0
      %1655 = vmatprep.mubr.bf16.mxu0 0
      %1656 = vmatmul.mubr.bf16.gmra.mxu0 %v1276
      %v1657 = vpop.f32.mrf.mxu0
      %v1658 = vadd.f32 %v1561, %v1657
      %v1659 = vpop.f32.mrf.mxu0
      %v1660 = vpop.f32.mrf.mxu0
      %v1661 = vadd.f32 %v1564, %v1660
      %v1662 = vpop.f32.mrf.mxu0
      %1663 = vmatprep.mubr.bf16.mxu0 0
      %1664 = vmatmul.mubr.bf16.gmra.mxu0 %v1279
      %v1665 = vpop.f32.mrf.mxu0
      %v1666 = vadd.f32 %v1569, %v1665
      %v1667 = vpop.f32.mrf.mxu0
      %v1668 = vpop.f32.mrf.mxu0
      %v1669 = vadd.f32 %v1572, %v1668
      %v1670 = vpop.f32.mrf.mxu0
      %1671 = vmatprep.mubr.bf16.mxu0 0
      %1672 = vmatmul.mubr.bf16.gmra.mxu0 %v1282
      %v1673 = vpop.f32.mrf.mxu0
      %v1674 = vadd.f32 %v1577, %v1673
      %v1675 = vpop.f32.mrf.mxu0
      %v1676 = vpop.f32.mrf.mxu0
      %v1677 = vadd.f32 %v1580, %v1676
      %v1678 = vpop.f32.mrf.mxu0
      %1679 = vdwg.mxu0
      %v1680 = vadd.f32 %v1190, %v1618
      %v1681 = vadd.f32 %v1193, %v1621
      %v1682 = vadd.f32 %v1198, %v1626
      %v1683 = vadd.f32 %v1201, %v1629
      %v1684 = vadd.f32 %v1206, %v1634
      %v1685 = vadd.f32 %v1209, %v1637
      %v1686 = vadd.f32 %v1214, %v1642
      %v1687 = vadd.f32 %v1217, %v1645
      %v1688 = vadd.f32 %v1222, %v1650
      %v1689 = vadd.f32 %v1225, %v1653
      %v1690 = vadd.f32 %v1230, %v1658
      %v1691 = vadd.f32 %v1233, %v1661
      %v1692 = vadd.f32 %v1238, %v1666
      %v1693 = vadd.f32 %v1241, %v1669
      %v1694 = vadd.f32 %v1246, %v1674
      %v1695 = vadd.f32 %v1249, %v1677
      %v1696 = vld [vmem:[%s2] sm:$0x1]
      %v1698 = vlaneseq
      %v1699 = vshrl.u32 %v1698, 7
      %v1700 = vsub.s32 0, %v1699
      %v1701 = vrot.slane %v1696, %v1700
      %v1703 = vmul.f32 %v1680, %v1701
      %v1704 = vmul.f32 %v1681, %v1701
      %v1705 = vmul.f32 %v1682, %v1701
      %v1706 = vmul.f32 %v1683, %v1701
      %v1707 = vmul.f32 %v1684, %v1701
      %v1708 = vmul.f32 %v1685, %v1701
      %v1709 = vmul.f32 %v1686, %v1701
      %v1710 = vmul.f32 %v1687, %v1701
      %v1711 = vmul.f32 %v1688, %v1701
      %v1712 = vmul.f32 %v1689, %v1701
      %v1713 = vmul.f32 %v1690, %v1701
      %v1714 = vmul.f32 %v1691, %v1701
      %v1715 = vmul.f32 %v1692, %v1701
      %v1716 = vmul.f32 %v1693, %v1701
      %v1717 = vmul.f32 %v1694, %v1701
      %v1718 = vmul.f32 %v1695, %v1701
      %v1719 = vld [vmem:[%s3] sm:$0x1]
      %v1721 = vlaneseq
      %v1722 = vshrl.u32 %v1721, 7
      %v1723 = vsub.s32 0, %v1722
      %v1724 = vrot.slane %v1719, %v1723
      %v1726 = vadd.f32 %v1703, %v1724
      %v1727 = vadd.f32 %v1704, %v1724
      %v1728 = vadd.f32 %v1705, %v1724
      %v1729 = vadd.f32 %v1706, %v1724
      %v1730 = vadd.f32 %v1707, %v1724
      %v1731 = vadd.f32 %v1708, %v1724
      %v1732 = vadd.f32 %v1709, %v1724
      %v1733 = vadd.f32 %v1710, %v1724
      %v1734 = vadd.f32 %v1711, %v1724
      %v1735 = vadd.f32 %v1712, %v1724
      %v1736 = vadd.f32 %v1713, %v1724
      %v1737 = vadd.f32 %v1714, %v1724
      %v1738 = vadd.f32 %v1715, %v1724
      %v1739 = vadd.f32 %v1716, %v1724
      %v1740 = vadd.f32 %v1717, %v1724
      %v1741 = vadd.f32 %v1718, %v1724
      %v1742 = vmax.f32 %v1726, 0.0
      %v1743 = vmax.f32 %v1727, 0.0
      %v1744 = vmax.f32 %v1728, 0.0
      %v1745 = vmax.f32 %v1729, 0.0
      %v1746 = vmax.f32 %v1730, 0.0
      %v1747 = vmax.f32 %v1731, 0.0
      %v1748 = vmax.f32 %v1732, 0.0
      %v1749 = vmax.f32 %v1733, 0.0
      %v1750 = vmax.f32 %v1734, 0.0
      %v1751 = vmax.f32 %v1735, 0.0
      %v1752 = vmax.f32 %v1736, 0.0
      %v1753 = vmax.f32 %v1737, 0.0
      %v1754 = vmax.f32 %v1738, 0.0
      %v1755 = vmax.f32 %v1739, 0.0
      %v1756 = vmax.f32 %v1740, 0.0
      %v1757 = vmax.f32 %v1741, 0.0
      %vm1758 = vcmask 785408
      %1759 = vst.msk [vmem:[%s221] sm:$0xff] %vm1758, %v1742
      %1760 = vst.msk [vmem:[%s221 + $0x8] sm:$0xff] %vm1758, %v1743
      %1761 = vst.msk [vmem:[%s221 + $0x10] sm:$0xff] %vm1758, %v1744
      %1762 = vst.msk [vmem:[%s221 + $0x18] sm:$0xff] %vm1758, %v1745
      %1763 = vst.msk [vmem:[%s221 + $0x20] sm:$0xff] %vm1758, %v1746
      %1764 = vst.msk [vmem:[%s221 + $0x28] sm:$0xff] %vm1758, %v1747
      %1765 = vst.msk [vmem:[%s221 + $0x30] sm:$0xff] %vm1758, %v1748
      %1766 = vst.msk [vmem:[%s221 + $0x38] sm:$0xff] %vm1758, %v1749
      %1767 = vst.msk [vmem:[%s221 + $0x40] sm:$0xff] %vm1758, %v1750
      %1768 = vst.msk [vmem:[%s221 + $0x48] sm:$0xff] %vm1758, %v1751
      %1769 = vst.msk [vmem:[%s221 + $0x50] sm:$0xff] %vm1758, %v1752
      %1770 = vst.msk [vmem:[%s221 + $0x58] sm:$0xff] %vm1758, %v1753
      %1771 = vst.msk [vmem:[%s221 + $0x60] sm:$0xff] %vm1758, %v1754
      %1772 = vst.msk [vmem:[%s221 + $0x68] sm:$0xff] %vm1758, %v1755
      %1773 = vst.msk [vmem:[%s221 + $0x70] sm:$0xff] %vm1758, %v1756
      %1774 = vst.msk [vmem:[%s221 + $0x78] sm:$0xff] %vm1758, %v1757
      %s1775 = smul.u32 8, %s20
      %p1776 = scmp.lt.s32.totalorder %s19, 1
      %s1777 = scalar_select %p1776, %s19, 1
      %p1778 = scmp.lt.s32.totalorder %s1775, 15
      %s1779 = scalar_select %p1778, %s1775, 15
      %s1780 = smul.addr %s1779, 2
      %s1781 = smul.addr %s1777, 32
      %s1782 = sadd.s32 %s1780, %s1781
      %s1783 = smul.addr %s1782, 8
      %s1784 = scalar_lea.vmem %s4, %s1783
      // Predicated region
      $region37: #{inception_a_forward.6} parent=35 // pred_check
        %p1785 = pneg %p136
      $region38: #{inception_a_forward.6} parent=35 // pred_check_branch
        %1787 = sbr.rel (%p1785) target = $region40
      $region39: #{inception_a_forward.6} parent=35 // pred_region
        %s1788 = smul.u32 8, %s20
      $region40: #{inception_a_forward.6} parent=35 // pred_fallthru
        _
    $region36: #{inception_a_forward.6} parent=5 // pred_fallthru
      _
    %p1789 = scmp.le.s32.totalorder 2, %s10
    // Predicated region
    $region41: #{inception_a_forward.6} parent=5 // pred_check
      %p1790 = pneg %p1789
    $region42: #{inception_a_forward.6} parent=5 // pred_check_branch
      %1792 = sbr.rel (%p1790) target = $region44
    $region43: #{inception_a_forward.6} parent=5 // pred_region
      %s1793 = ssub.s32 %s10, 2
      // Predicated region
      $region45: #{inception_a_forward.6} parent=43 // pred_check
        %p1794 = pneg %p142
      $region46: #{inception_a_forward.6} parent=43 // pred_check_branch
        %1796 = sbr.rel (%p1794) target = $region48
      $region47: #{inception_a_forward.6} parent=43 // pred_region
        %s1797 = smul.u32 8, %s22
        %p1798 = scmp.lt.s32.totalorder %s21, 1
        %s1799 = scalar_select %p1798, %s21, 1
        %p1800 = scmp.lt.s32.totalorder %s1797, 15
        %s1801 = scalar_select %p1800, %s1797, 15
        %s1802 = smul.addr %s1801, 2
        %s1803 = smul.addr %s1799, 32
        %s1804 = sadd.s32 %s1802, %s1803
        %s1805 = smul.addr %s1804, 8
        %s1806 = scalar_lea.vmem %s4, %s1805
      $region48: #{inception_a_forward.6} parent=43 // pred_fallthru
        _
    $region44: #{inception_a_forward.6} parent=5 // pred_fallthru
      _
  $region6: #{inception_a_forward.6} parent=0 // loop_footer
    %s14 = sadd.s32 1, %s10
  $region7: #{inception_a_forward.6} parent=0 // loop_footer_branch
    %9 = sbr.rel target = $region3
  $region8: #{inception_a_forward.6} parent=0 // loop_exit
    _

</llo_original>
